<compile_context>
chip_gen: v7x
topology: tpu7x:2x2x1
jax: 0.10.0
libtpu: 0.0.40
codegen_flags: <defaults>
</compile_context>

<pallas_src>
from functools import partial

import jax
import jax.numpy as jnp
from jax.experimental import pallas as pl
from jax.experimental.pallas import tpu as pltpu


def _layernorm(v, w, b, eps=1e-5):
    mu = jnp.mean(v, axis=-1, keepdims=True)
    var = jnp.mean((v - mu) ** 2, axis=-1, keepdims=True)
    return (v - mu) * jax.lax.rsqrt(var + eps) * w + b


def ltm_block_kernel(x_ref, mwe_ref, wqkv_ref, wkvm_ref, wp_ref, w1_ref,
                     w2_ref, vec_ref, x_out_ref, qloss_ref, *, lq_add):
    bf16 = jnp.bfloat16
    Bb, T, E = x_ref.shape
    H, _, M, _ = mwe_ref.shape
    hs = wp_ref.shape[1]
    n = Bb * T            # rows processed this grid step
    G = H * Bb            # fused (head, batch) batch dimension

    # Packed small vectors: rows 0..5 = ln1w, ln1b, ln2w, ln2b, bp, b2 (E wide),
    # row 6 = b1 (4E wide).
    vec = vec_ref[...]
    ln1w, ln1b = vec[0:1, 0:E], vec[1:2, 0:E]
    ln2w, ln2b = vec[2:3, 0:E], vec[3:4, 0:E]
    bp, b2 = vec[4:5, 0:E], vec[5:6, 0:E]
    b1 = vec[6:7, :]

    x2d = x_ref[...].reshape(n, E)                                   # (n,E) f32
    ln1 = _layernorm(x2d, ln1w, ln1b)
    ln1_bf = ln1.astype(bf16)

    # ---- head-batched q/k/v for the sequence rows (one H-batched matmul) ----
    ln1_bc = jnp.broadcast_to(ln1_bf[None, :, :], (H, n, E))
    qkv = jnp.einsum('hne,hef->hnf', ln1_bc, wqkv_ref[...],
                     preferred_element_type=jnp.float32).astype(bf16)  # (H,n,3hs)
    q = qkv[:, :, 0:hs].reshape(G, T, hs)
    k_seq = qkv[:, :, hs:2 * hs].reshape(G, T, hs)
    v_seq = qkv[:, :, 2 * hs:3 * hs].reshape(G, T, hs)

    # ---- head-batched k/v for the memory rows -------------------------------
    mwe = mwe_ref[...].reshape(H, Bb * M, E)                         # bf16
    kv_m = jnp.einsum('hme,hef->hmf', mwe, wkvm_ref[...],
                      preferred_element_type=jnp.float32).astype(bf16)
    k_mem = kv_m[:, :, 0:hs].reshape(G, M, hs)
    v_mem = kv_m[:, :, hs:2 * hs].reshape(G, M, hs)

    # ---- scores (scale cancels under max-normalization, see header note) ----
    s_mem = jnp.einsum('gtd,gmd->gtm', q, k_mem,
                       preferred_element_type=jnp.float32)           # (G,T,M)
    s_seq = jnp.einsum('gtd,gsd->gts', q, k_seq,
                       preferred_element_type=jnp.float32)           # (G,T,T)
    s_mem = s_mem * s_mem
    s_seq = s_seq * s_seq
    rmax = jnp.maximum(jnp.max(s_mem, axis=2, keepdims=True),
                       jnp.max(s_seq, axis=2, keepdims=True))        # (G,T,1)
    rmax = jnp.maximum(rmax, 1e-30)          # guard all-zero rows (inf/NaN)
    inv = pl.reciprocal(rmax, approx=True)
    w_mem = s_mem * inv
    w_seq = s_seq * inv

    qloss_val = (jnp.sum(jnp.log(w_mem + lq_add)) +
                 jnp.sum(jnp.log(w_seq + lq_add)))

    out = (jnp.einsum('gtm,gmd->gtd', w_mem.astype(bf16), v_mem,
                      preferred_element_type=jnp.float32) +
           jnp.einsum('gts,gsd->gtd', w_seq.astype(bf16), v_seq,
                      preferred_element_type=jnp.float32))           # (G,T,hs)

    # ---- output projection folded in: per-head batched matmul + head sum ----
    out_h = out.astype(bf16).reshape(H, n, hs)
    proj = jnp.einsum('hnd,hde->hne', out_h, wp_ref[...],
                      preferred_element_type=jnp.float32)            # (H,n,E)
    sa = jnp.sum(proj, axis=0) + bp                                  # (n,E)

    x1 = x2d + sa
    ln2 = _layernorm(x1, ln2w, ln2b)
    hmid = jnp.maximum(
        jnp.dot(ln2.astype(bf16), w1_ref[...],
                preferred_element_type=jnp.float32) + b1, 0.0)
    ff = jnp.dot(hmid.astype(bf16), w2_ref[...],
                 preferred_element_type=jnp.float32) + b2
    x_out_ref[...] = (x1 + ff).reshape(Bb, T, E)
    qloss_ref[0, 0] = qloss_val


def prepare_ltm_params(params):
    """One-time weight restacking / bf16 casts (hoisted out of the hot path)."""
    H, E, hs = params['wq'].shape
    F = params['w1'].shape[1]
    bf16 = jnp.bfloat16
    vecs = jnp.zeros((8, F), jnp.float32)
    rows = [params['ln1w'], params['ln1b'], params['ln2w'], params['ln2b'],
            params['bp'], params['b2'], params['b1']]
    for r, v in enumerate(rows):
        v = jnp.asarray(v, jnp.float32).reshape(-1)
        vecs = vecs.at[r, :v.shape[0]].set(v)
    return dict(
        wqkv=jnp.concatenate([params['wq'], params['wk'], params['wv']],
                             axis=2).astype(bf16),        # (H, E, 3*hs)
        wkvm=jnp.concatenate([params['wk'], params['wv']],
                             axis=2).astype(bf16),        # (H, E, 2*hs)
        wp=params['wp'].reshape(H, hs, E).astype(bf16),   # (H, hs, E)
        w1=params['w1'].astype(bf16),
        w2=params['w2'].astype(bf16),
        vecs=vecs)


def ltm_block_pallas(x, m_with_emb, prep, lq_add, batch_block=None):
    B, T, E = x.shape
    H, _, M, _ = m_with_emb.shape
    if batch_block is None:                 # largest divisor of B that is <= 8
        batch_block = 1
        for d in range(1, min(B, 8) + 1):
            if B % d == 0:
                batch_block = d
    assert B % batch_block == 0
    nsteps = B // batch_block

    mwe_bf = m_with_emb.astype(jnp.bfloat16)    # halves the memory-tensor DMA
    inputs = (x, mwe_bf, prep['wqkv'], prep['wkvm'], prep['wp'],
              prep['w1'], prep['w2'], prep['vecs'])

    def _full(a):                    # whole array resident, constant index map
        nd = a.ndim
        return pl.BlockSpec(a.shape, lambda b, nd=nd: (0,) * nd)

    in_specs = ([pl.BlockSpec((batch_block, T, E), lambda b: (b, 0, 0)),
                 pl.BlockSpec((H, batch_block, M, E), lambda b: (0, b, 0, 0))]
                + [_full(a) for a in inputs[2:]])
    out_specs = (pl.BlockSpec((batch_block, T, E), lambda b: (b, 0, 0)),
                 pl.BlockSpec((1, 1), lambda b: (b, 0),
                              memory_space=pltpu.MemorySpace.SMEM))
    out_shape = (jax.ShapeDtypeStruct((B, T, E), jnp.float32),
                 jax.ShapeDtypeStruct((nsteps, 1), jnp.float32))

    x_out, qloss = pl.pallas_call(
        partial(ltm_block_kernel, lq_add=float(lq_add)),
        grid_spec=pltpu.PrefetchScalarGridSpec(
            num_scalar_prefetch=0, grid=(nsteps,),
            in_specs=in_specs, out_specs=out_specs),
        out_shape=out_shape,
        compiler_params=pltpu.CompilerParams(
            dimension_semantics=("parallel",)),
    )(*inputs)
    return x_out, jnp.sum(qloss)


def prepare_memory_with_emb(block_pos, memory, dist, emb_table):
    """Glue replicating the LTMHead buffer prep: reset where block_pos==0,
    dist += 1, m_pos_ix = int(log2(dist)), memory + embedding(m_pos_ix)."""
    reset = (block_pos == 0)[None, :, None]                   # (1, B, 1)
    mem = jnp.where(reset[..., None], 0.0, memory)            # (H, B, M, E)
    d = jnp.where(reset, 0, dist) + 1                         # (H, B, M) int32
    ix = jnp.log2(d.astype(jnp.float32)).astype(jnp.int32)    # trunc like torch .int()
    return mem + emb_table[ix]                                # (H, B, M, E)


def reference_forward(x, m_with_emb, p, lq_add):
    """Pure-JAX f32 reference of LTMBlock.forward for validation."""
    B, T, E = x.shape
    H = p['wq'].shape[0]
    M = m_with_emb.shape[2]
    scale = float(M + T) ** -0.5
    ln1 = _layernorm(x, p['ln1w'], p['ln1b'])
    outs, qloss = [], jnp.float32(0.0)
    for h in range(H):
        cat = jnp.concatenate([m_with_emb[h], ln1], axis=1)
        q = jnp.einsum('bte,eh->bth', ln1, p['wq'][h])
        k = jnp.einsum('bse,eh->bsh', cat, p['wk'][h])
        v = jnp.einsum('bse,eh->bsh', cat, p['wv'][h])
        wei = jnp.einsum('bth,bsh->bts', q, k) * scale
        wei = wei * wei
        wei = wei / jnp.max(wei, axis=2, keepdims=True)
        qloss = qloss + jnp.sum(jnp.log(wei + lq_add))
        outs.append(jnp.einsum('bts,bsh->bth', wei, v))
    sa = jnp.concatenate(outs, axis=-1) @ p['wp'] + p['bp']
    x1 = x + sa
    ln2 = _layernorm(x1, p['ln2w'], p['ln2b'])
    ff = jnp.maximum(ln2 @ p['w1'] + p['b1'], 0.0) @ p['w2'] + p['b2']
    return x1 + ff, qloss


if __name__ == "__main__":
    key = jax.random.PRNGKey(0)
    B, T, E = 2, 8, 32        # batch, block_size (seq len), n_embd
    H, hs = 4, 8              # n_head, head_size  (H * hs == n_embd)
    M = 8                     # n_memory
    TABLE = 16                # block_sqr_pos_embedding_table rows
    lq_add = 0.01
    # decay = 0.1  (only affects the memory_rank buffer update; not the outputs)

    keys = jax.random.split(key, 13)
    x = jax.random.normal(keys[0], (B, T, E), jnp.float32)
    emb_table = 0.05 * jax.random.normal(keys[1], (TABLE, E), jnp.float32)
    memory = 0.1 * jax.random.normal(keys[2], (H, B, M, E), jnp.float32)
    dist = jax.random.randint(keys[3], (H, B, M), 0, 7, jnp.int32)
    block_pos = jnp.array([0, 3], jnp.int32)   # batch 0 triggers memory reset

    s = 0.08
    params = dict(
        wq=s * jax.random.normal(keys[4], (H, E, hs), jnp.float32),
        wk=s * jax.random.normal(keys[5], (H, E, hs), jnp.float32),
        wv=s * jax.random.normal(keys[6], (H, E, hs), jnp.float32),
        wp=s * jax.random.normal(keys[7], (E, E), jnp.float32),
        bp=s * jax.random.normal(keys[8], (1, E), jnp.float32),
        w1=s * jax.random.normal(keys[9], (E, 4 * E), jnp.float32),
        b1=s * jax.random.normal(keys[10], (1, 4 * E), jnp.float32),
        w2=s * jax.random.normal(keys[11], (4 * E, E), jnp.float32),
        b2=s * jax.random.normal(keys[12], (1, E), jnp.float32),
        ln1w=jnp.ones((1, E), jnp.float32),
        ln1b=jnp.zeros((1, E), jnp.float32),
        ln2w=jnp.ones((1, E), jnp.float32),
        ln2b=jnp.zeros((1, E), jnp.float32),
    )

    m_with_emb = prepare_memory_with_emb(block_pos, memory, dist, emb_table)
    prep = prepare_ltm_params(params)          # hoisted one-time preprocessing

    total_query_loss_in = jnp.float32(0.0)
    x_out, qloss = ltm_block_pallas(x, m_with_emb, prep, lq_add)
    total_query_loss = total_query_loss_in + qloss
    jax.block_until_ready((x_out, total_query_loss))

    # correctness check vs pure-JAX f32 reference (kernel uses bf16 matmuls)
    x_ref, qloss_ref = reference_forward(x, m_with_emb, params, lq_add)
    assert x_out.shape == (B, T, E)
    assert jnp.allclose(x_out, x_ref, rtol=2e-2, atol=3e-2)
    assert jnp.allclose(qloss, qloss_ref, rtol=2e-2, atol=2e-2)

    print("KERNEL_OK")
</pallas_src>

<mosaic_0001>
module attributes {stable_mosaic.version = 11 : i64} {
  func.func @ltm_block_kernel(%arg0: i32, %arg1: memref<2x8x32xf32, #tpu.memory_space<vmem>>, %arg2: memref<4x2x8x32xbf16, #tpu.memory_space<vmem>>, %arg3: memref<4x32x24xbf16, #tpu.memory_space<vmem>>, %arg4: memref<4x32x16xbf16, #tpu.memory_space<vmem>>, %arg5: memref<4x8x32xbf16, #tpu.memory_space<vmem>>, %arg6: memref<32x128xbf16, #tpu.memory_space<vmem>>, %arg7: memref<128x32xbf16, #tpu.memory_space<vmem>>, %arg8: memref<8x128xf32, #tpu.memory_space<vmem>>, %arg9: memref<2x8x32xf32, #tpu.memory_space<vmem>>, %arg10: memref<1x1xf32, #tpu.memory_space<smem>>) attributes {dimension_semantics = [#tpu.dimension_semantics<parallel>], iteration_bounds = array<i64: 1>, scalar_prefetch = 0 : i64, scratch_operands = 0 : i64, tpu.core_type = #tpu.core_type<tc>, window_params = [{transform_indices = @transform_0, window_bounds = array<i64: 2, 8, 32>}, {transform_indices = @transform_1, window_bounds = array<i64: 4, 2, 8, 32>}, {pipeline_mode = #tpu.pipeline_mode<synchronous>, transform_indices = @transform_2, window_bounds = array<i64: 4, 32, 24>}, {pipeline_mode = #tpu.pipeline_mode<synchronous>, transform_indices = @transform_3, window_bounds = array<i64: 4, 32, 16>}, {pipeline_mode = #tpu.pipeline_mode<synchronous>, transform_indices = @transform_4, window_bounds = array<i64: 4, 8, 32>}, {pipeline_mode = #tpu.pipeline_mode<synchronous>, transform_indices = @transform_5, window_bounds = array<i64: 32, 128>}, {pipeline_mode = #tpu.pipeline_mode<synchronous>, transform_indices = @transform_6, window_bounds = array<i64: 128, 32>}, {pipeline_mode = #tpu.pipeline_mode<synchronous>, transform_indices = @transform_7, window_bounds = array<i64: 8, 128>}, {transform_indices = @transform_8, window_bounds = array<i64: 2, 8, 32>}, {transform_indices = @transform_9, window_bounds = array<i64: 1, 1>}]} {
    %c0 = arith.constant 0 : index
    %c0_0 = arith.constant 0 : index
    %0 = vector.load %arg8[%c0, %c0_0] : memref<8x128xf32, #tpu.memory_space<vmem>>, vector<8x128xf32>
    %1 = vector.extract_strided_slice %0 {offsets = [0, 0], sizes = [1, 32], strides = [1, 1]} : vector<8x128xf32> to vector<1x32xf32>
    %2 = vector.extract_strided_slice %0 {offsets = [1, 0], sizes = [1, 32], strides = [1, 1]} : vector<8x128xf32> to vector<1x32xf32>
    %3 = vector.extract_strided_slice %0 {offsets = [2, 0], sizes = [1, 32], strides = [1, 1]} : vector<8x128xf32> to vector<1x32xf32>
    %4 = vector.extract_strided_slice %0 {offsets = [3, 0], sizes = [1, 32], strides = [1, 1]} : vector<8x128xf32> to vector<1x32xf32>
    %5 = vector.extract_strided_slice %0 {offsets = [4, 0], sizes = [1, 32], strides = [1, 1]} : vector<8x128xf32> to vector<1x32xf32>
    %6 = vector.extract_strided_slice %0 {offsets = [5, 0], sizes = [1, 32], strides = [1, 1]} : vector<8x128xf32> to vector<1x32xf32>
    %7 = vector.extract_strided_slice %0 {offsets = [6, 0], sizes = [1, 128], strides = [1, 1]} : vector<8x128xf32> to vector<1x128xf32>
    %c0_1 = arith.constant 0 : index
    %c0_2 = arith.constant 0 : index
    %c0_3 = arith.constant 0 : index
    %8 = vector.load %arg1[%c0_1, %c0_2, %c0_3] : memref<2x8x32xf32, #tpu.memory_space<vmem>>, vector<2x8x32xf32>
    %9 = vector.shape_cast %8 : vector<2x8x32xf32> to vector<16x32xf32>
    %cst = arith.constant dense<0.000000e+00> : vector<16xf32>
    %10 = vector.multi_reduction <add>, %9, %cst [1] : vector<16x32xf32> to vector<16xf32>
    %11 = vector.shape_cast %10 : vector<16xf32> to vector<16x1xf32>
    %cst_4 = arith.constant 3.200000e+01 : f32
    %12 = vector.broadcast %cst_4 : f32 to vector<16x1xf32>
    %13 = arith.divf %11, %12 : vector<16x1xf32>
    %14 = vector.broadcast %13 : vector<16x1xf32> to vector<16x32xf32>
    %15 = arith.subf %9, %14 : vector<16x32xf32>
    %16 = arith.mulf %15, %15 : vector<16x32xf32>
    %cst_5 = arith.constant dense<0.000000e+00> : vector<16xf32>
    %17 = vector.multi_reduction <add>, %16, %cst_5 [1] : vector<16x32xf32> to vector<16xf32>
    %18 = vector.shape_cast %17 : vector<16xf32> to vector<16x1xf32>
    %cst_6 = arith.constant 3.200000e+01 : f32
    %19 = vector.broadcast %cst_6 : f32 to vector<16x1xf32>
    %20 = arith.divf %18, %19 : vector<16x1xf32>
    %21 = vector.broadcast %13 : vector<16x1xf32> to vector<16x32xf32>
    %22 = arith.subf %9, %21 : vector<16x32xf32>
    %cst_7 = arith.constant 9.99999974E-6 : f32
    %23 = vector.broadcast %cst_7 : f32 to vector<16x1xf32>
    %24 = arith.addf %20, %23 : vector<16x1xf32>
    %25 = math.rsqrt %24 : vector<16x1xf32>
    %26 = vector.broadcast %25 : vector<16x1xf32> to vector<16x32xf32>
    %27 = arith.mulf %22, %26 : vector<16x32xf32>
    %28 = vector.broadcast %1 : vector<1x32xf32> to vector<16x32xf32>
    %29 = arith.mulf %27, %28 : vector<16x32xf32>
    %30 = vector.broadcast %2 : vector<1x32xf32> to vector<16x32xf32>
    %31 = arith.addf %29, %30 : vector<16x32xf32>
    %32 = arith.truncf %31 : vector<16x32xf32> to vector<16x32xbf16>
    %33 = vector.shape_cast %32 : vector<16x32xbf16> to vector<1x16x32xbf16>
    %34 = vector.shape_cast %33 : vector<1x16x32xbf16> to vector<1x16x32xbf16>
    %35 = vector.broadcast %34 : vector<1x16x32xbf16> to vector<4x16x32xbf16>
    %c0_8 = arith.constant 0 : index
    %c0_9 = arith.constant 0 : index
    %c0_10 = arith.constant 0 : index
    %36 = vector.load %arg3[%c0_8, %c0_9, %c0_10] : memref<4x32x24xbf16, #tpu.memory_space<vmem>>, vector<4x32x24xbf16>
    "tpu.trace_start"() <{level = 10 : i32, message = "hne,hef->hnf"}> : () -> ()
    %cst_11 = arith.constant dense<0.000000e+00> : vector<4x16x24xf32>
    %37 = tpu.matmul %35, %36, %cst_11 {dimension_numbers = #tpu.dot_dimension_numbers<[2], [1], [1], [2], [0, 0, 0, 1, 1, 2], [0], [0]>} : vector<4x16x32xbf16>, vector<4x32x24xbf16>, vector<4x16x24xf32> -> vector<4x16x24xf32>
    "tpu.trace_stop"() : () -> ()
    %38 = arith.truncf %37 : vector<4x16x24xf32> to vector<4x16x24xbf16>
    %39 = vector.extract_strided_slice %38 {offsets = [0, 0, 0], sizes = [4, 16, 8], strides = [1, 1, 1]} : vector<4x16x24xbf16> to vector<4x16x8xbf16>
    %40 = vector.shape_cast %39 : vector<4x16x8xbf16> to vector<8x8x8xbf16>
    %41 = vector.extract_strided_slice %38 {offsets = [0, 0, 8], sizes = [4, 16, 8], strides = [1, 1, 1]} : vector<4x16x24xbf16> to vector<4x16x8xbf16>
    %42 = vector.shape_cast %41 : vector<4x16x8xbf16> to vector<8x8x8xbf16>
    %43 = vector.extract_strided_slice %38 {offsets = [0, 0, 16], sizes = [4, 16, 8], strides = [1, 1, 1]} : vector<4x16x24xbf16> to vector<4x16x8xbf16>
    %44 = vector.shape_cast %43 : vector<4x16x8xbf16> to vector<8x8x8xbf16>
    %c0_12 = arith.constant 0 : index
    %c0_13 = arith.constant 0 : index
    %c0_14 = arith.constant 0 : index
    %c0_15 = arith.constant 0 : index
    %45 = vector.load %arg2[%c0_12, %c0_13, %c0_14, %c0_15] : memref<4x2x8x32xbf16, #tpu.memory_space<vmem>>, vector<4x2x8x32xbf16>
    %46 = vector.shape_cast %45 : vector<4x2x8x32xbf16> to vector<4x16x32xbf16>
    %c0_16 = arith.constant 0 : index
    %c0_17 = arith.constant 0 : index
    %c0_18 = arith.constant 0 : index
    %47 = vector.load %arg4[%c0_16, %c0_17, %c0_18] : memref<4x32x16xbf16, #tpu.memory_space<vmem>>, vector<4x32x16xbf16>
    "tpu.trace_start"() <{level = 10 : i32, message = "hme,hef->hmf"}> : () -> ()
    %cst_19 = arith.constant dense<0.000000e+00> : vector<4x16x16xf32>
    %48 = tpu.matmul %46, %47, %cst_19 {dimension_numbers = #tpu.dot_dimension_numbers<[2], [1], [1], [2], [0, 0, 0, 1, 1, 2], [0], [0]>} : vector<4x16x32xbf16>, vector<4x32x16xbf16>, vector<4x16x16xf32> -> vector<4x16x16xf32>
    "tpu.trace_stop"() : () -> ()
    %49 = arith.truncf %48 : vector<4x16x16xf32> to vector<4x16x16xbf16>
    %50 = vector.extract_strided_slice %49 {offsets = [0, 0, 0], sizes = [4, 16, 8], strides = [1, 1, 1]} : vector<4x16x16xbf16> to vector<4x16x8xbf16>
    %51 = vector.shape_cast %50 : vector<4x16x8xbf16> to vector<8x8x8xbf16>
    %52 = vector.extract_strided_slice %49 {offsets = [0, 0, 8], sizes = [4, 16, 8], strides = [1, 1, 1]} : vector<4x16x16xbf16> to vector<4x16x8xbf16>
    %53 = vector.shape_cast %52 : vector<4x16x8xbf16> to vector<8x8x8xbf16>
    "tpu.trace_start"() <{level = 10 : i32, message = "gtd,gmd->gtm"}> : () -> ()
    %cst_20 = arith.constant dense<0.000000e+00> : vector<8x8x8xf32>
    %54 = tpu.matmul %40, %51, %cst_20 {dimension_numbers = #tpu.dot_dimension_numbers<[2], [2], [1], [1], [0, 0, 0, 1, 1, 1], [0], [0]>} : vector<8x8x8xbf16>, vector<8x8x8xbf16>, vector<8x8x8xf32> -> vector<8x8x8xf32>
    "tpu.trace_stop"() : () -> ()
    "tpu.trace_start"() <{level = 10 : i32, message = "gtd,gsd->gts"}> : () -> ()
    %cst_21 = arith.constant dense<0.000000e+00> : vector<8x8x8xf32>
    %55 = tpu.matmul %40, %42, %cst_21 {dimension_numbers = #tpu.dot_dimension_numbers<[2], [2], [1], [1], [0, 0, 0, 1, 1, 1], [0], [0]>} : vector<8x8x8xbf16>, vector<8x8x8xbf16>, vector<8x8x8xf32> -> vector<8x8x8xf32>
    "tpu.trace_stop"() : () -> ()
    %56 = arith.mulf %54, %54 : vector<8x8x8xf32>
    %57 = arith.mulf %55, %55 : vector<8x8x8xf32>
    %cst_22 = arith.constant dense<0xFF800000> : vector<8x8xf32>
    %58 = vector.multi_reduction <maximumf>, %56, %cst_22 [2] : vector<8x8x8xf32> to vector<8x8xf32>
    %59 = vector.shape_cast %58 : vector<8x8xf32> to vector<8x8x1xf32>
    %cst_23 = arith.constant dense<0xFF800000> : vector<8x8xf32>
    %60 = vector.multi_reduction <maximumf>, %57, %cst_23 [2] : vector<8x8x8xf32> to vector<8x8xf32>
    %61 = vector.shape_cast %60 : vector<8x8xf32> to vector<8x8x1xf32>
    %62 = arith.maximumf %59, %61 : vector<8x8x1xf32>
    %cst_24 = arith.constant 1.000000e-30 : f32
    %63 = vector.broadcast %cst_24 : f32 to vector<8x8x1xf32>
    %64 = arith.maximumf %62, %63 : vector<8x8x1xf32>
    %65 = tpu.reciprocal %64 {approx = true} : vector<8x8x1xf32> -> vector<8x8x1xf32>
    %66 = vector.broadcast %65 : vector<8x8x1xf32> to vector<8x8x8xf32>
    %67 = arith.mulf %56, %66 : vector<8x8x8xf32>
    %68 = vector.broadcast %65 : vector<8x8x1xf32> to vector<8x8x8xf32>
    %69 = arith.mulf %57, %68 : vector<8x8x8xf32>
    %cst_25 = arith.constant 0.00999999977 : f32
    %70 = vector.broadcast %cst_25 : f32 to vector<8x8x8xf32>
    %71 = arith.addf %67, %70 : vector<8x8x8xf32>
    %72 = math.log %71 : vector<8x8x8xf32>
    %73 = vector.shape_cast %72 : vector<8x8x8xf32> to vector<1x8x8x8xf32>
    %cst_26 = arith.constant dense<0.000000e+00> : vector<1xf32>
    %74 = vector.multi_reduction <add>, %73, %cst_26 [1, 2, 3] : vector<1x8x8x8xf32> to vector<1xf32>
    %75 = vector.shape_cast %74 : vector<1xf32> to vector<1x1x1x1xf32>
    %76 = vector.extract %75[0, 0, 0, 0] : f32 from vector<1x1x1x1xf32>
    %cst_27 = arith.constant 0.00999999977 : f32
    %77 = vector.broadcast %cst_27 : f32 to vector<8x8x8xf32>
    %78 = arith.addf %69, %77 : vector<8x8x8xf32>
    %79 = math.log %78 : vector<8x8x8xf32>
    %80 = vector.shape_cast %79 : vector<8x8x8xf32> to vector<1x8x8x8xf32>
    %cst_28 = arith.constant dense<0.000000e+00> : vector<1xf32>
    %81 = vector.multi_reduction <add>, %80, %cst_28 [1, 2, 3] : vector<1x8x8x8xf32> to vector<1xf32>
    %82 = vector.shape_cast %81 : vector<1xf32> to vector<1x1x1x1xf32>
    %83 = vector.extract %82[0, 0, 0, 0] : f32 from vector<1x1x1x1xf32>
    %84 = arith.addf %76, %83 : f32
    %85 = arith.truncf %67 : vector<8x8x8xf32> to vector<8x8x8xbf16>
    "tpu.trace_start"() <{level = 10 : i32, message = "gtm,gmd->gtd"}> : () -> ()
    %cst_29 = arith.constant dense<0.000000e+00> : vector<8x8x8xf32>
    %86 = tpu.matmul %85, %53, %cst_29 {dimension_numbers = #tpu.dot_dimension_numbers<[2], [1], [1], [2], [0, 0, 0, 1, 1, 2], [0], [0]>} : vector<8x8x8xbf16>, vector<8x8x8xbf16>, vector<8x8x8xf32> -> vector<8x8x8xf32>
    "tpu.trace_stop"() : () -> ()
    %87 = arith.truncf %69 : vector<8x8x8xf32> to vector<8x8x8xbf16>
    "tpu.trace_start"() <{level = 10 : i32, message = "gts,gsd->gtd"}> : () -> ()
    %cst_30 = arith.constant dense<0.000000e+00> : vector<8x8x8xf32>
    %88 = tpu.matmul %87, %44, %cst_30 {dimension_numbers = #tpu.dot_dimension_numbers<[2], [1], [1], [2], [0, 0, 0, 1, 1, 2], [0], [0]>} : vector<8x8x8xbf16>, vector<8x8x8xbf16>, vector<8x8x8xf32> -> vector<8x8x8xf32>
    "tpu.trace_stop"() : () -> ()
    %89 = arith.addf %86, %88 : vector<8x8x8xf32>
    %90 = arith.truncf %89 : vector<8x8x8xf32> to vector<8x8x8xbf16>
    %91 = vector.shape_cast %90 : vector<8x8x8xbf16> to vector<4x16x8xbf16>
    %c0_31 = arith.constant 0 : index
    %c0_32 = arith.constant 0 : index
    %c0_33 = arith.constant 0 : index
    %92 = vector.load %arg5[%c0_31, %c0_32, %c0_33] : memref<4x8x32xbf16, #tpu.memory_space<vmem>>, vector<4x8x32xbf16>
    "tpu.trace_start"() <{level = 10 : i32, message = "hnd,hde->hne"}> : () -> ()
    %cst_34 = arith.constant dense<0.000000e+00> : vector<4x16x32xf32>
    %93 = tpu.matmul %91, %92, %cst_34 {dimension_numbers = #tpu.dot_dimension_numbers<[2], [1], [1], [2], [0, 0, 0, 1, 1, 2], [0], [0]>} : vector<4x16x8xbf16>, vector<4x8x32xbf16>, vector<4x16x32xf32> -> vector<4x16x32xf32>
    "tpu.trace_stop"() : () -> ()
    %cst_35 = arith.constant dense<0.000000e+00> : vector<16x32xf32>
    %94 = vector.multi_reduction <add>, %93, %cst_35 [0] : vector<4x16x32xf32> to vector<16x32xf32>
    %95 = vector.broadcast %5 : vector<1x32xf32> to vector<16x32xf32>
    %96 = arith.addf %94, %95 : vector<16x32xf32>
    %97 = arith.addf %9, %96 : vector<16x32xf32>
    %cst_36 = arith.constant dense<0.000000e+00> : vector<16xf32>
    %98 = vector.multi_reduction <add>, %97, %cst_36 [1] : vector<16x32xf32> to vector<16xf32>
    %99 = vector.shape_cast %98 : vector<16xf32> to vector<16x1xf32>
    %cst_37 = arith.constant 3.200000e+01 : f32
    %100 = vector.broadcast %cst_37 : f32 to vector<16x1xf32>
    %101 = arith.divf %99, %100 : vector<16x1xf32>
    %102 = vector.broadcast %101 : vector<16x1xf32> to vector<16x32xf32>
    %103 = arith.subf %97, %102 : vector<16x32xf32>
    %104 = arith.mulf %103, %103 : vector<16x32xf32>
    %cst_38 = arith.constant dense<0.000000e+00> : vector<16xf32>
    %105 = vector.multi_reduction <add>, %104, %cst_38 [1] : vector<16x32xf32> to vector<16xf32>
    %106 = vector.shape_cast %105 : vector<16xf32> to vector<16x1xf32>
    %cst_39 = arith.constant 3.200000e+01 : f32
    %107 = vector.broadcast %cst_39 : f32 to vector<16x1xf32>
    %108 = arith.divf %106, %107 : vector<16x1xf32>
    %109 = vector.broadcast %101 : vector<16x1xf32> to vector<16x32xf32>
    %110 = arith.subf %97, %109 : vector<16x32xf32>
    %cst_40 = arith.constant 9.99999974E-6 : f32
    %111 = vector.broadcast %cst_40 : f32 to vector<16x1xf32>
    %112 = arith.addf %108, %111 : vector<16x1xf32>
    %113 = math.rsqrt %112 : vector<16x1xf32>
    %114 = vector.broadcast %113 : vector<16x1xf32> to vector<16x32xf32>
    %115 = arith.mulf %110, %114 : vector<16x32xf32>
    %116 = vector.broadcast %3 : vector<1x32xf32> to vector<16x32xf32>
    %117 = arith.mulf %115, %116 : vector<16x32xf32>
    %118 = vector.broadcast %4 : vector<1x32xf32> to vector<16x32xf32>
    %119 = arith.addf %117, %118 : vector<16x32xf32>
    %120 = arith.truncf %119 : vector<16x32xf32> to vector<16x32xbf16>
    %c0_41 = arith.constant 0 : index
    %c0_42 = arith.constant 0 : index
    %121 = vector.load %arg6[%c0_41, %c0_42] : memref<32x128xbf16, #tpu.memory_space<vmem>>, vector<32x128xbf16>
    %cst_43 = arith.constant dense<0.000000e+00> : vector<16x128xf32>
    %122 = tpu.matmul %120, %121, %cst_43 {dimension_numbers = #tpu.dot_dimension_numbers<[1], [0], [0], [1], [0, 0, 1, 1], [], []>} : vector<16x32xbf16>, vector<32x128xbf16>, vector<16x128xf32> -> vector<16x128xf32>
    %123 = vector.broadcast %7 : vector<1x128xf32> to vector<16x128xf32>
    %124 = arith.addf %122, %123 : vector<16x128xf32>
    %cst_44 = arith.constant 0.000000e+00 : f32
    %125 = vector.broadcast %cst_44 : f32 to vector<16x128xf32>
    %126 = arith.maximumf %124, %125 : vector<16x128xf32>
    %127 = arith.truncf %126 : vector<16x128xf32> to vector<16x128xbf16>
    %c0_45 = arith.constant 0 : index
    %c0_46 = arith.constant 0 : index
    %128 = vector.load %arg7[%c0_45, %c0_46] : memref<128x32xbf16, #tpu.memory_space<vmem>>, vector<128x32xbf16>
    %cst_47 = arith.constant dense<0.000000e+00> : vector<16x32xf32>
    %129 = tpu.matmul %127, %128, %cst_47 {dimension_numbers = #tpu.dot_dimension_numbers<[1], [0], [0], [1], [0, 0, 1, 1], [], []>} : vector<16x128xbf16>, vector<128x32xbf16>, vector<16x32xf32> -> vector<16x32xf32>
    %130 = vector.broadcast %6 : vector<1x32xf32> to vector<16x32xf32>
    %131 = arith.addf %129, %130 : vector<16x32xf32>
    %132 = arith.addf %97, %131 : vector<16x32xf32>
    %133 = vector.shape_cast %132 : vector<16x32xf32> to vector<2x8x32xf32>
    %c0_48 = arith.constant 0 : index
    %c0_49 = arith.constant 0 : index
    %c0_50 = arith.constant 0 : index
    %134 = vector.load %arg9[%c0_48, %c0_49, %c0_50] : memref<2x8x32xf32, #tpu.memory_space<vmem>>, vector<2x8x32xf32>
    tpu.vector_store %arg9[%c0_48, %c0_49, %c0_50], %133 {strides = array<i32>} : memref<2x8x32xf32, #tpu.memory_space<vmem>>, vector<2x8x32xf32>,
    %c0_51 = arith.constant 0 : index
    %c0_52 = arith.constant 0 : index
    %135 = memref.load %arg10[%c0_51, %c0_52] : memref<1x1xf32, #tpu.memory_space<smem>>
    memref.store %84, %arg10[%c0_51, %c0_52] : memref<1x1xf32, #tpu.memory_space<smem>>
    return
  }
  func.func @transform_0(%arg0: i32) -> (i32, i32, i32) {
    %c0_i32 = arith.constant 0 : i32
    %c0_i32_0 = arith.constant 0 : i32
    %c0_i32_1 = arith.constant 0 : i32
    return %arg0, %c0_i32, %c0_i32_0 : i32, i32, i32
  }
  func.func @transform_1(%arg0: i32) -> (i32, i32, i32, i32) {
    %c0_i32 = arith.constant 0 : i32
    %c0_i32_0 = arith.constant 0 : i32
    %c0_i32_1 = arith.constant 0 : i32
    %c0_i32_2 = arith.constant 0 : i32
    return %c0_i32, %arg0, %c0_i32_0, %c0_i32_1 : i32, i32, i32, i32
  }
  func.func @transform_2(%arg0: i32) -> (i32, i32, i32) {
    %c0_i32 = arith.constant 0 : i32
    %c0_i32_0 = arith.constant 0 : i32
    %c0_i32_1 = arith.constant 0 : i32
    %c0_i32_2 = arith.constant 0 : i32
    return %c0_i32, %c0_i32_0, %c0_i32_1 : i32, i32, i32
  }
  func.func @transform_3(%arg0: i32) -> (i32, i32, i32) {
    %c0_i32 = arith.constant 0 : i32
    %c0_i32_0 = arith.constant 0 : i32
    %c0_i32_1 = arith.constant 0 : i32
    %c0_i32_2 = arith.constant 0 : i32
    return %c0_i32, %c0_i32_0, %c0_i32_1 : i32, i32, i32
  }
  func.func @transform_4(%arg0: i32) -> (i32, i32, i32) {
    %c0_i32 = arith.constant 0 : i32
    %c0_i32_0 = arith.constant 0 : i32
    %c0_i32_1 = arith.constant 0 : i32
    %c0_i32_2 = arith.constant 0 : i32
    return %c0_i32, %c0_i32_0, %c0_i32_1 : i32, i32, i32
  }
  func.func @transform_5(%arg0: i32) -> (i32, i32) {
    %c0_i32 = arith.constant 0 : i32
    %c0_i32_0 = arith.constant 0 : i32
    %c0_i32_1 = arith.constant 0 : i32
    return %c0_i32, %c0_i32_0 : i32, i32
  }
  func.func @transform_6(%arg0: i32) -> (i32, i32) {
    %c0_i32 = arith.constant 0 : i32
    %c0_i32_0 = arith.constant 0 : i32
    %c0_i32_1 = arith.constant 0 : i32
    return %c0_i32, %c0_i32_0 : i32, i32
  }
  func.func @transform_7(%arg0: i32) -> (i32, i32) {
    %c0_i32 = arith.constant 0 : i32
    %c0_i32_0 = arith.constant 0 : i32
    %c0_i32_1 = arith.constant 0 : i32
    return %c0_i32, %c0_i32_0 : i32, i32
  }
  func.func @transform_8(%arg0: i32) -> (i32, i32, i32) {
    %c0_i32 = arith.constant 0 : i32
    %c0_i32_0 = arith.constant 0 : i32
    %c0_i32_1 = arith.constant 0 : i32
    return %arg0, %c0_i32, %c0_i32_0 : i32, i32, i32
  }
  func.func @transform_9(%arg0: i32) -> (i32, i32) {
    %c0_i32 = arith.constant 0 : i32
    %c0_i32_0 = arith.constant 0 : i32
    return %arg0, %c0_i32 : i32, i32
  }
}

</mosaic_0001>

<llo_original>
// kernel: tpu_custom_call.1
$region0: #{tpu_custom_call.1}
  #allocation0 [shape = 'u32[]', space=smem, size = 0x4, offset = 0x4, fixed_abs, tag = 'smem constant byte address 0x4 - core index']
  #allocation1 [shape = 'u32[144,128]{1,0:T(1,128)}', space=vmem, size = 0x12000, scoped, tag = 'internal scratch']
  %s0 = inlined_call_operand.vmem [shape: f32[2,8,32], index: 0, kind: input, shape index: {}]
  %s1 = inlined_call_operand.vmem [shape: bf16[4,2,8,32], index: 1, kind: input, shape index: {}]
  %s2 = inlined_call_operand.vmem [shape: bf16[4,32,24], index: 2, kind: input, shape index: {}]
  %s3 = inlined_call_operand.vmem [shape: bf16[4,32,16], index: 3, kind: input, shape index: {}]
  %s4 = inlined_call_operand.vmem [shape: bf16[4,8,32], index: 4, kind: input, shape index: {}]
  %s5 = inlined_call_operand.vmem [shape: bf16[32,128], index: 5, kind: input, shape index: {}]
  %s6 = inlined_call_operand.vmem [shape: bf16[128,32], index: 6, kind: input, shape index: {}]
  %s7 = inlined_call_operand.vmem [shape: f32[8,128], index: 7, kind: input, shape index: {}]
  %s8 = inlined_call_operand.hbm [shape: f32[2,8,32], index: 8, kind: output, shape index: {0}]
  %s9 = inlined_call_operand.hbm [shape: f32[1,1], index: 9, kind: output, shape index: {1}]
  %10 = xla_tuple %s8, %s9
  %s11 = sld [smem:[#allocation0]]
  $region50: #{tpu_custom_call.1} parent=0
    _
  %s13 = ssub.s32 1, %s11
  %s14 = scalar_select 0, %s13, %s11
  $region1: #{tpu_custom_call.1} parent=0
    #allocation2 [shape = 'u8[8192]{0}', space=vmem, size = 0x2000, scoped, tag = 'output window, operand 0, single buffered']
    #allocation3 [shape = 's32[1]{0}', space=sflag, size = 0x4, scoped, tag = 'scoped memory for tpu_custom_call.1']
    #allocation4 [shape = 's32[1]{0}', space=sflag, size = 0x4, scoped, tag = 'scoped memory for tpu_custom_call.1']
    #allocation5 [shape = 'u8[512]{0}', space=smem, size = 0x200, scoped, tag = 'output window, operand 1, single buffered']
    %15 = vsyncpa [#allocation3], 0
    %16 = vsyncpa [#allocation4], 0
    // Predicated region
    $region2: #{tpu_custom_call.1} parent=1 // pred_check
      _
    $region3: #{tpu_custom_call.1} parent=1 // pred_check_branch
      %18 = sbr.rel (0) target = $region5
    $region4: #{tpu_custom_call.1} parent=1 // pred_region
      _
    $region5: #{tpu_custom_call.1} parent=1 // pred_fallthru
      _
    // Predicated region
    $region6: #{tpu_custom_call.1} parent=1 // pred_check
      _
    $region7: #{tpu_custom_call.1} parent=1 // pred_check_branch
      %20 = sbr.rel (0) target = $region9
    $region8: #{tpu_custom_call.1} parent=1 // pred_region
      _
    $region9: #{tpu_custom_call.1} parent=1 // pred_fallthru
      _
    // Predicated region
    $region10: #{tpu_custom_call.1} parent=1 // pred_check
      _
    $region11: #{tpu_custom_call.1} parent=1 // pred_check_branch
      %22 = sbr.rel (0) target = $region13
    $region12: #{tpu_custom_call.1} parent=1 // pred_region
      _
    $region13: #{tpu_custom_call.1} parent=1 // pred_fallthru
      _
    // Predicated region
    $region14: #{tpu_custom_call.1} parent=1 // pred_check
      _
    $region15: #{tpu_custom_call.1} parent=1 // pred_check_branch
      %24 = sbr.rel (0) target = $region17
    $region16: #{tpu_custom_call.1} parent=1 // pred_region
      _
    $region17: #{tpu_custom_call.1} parent=1 // pred_fallthru
      _
    // Predicated region
    $region18: #{tpu_custom_call.1} parent=1 // pred_check
      _
    $region19: #{tpu_custom_call.1} parent=1 // pred_check_branch
      %26 = sbr.rel (0) target = $region21
    $region20: #{tpu_custom_call.1} parent=1 // pred_region
      _
    $region21: #{tpu_custom_call.1} parent=1 // pred_fallthru
      _
    // Predicated region
    $region22: #{tpu_custom_call.1} parent=1 // pred_check
      _
    $region23: #{tpu_custom_call.1} parent=1 // pred_check_branch
      %28 = sbr.rel (0) target = $region25
    $region24: #{tpu_custom_call.1} parent=1 // pred_region
      _
    $region25: #{tpu_custom_call.1} parent=1 // pred_fallthru
      _
    // Predicated region
    $region26: #{tpu_custom_call.1} parent=1 // pred_check
      _
    $region27: #{tpu_custom_call.1} parent=1 // pred_check_branch
      %30 = sbr.rel (0) target = $region29
    $region28: #{tpu_custom_call.1} parent=1 // pred_region
      _
    $region29: #{tpu_custom_call.1} parent=1 // pred_fallthru
      _
    // Predicated region
    $region30: #{tpu_custom_call.1} parent=1 // pred_check
      _
    $region31: #{tpu_custom_call.1} parent=1 // pred_check_branch
      %32 = sbr.rel (0) target = $region33
    $region32: #{tpu_custom_call.1} parent=1 // pred_region
      _
    $region33: #{tpu_custom_call.1} parent=1 // pred_fallthru
      _
    %v34 = vld [vmem:[%s7] sm:$0xff]
    %v35 = vld [vmem:[%s0] sm:$0xff]
    %v36 = vld [vmem:[%s0 + $0x8] sm:$0xff]
    %vm37 = vcmask 261120
    %v38 = vsel %vm37, %v35, 0.0
    %39 = vadd.xlane.f32.xlu0 %v38
    %v40 = vpop.xlane.xlu0 %39
    %v41 = vsel %vm37, %v36, 0.0
    %42 = vadd.xlane.f32.xlu0 %v41
    %v43 = vpop.xlane.xlu0 %42
    %v44 = vrcp.pop 32.0
    %v45 = vmul.f32 %v40, %v44
    %v46 = vmul.f32 %v43, %v44
    %v47 = vsub.f32 %v35, %v45
    %v48 = vsub.f32 %v36, %v46
    %v49 = vmul.f32 %v47, %v47
    %v50 = vmul.f32 %v48, %v48
    %v51 = vsel %vm37, %v49, 0.0
    %52 = vadd.xlane.f32.xlu0 %v51
    %v53 = vpop.xlane.xlu0 %52
    %v54 = vsel %vm37, %v50, 0.0
    %55 = vadd.xlane.f32.xlu0 %v54
    %v56 = vpop.xlane.xlu0 %55
    %v57 = vmul.f32 %v53, %v44
    %v58 = vmul.f32 %v56, %v44
    %v59 = vadd.f32 %v57, 1e-05
    %v60 = vadd.f32 %v58, 1e-05
    %v61 = vrsqrt.pop %v59
    %v62 = vrsqrt.pop %v60
    %v63 = vmul.f32 %v47, %v61
    %v64 = vmul.f32 %v48, %v62
    %v65 = vlaneseq
    %v66 = vshrl.u32 %v65, 7
    %v67 = vsub.s32 0, %v66
    %v68 = vrot.slane %v34, %v67
    %v69 = vmul.f32 %v63, %v68
    %v70 = vmul.f32 %v64, %v68
    %v71 = vlaneseq
    %v72 = vshrl.u32 %v71, 7
    %v73 = vsub.s32 1, %v72
    %v74 = vrot.slane %v34, %v73
    %v75 = vadd.f32 %v69, %v74
    %v76 = vadd.f32 %v70, %v74
    %v77 = vpack.c.bf16 %v76, %v75
    %v78 = vld [vmem:[%s2] sm:$0xf]
    %v79 = vld [vmem:[%s2 + $0x4] sm:$0xf]
    %v80 = vld [vmem:[%s2 + $0x8] sm:$0xf]
    %v81 = vld [vmem:[%s2 + $0xc] sm:$0xf]
    %v82 = vld [vmem:[%s2 + $0x10] sm:$0xf]
    %v83 = vld [vmem:[%s2 + $0x14] sm:$0xf]
    %v84 = vld [vmem:[%s2 + $0x18] sm:$0xf]
    %v85 = vld [vmem:[%s2 + $0x1c] sm:$0xf]
    %v86 = vld [vmem:[%s2 + $0x20] sm:$0xf]
    %v87 = vld [vmem:[%s2 + $0x24] sm:$0xf]
    %v88 = vld [vmem:[%s2 + $0x28] sm:$0xf]
    %v89 = vld [vmem:[%s2 + $0x2c] sm:$0xf]
    %v90 = vld [vmem:[%s2 + $0x30] sm:$0xf]
    %v91 = vld [vmem:[%s2 + $0x34] sm:$0xf]
    %v92 = vld [vmem:[%s2 + $0x38] sm:$0xf]
    %v93 = vld [vmem:[%s2 + $0x3c] sm:$0xf]
    %v98 = vunpack.c.l.b16 %v78
    %v99 = vunpack.c.l.b16 %v79
    %v100 = vunpack.c.l.b16 %v80
    %v101 = vunpack.c.l.b16 %v81
    %v102 = vpack.c.b16 %v99, %v98
    %v103 = vpack.c.b16 %v101, %v100
    %v107 = vsel %vm37, %v77, 0
    %109 = vmatprep.subr.bf16.mxu0 0
    %110 = vmatpush1.bf16.msra.mxu0 %v102
    %111 = vmatprep.subr.bf16.mxu0 0
    %112 = vmatpush1.bf16.msra.mxu0 %v103
    %113 = vmatprep.subr.bf16.mxu0 0
    %114 = vmatpush1.bf16.msra.mxu0 0
    %115 = vmatprep.subr.bf16.mxu0 0
    %116 = vmatpush1.bf16.msra.mxu0 0
    %117 = vmatprep.subr.bf16.mxu0 0
    %118 = vmatpush1.bf16.msra.mxu0 0
    %119 = vmatprep.subr.bf16.mxu0 0
    %120 = vmatpush1.bf16.msra.mxu0 0
    %121 = vmatprep.subr.bf16.mxu0 0
    %122 = vmatpush1.bf16.msra.mxu0 0
    %123 = vmatprep.subr.bf16.mxu0 0
    %124 = vmatpush1.bf16.msra.mxu0 0
    %125 = vmatprep.subr.bf16.mxu0 0
    %126 = vmatpush1.bf16.msra.mxu0 0
    %127 = vmatprep.subr.bf16.mxu0 0
    %128 = vmatpush1.bf16.msra.mxu0 0
    %129 = vmatprep.subr.bf16.mxu0 0
    %130 = vmatpush1.bf16.msra.mxu0 0
    %131 = vmatprep.subr.bf16.mxu0 0
    %132 = vmatpush1.bf16.msra.mxu0 0
    %133 = vmatprep.subr.bf16.mxu0 0
    %134 = vmatpush1.bf16.msra.mxu0 0
    %135 = vmatprep.subr.bf16.mxu0 0
    %136 = vmatpush1.bf16.msra.mxu0 0
    %137 = vmatprep.subr.bf16.mxu0 0
    %138 = vmatpush1.bf16.msra.mxu0 0
    %139 = vmatprep.subr.bf16.mxu0 0
    %140 = vmatpush1.bf16.msra.mxu0 0
    %141 = vmatprep.mubr.bf16.mxu0 0
    %142 = vmatmul.mubr.bf16.gmra.mrb[0].mxu0 %v107
    %v143 = vpop.f32.mrb[0].mxu0
    %v144 = vadd.f32 0.0, %v143
    %v145 = vpop.f32.mrb[0].mxu0
    %v146 = vpop.f32.mrb[0].mxu0
    %v147 = vadd.f32 0.0, %v146
    %v148 = vpop.f32.mrb[0].mxu0
    %149 = vdwg.mxu0
    %v154 = vunpack.c.l.b16 %v82
    %v155 = vunpack.c.l.b16 %v83
    %v156 = vunpack.c.l.b16 %v84
    %v157 = vunpack.c.l.b16 %v85
    %v158 = vpack.c.b16 %v155, %v154
    %v159 = vpack.c.b16 %v157, %v156
    %162 = vmatprep.subr.bf16.mxu0 0
    %163 = vmatpush1.bf16.msra.mxu0 %v158
    %164 = vmatprep.subr.bf16.mxu0 0
    %165 = vmatpush1.bf16.msra.mxu0 %v159
    %166 = vmatprep.subr.bf16.mxu0 0
    %167 = vmatpush1.bf16.msra.mxu0 0
    %168 = vmatprep.subr.bf16.mxu0 0
    %169 = vmatpush1.bf16.msra.mxu0 0
    %170 = vmatprep.subr.bf16.mxu0 0
    %171 = vmatpush1.bf16.msra.mxu0 0
    %172 = vmatprep.subr.bf16.mxu0 0
    %173 = vmatpush1.bf16.msra.mxu0 0
    %174 = vmatprep.subr.bf16.mxu0 0
    %175 = vmatpush1.bf16.msra.mxu0 0
    %176 = vmatprep.subr.bf16.mxu0 0
    %177 = vmatpush1.bf16.msra.mxu0 0
    %178 = vmatprep.subr.bf16.mxu0 0
    %179 = vmatpush1.bf16.msra.mxu0 0
    %180 = vmatprep.subr.bf16.mxu0 0
    %181 = vmatpush1.bf16.msra.mxu0 0
    %182 = vmatprep.subr.bf16.mxu0 0
    %183 = vmatpush1.bf16.msra.mxu0 0
    %184 = vmatprep.subr.bf16.mxu0 0
    %185 = vmatpush1.bf16.msra.mxu0 0
    %186 = vmatprep.subr.bf16.mxu0 0
    %187 = vmatpush1.bf16.msra.mxu0 0
    %188 = vmatprep.subr.bf16.mxu0 0
    %189 = vmatpush1.bf16.msra.mxu0 0
    %190 = vmatprep.subr.bf16.mxu0 0
    %191 = vmatpush1.bf16.msra.mxu0 0
    %192 = vmatprep.subr.bf16.mxu0 0
    %193 = vmatpush1.bf16.msra.mxu0 0
    %194 = vmatprep.mubr.bf16.mxu0 0
    %195 = vmatmul.mubr.bf16.gmra.mrb[0].mxu0 %v107
    %v196 = vpop.f32.mrb[0].mxu0
    %v197 = vadd.f32 0.0, %v196
    %v198 = vpop.f32.mrb[0].mxu0
    %v199 = vpop.f32.mrb[0].mxu0
    %v200 = vadd.f32 0.0, %v199
    %v201 = vpop.f32.mrb[0].mxu0
    %202 = vdwg.mxu0
    %v207 = vunpack.c.l.b16 %v86
    %v208 = vunpack.c.l.b16 %v87
    %v209 = vunpack.c.l.b16 %v88
    %v210 = vunpack.c.l.b16 %v89
    %v211 = vpack.c.b16 %v208, %v207
    %v212 = vpack.c.b16 %v210, %v209
    %215 = vmatprep.subr.bf16.mxu0 0
    %216 = vmatpush1.bf16.msra.mxu0 %v211
    %217 = vmatprep.subr.bf16.mxu0 0
    %218 = vmatpush1.bf16.msra.mxu0 %v212
    %219 = vmatprep.subr.bf16.mxu0 0
    %220 = vmatpush1.bf16.msra.mxu0 0
    %221 = vmatprep.subr.bf16.mxu0 0
    %222 = vmatpush1.bf16.msra.mxu0 0
    %223 = vmatprep.subr.bf16.mxu0 0
    %224 = vmatpush1.bf16.msra.mxu0 0
    %225 = vmatprep.subr.bf16.mxu0 0
    %226 = vmatpush1.bf16.msra.mxu0 0
    %227 = vmatprep.subr.bf16.mxu0 0
    %228 = vmatpush1.bf16.msra.mxu0 0
    %229 = vmatprep.subr.bf16.mxu0 0
    %230 = vmatpush1.bf16.msra.mxu0 0
    %231 = vmatprep.subr.bf16.mxu0 0
    %232 = vmatpush1.bf16.msra.mxu0 0
    %233 = vmatprep.subr.bf16.mxu0 0
    %234 = vmatpush1.bf16.msra.mxu0 0
    %235 = vmatprep.subr.bf16.mxu0 0
    %236 = vmatpush1.bf16.msra.mxu0 0
    %237 = vmatprep.subr.bf16.mxu0 0
    %238 = vmatpush1.bf16.msra.mxu0 0
    %239 = vmatprep.subr.bf16.mxu0 0
    %240 = vmatpush1.bf16.msra.mxu0 0
    %241 = vmatprep.subr.bf16.mxu0 0
    %242 = vmatpush1.bf16.msra.mxu0 0
    %243 = vmatprep.subr.bf16.mxu0 0
    %244 = vmatpush1.bf16.msra.mxu0 0
    %245 = vmatprep.subr.bf16.mxu0 0
    %246 = vmatpush1.bf16.msra.mxu0 0
    %247 = vmatprep.mubr.bf16.mxu0 0
    %248 = vmatmul.mubr.bf16.gmra.mrb[0].mxu0 %v107
    %v249 = vpop.f32.mrb[0].mxu0
    %v250 = vadd.f32 0.0, %v249
    %v251 = vpop.f32.mrb[0].mxu0
    %v252 = vpop.f32.mrb[0].mxu0
    %v253 = vadd.f32 0.0, %v252
    %v254 = vpop.f32.mrb[0].mxu0
    %255 = vdwg.mxu0
    %v260 = vunpack.c.l.b16 %v90
    %v261 = vunpack.c.l.b16 %v91
    %v262 = vunpack.c.l.b16 %v92
    %v263 = vunpack.c.l.b16 %v93
    %v264 = vpack.c.b16 %v261, %v260
    %v265 = vpack.c.b16 %v263, %v262
    %268 = vmatprep.subr.bf16.mxu0 0
    %269 = vmatpush1.bf16.msra.mxu0 %v264
    %270 = vmatprep.subr.bf16.mxu0 0
    %271 = vmatpush1.bf16.msra.mxu0 %v265
    %272 = vmatprep.subr.bf16.mxu0 0
    %273 = vmatpush1.bf16.msra.mxu0 0
    %274 = vmatprep.subr.bf16.mxu0 0
    %275 = vmatpush1.bf16.msra.mxu0 0
    %276 = vmatprep.subr.bf16.mxu0 0
    %277 = vmatpush1.bf16.msra.mxu0 0
    %278 = vmatprep.subr.bf16.mxu0 0
    %279 = vmatpush1.bf16.msra.mxu0 0
    %280 = vmatprep.subr.bf16.mxu0 0
    %281 = vmatpush1.bf16.msra.mxu0 0
    %282 = vmatprep.subr.bf16.mxu0 0
    %283 = vmatpush1.bf16.msra.mxu0 0
    %284 = vmatprep.subr.bf16.mxu0 0
    %285 = vmatpush1.bf16.msra.mxu0 0
    %286 = vmatprep.subr.bf16.mxu0 0
    %287 = vmatpush1.bf16.msra.mxu0 0
    %288 = vmatprep.subr.bf16.mxu0 0
    %289 = vmatpush1.bf16.msra.mxu0 0
    %290 = vmatprep.subr.bf16.mxu0 0
    %291 = vmatpush1.bf16.msra.mxu0 0
    %292 = vmatprep.subr.bf16.mxu0 0
    %293 = vmatpush1.bf16.msra.mxu0 0
    %294 = vmatprep.subr.bf16.mxu0 0
    %295 = vmatpush1.bf16.msra.mxu0 0
    %296 = vmatprep.subr.bf16.mxu0 0
    %297 = vmatpush1.bf16.msra.mxu0 0
    %298 = vmatprep.subr.bf16.mxu0 0
    %299 = vmatpush1.bf16.msra.mxu0 0
    %300 = vmatprep.mubr.bf16.mxu0 0
    %301 = vmatmul.mubr.bf16.gmra.mrb[0].mxu0 %v107
    %v302 = vpop.f32.mrb[0].mxu0
    %v303 = vadd.f32 0.0, %v302
    %v304 = vpop.f32.mrb[0].mxu0
    %v305 = vpop.f32.mrb[0].mxu0
    %v306 = vadd.f32 0.0, %v305
    %v307 = vpop.f32.mrb[0].mxu0
    %308 = vdwg.mxu0
    %v309 = vpack.c.bf16 %v147, %v144
    %v310 = vpack.c.bf16 %v200, %v197
    %v311 = vpack.c.bf16 %v253, %v250
    %v312 = vpack.c.bf16 %v306, %v303
    %v317 = vunpack.c.l.b16 %v309
    %v318 = vunpack.c.h.b16 %v309
    %v319 = vunpack.c.l.b16 %v310
    %v320 = vunpack.c.h.b16 %v310
    %v321 = vunpack.c.l.b16 %v311
    %v322 = vunpack.c.h.b16 %v311
    %v323 = vunpack.c.l.b16 %v312
    %v324 = vunpack.c.h.b16 %v312
    %v325 = vpack.c.b16 %v317, %v317
    %v326 = vpack.c.b16 %v318, %v318
    %v327 = vpack.c.b16 %v319, %v319
    %v328 = vpack.c.b16 %v320, %v320
    %v329 = vpack.c.b16 %v321, %v321
    %v330 = vpack.c.b16 %v322, %v322
    %v331 = vpack.c.b16 %v323, %v323
    %v332 = vpack.c.b16 %v324, %v324
    %v333 = vld [vmem:[%s1] sm:$0xf]
    %v334 = vld [vmem:[%s1 + $0x4] sm:$0xf]
    %v335 = vld [vmem:[%s1 + $0x8] sm:$0xf]
    %v336 = vld [vmem:[%s1 + $0xc] sm:$0xf]
    %v337 = vld [vmem:[%s1 + $0x10] sm:$0xf]
    %v338 = vld [vmem:[%s1 + $0x14] sm:$0xf]
    %v339 = vld [vmem:[%s1 + $0x18] sm:$0xf]
    %v340 = vld [vmem:[%s1 + $0x1c] sm:$0xf]
    %v341 = vld [vmem:[%s3] sm:$0xf]
    %v342 = vld [vmem:[%s3 + $0x4] sm:$0xf]
    %v343 = vld [vmem:[%s3 + $0x8] sm:$0xf]
    %v344 = vld [vmem:[%s3 + $0xc] sm:$0xf]
    %v345 = vld [vmem:[%s3 + $0x10] sm:$0xf]
    %v346 = vld [vmem:[%s3 + $0x14] sm:$0xf]
    %v347 = vld [vmem:[%s3 + $0x18] sm:$0xf]
    %v348 = vld [vmem:[%s3 + $0x1c] sm:$0xf]
    %v349 = vld [vmem:[%s3 + $0x20] sm:$0xf]
    %v350 = vld [vmem:[%s3 + $0x24] sm:$0xf]
    %v351 = vld [vmem:[%s3 + $0x28] sm:$0xf]
    %v352 = vld [vmem:[%s3 + $0x2c] sm:$0xf]
    %v353 = vld [vmem:[%s3 + $0x30] sm:$0xf]
    %v354 = vld [vmem:[%s3 + $0x34] sm:$0xf]
    %v355 = vld [vmem:[%s3 + $0x38] sm:$0xf]
    %v356 = vld [vmem:[%s3 + $0x3c] sm:$0xf]
    %v359 = vunpack.c.l.b16 %v333
    %v360 = vunpack.c.l.b16 %v334
    %v361 = vpack.c.b16 %v360, %v359
    %v366 = vunpack.c.l.b16 %v341
    %v367 = vunpack.c.l.b16 %v342
    %v368 = vunpack.c.l.b16 %v343
    %v369 = vunpack.c.l.b16 %v344
    %v370 = vpack.c.b16 %v367, %v366
    %v371 = vpack.c.b16 %v369, %v368
    %v375 = vsel %vm37, %v361, 0
    %377 = vmatprep.subr.bf16.mxu0 0
    %378 = vmatpush1.bf16.msra.mxu0 %v370
    %379 = vmatprep.subr.bf16.mxu0 0
    %380 = vmatpush1.bf16.msra.mxu0 %v371
    %381 = vmatprep.subr.bf16.mxu0 0
    %382 = vmatpush1.bf16.msra.mxu0 0
    %383 = vmatprep.subr.bf16.mxu0 0
    %384 = vmatpush1.bf16.msra.mxu0 0
    %385 = vmatprep.subr.bf16.mxu0 0
    %386 = vmatpush1.bf16.msra.mxu0 0
    %387 = vmatprep.subr.bf16.mxu0 0
    %388 = vmatpush1.bf16.msra.mxu0 0
    %389 = vmatprep.subr.bf16.mxu0 0
    %390 = vmatpush1.bf16.msra.mxu0 0
    %391 = vmatprep.subr.bf16.mxu0 0
    %392 = vmatpush1.bf16.msra.mxu0 0
    %393 = vmatprep.subr.bf16.mxu0 0
    %394 = vmatpush1.bf16.msra.mxu0 0
    %395 = vmatprep.subr.bf16.mxu0 0
    %396 = vmatpush1.bf16.msra.mxu0 0
    %397 = vmatprep.subr.bf16.mxu0 0
    %398 = vmatpush1.bf16.msra.mxu0 0
    %399 = vmatprep.subr.bf16.mxu0 0
    %400 = vmatpush1.bf16.msra.mxu0 0
    %401 = vmatprep.subr.bf16.mxu0 0
    %402 = vmatpush1.bf16.msra.mxu0 0
    %403 = vmatprep.subr.bf16.mxu0 0
    %404 = vmatpush1.bf16.msra.mxu0 0
    %405 = vmatprep.subr.bf16.mxu0 0
    %406 = vmatpush1.bf16.msra.mxu0 0
    %407 = vmatprep.subr.bf16.mxu0 0
    %408 = vmatpush1.bf16.msra.mxu0 0
    %409 = vmatprep.mubr.bf16.mxu0 0
    %410 = vmatmul.mubr.bf16.gmra.mrb[0].mxu0 %v375
    %v411 = vpop.f32.mrb[0].mxu0
    %v412 = vadd.f32 0.0, %v411
    %v413 = vpop.f32.mrb[0].mxu0
    %v414 = vpop.f32.mrb[0].mxu0
    %v415 = vadd.f32 0.0, %v414
    %v416 = vpop.f32.mrb[0].mxu0
    %417 = vdwg.mxu0
    %v420 = vunpack.c.l.b16 %v335
    %v421 = vunpack.c.l.b16 %v336
    %v422 = vpack.c.b16 %v421, %v420
    %v427 = vunpack.c.l.b16 %v345
    %v428 = vunpack.c.l.b16 %v346
    %v429 = vunpack.c.l.b16 %v347
    %v430 = vunpack.c.l.b16 %v348
    %v431 = vpack.c.b16 %v428, %v427
    %v432 = vpack.c.b16 %v430, %v429
    %v436 = vsel %vm37, %v422, 0
    %438 = vmatprep.subr.bf16.mxu0 0
    %439 = vmatpush1.bf16.msra.mxu0 %v431
    %440 = vmatprep.subr.bf16.mxu0 0
    %441 = vmatpush1.bf16.msra.mxu0 %v432
    %442 = vmatprep.subr.bf16.mxu0 0
    %443 = vmatpush1.bf16.msra.mxu0 0
    %444 = vmatprep.subr.bf16.mxu0 0
    %445 = vmatpush1.bf16.msra.mxu0 0
    %446 = vmatprep.subr.bf16.mxu0 0
    %447 = vmatpush1.bf16.msra.mxu0 0
    %448 = vmatprep.subr.bf16.mxu0 0
    %449 = vmatpush1.bf16.msra.mxu0 0
    %450 = vmatprep.subr.bf16.mxu0 0
    %451 = vmatpush1.bf16.msra.mxu0 0
    %452 = vmatprep.subr.bf16.mxu0 0
    %453 = vmatpush1.bf16.msra.mxu0 0
    %454 = vmatprep.subr.bf16.mxu0 0
    %455 = vmatpush1.bf16.msra.mxu0 0
    %456 = vmatprep.subr.bf16.mxu0 0
    %457 = vmatpush1.bf16.msra.mxu0 0
    %458 = vmatprep.subr.bf16.mxu0 0
    %459 = vmatpush1.bf16.msra.mxu0 0
    %460 = vmatprep.subr.bf16.mxu0 0
    %461 = vmatpush1.bf16.msra.mxu0 0
    %462 = vmatprep.subr.bf16.mxu0 0
    %463 = vmatpush1.bf16.msra.mxu0 0
    %464 = vmatprep.subr.bf16.mxu0 0
    %465 = vmatpush1.bf16.msra.mxu0 0
    %466 = vmatprep.subr.bf16.mxu0 0
    %467 = vmatpush1.bf16.msra.mxu0 0
    %468 = vmatprep.subr.bf16.mxu0 0
    %469 = vmatpush1.bf16.msra.mxu0 0
    %470 = vmatprep.mubr.bf16.mxu0 0
    %471 = vmatmul.mubr.bf16.gmra.mrb[0].mxu0 %v436
    %v472 = vpop.f32.mrb[0].mxu0
    %v473 = vadd.f32 0.0, %v472
    %v474 = vpop.f32.mrb[0].mxu0
    %v475 = vpop.f32.mrb[0].mxu0
    %v476 = vadd.f32 0.0, %v475
    %v477 = vpop.f32.mrb[0].mxu0
    %478 = vdwg.mxu0
    %v481 = vunpack.c.l.b16 %v337
    %v482 = vunpack.c.l.b16 %v338
    %v483 = vpack.c.b16 %v482, %v481
    %v488 = vunpack.c.l.b16 %v349
    %v489 = vunpack.c.l.b16 %v350
    %v490 = vunpack.c.l.b16 %v351
    %v491 = vunpack.c.l.b16 %v352
    %v492 = vpack.c.b16 %v489, %v488
    %v493 = vpack.c.b16 %v491, %v490
    %v497 = vsel %vm37, %v483, 0
    %499 = vmatprep.subr.bf16.mxu0 0
    %500 = vmatpush1.bf16.msra.mxu0 %v492
    %501 = vmatprep.subr.bf16.mxu0 0
    %502 = vmatpush1.bf16.msra.mxu0 %v493
    %503 = vmatprep.subr.bf16.mxu0 0
    %504 = vmatpush1.bf16.msra.mxu0 0
    %505 = vmatprep.subr.bf16.mxu0 0
    %506 = vmatpush1.bf16.msra.mxu0 0
    %507 = vmatprep.subr.bf16.mxu0 0
    %508 = vmatpush1.bf16.msra.mxu0 0
    %509 = vmatprep.subr.bf16.mxu0 0
    %510 = vmatpush1.bf16.msra.mxu0 0
    %511 = vmatprep.subr.bf16.mxu0 0
    %512 = vmatpush1.bf16.msra.mxu0 0
    %513 = vmatprep.subr.bf16.mxu0 0
    %514 = vmatpush1.bf16.msra.mxu0 0
    %515 = vmatprep.subr.bf16.mxu0 0
    %516 = vmatpush1.bf16.msra.mxu0 0
    %517 = vmatprep.subr.bf16.mxu0 0
    %518 = vmatpush1.bf16.msra.mxu0 0
    %519 = vmatprep.subr.bf16.mxu0 0
    %520 = vmatpush1.bf16.msra.mxu0 0
    %521 = vmatprep.subr.bf16.mxu0 0
    %522 = vmatpush1.bf16.msra.mxu0 0
    %523 = vmatprep.subr.bf16.mxu0 0
    %524 = vmatpush1.bf16.msra.mxu0 0
    %525 = vmatprep.subr.bf16.mxu0 0
    %526 = vmatpush1.bf16.msra.mxu0 0
    %527 = vmatprep.subr.bf16.mxu0 0
    %528 = vmatpush1.bf16.msra.mxu0 0
    %529 = vmatprep.subr.bf16.mxu0 0
    %530 = vmatpush1.bf16.msra.mxu0 0
    %531 = vmatprep.mubr.bf16.mxu0 0
    %532 = vmatmul.mubr.bf16.gmra.mrb[0].mxu0 %v497
    %v533 = vpop.f32.mrb[0].mxu0
    %v534 = vadd.f32 0.0, %v533
    %v535 = vpop.f32.mrb[0].mxu0
    %v536 = vpop.f32.mrb[0].mxu0
    %v537 = vadd.f32 0.0, %v536
    %v538 = vpop.f32.mrb[0].mxu0
    %539 = vdwg.mxu0
    %v542 = vunpack.c.l.b16 %v339
    %v543 = vunpack.c.l.b16 %v340
    %v544 = vpack.c.b16 %v543, %v542
    %v549 = vunpack.c.l.b16 %v353
    %v550 = vunpack.c.l.b16 %v354
    %v551 = vunpack.c.l.b16 %v355
    %v552 = vunpack.c.l.b16 %v356
    %v553 = vpack.c.b16 %v550, %v549
    %v554 = vpack.c.b16 %v552, %v551
    %v558 = vsel %vm37, %v544, 0
    %560 = vmatprep.subr.bf16.mxu0 0
    %561 = vmatpush1.bf16.msra.mxu0 %v553
    %562 = vmatprep.subr.bf16.mxu0 0
    %563 = vmatpush1.bf16.msra.mxu0 %v554
    %564 = vmatprep.subr.bf16.mxu0 0
    %565 = vmatpush1.bf16.msra.mxu0 0
    %566 = vmatprep.subr.bf16.mxu0 0
    %567 = vmatpush1.bf16.msra.mxu0 0
    %568 = vmatprep.subr.bf16.mxu0 0
    %569 = vmatpush1.bf16.msra.mxu0 0
    %570 = vmatprep.subr.bf16.mxu0 0
    %571 = vmatpush1.bf16.msra.mxu0 0
    %572 = vmatprep.subr.bf16.mxu0 0
    %573 = vmatpush1.bf16.msra.mxu0 0
    %574 = vmatprep.subr.bf16.mxu0 0
    %575 = vmatpush1.bf16.msra.mxu0 0
    %576 = vmatprep.subr.bf16.mxu0 0
    %577 = vmatpush1.bf16.msra.mxu0 0
    %578 = vmatprep.subr.bf16.mxu0 0
    %579 = vmatpush1.bf16.msra.mxu0 0
    %580 = vmatprep.subr.bf16.mxu0 0
    %581 = vmatpush1.bf16.msra.mxu0 0
    %582 = vmatprep.subr.bf16.mxu0 0
    %583 = vmatpush1.bf16.msra.mxu0 0
    %584 = vmatprep.subr.bf16.mxu0 0
    %585 = vmatpush1.bf16.msra.mxu0 0
    %586 = vmatprep.subr.bf16.mxu0 0
    %587 = vmatpush1.bf16.msra.mxu0 0
    %588 = vmatprep.subr.bf16.mxu0 0
    %589 = vmatpush1.bf16.msra.mxu0 0
    %590 = vmatprep.subr.bf16.mxu0 0
    %591 = vmatpush1.bf16.msra.mxu0 0
    %592 = vmatprep.mubr.bf16.mxu0 0
    %593 = vmatmul.mubr.bf16.gmra.mrb[0].mxu0 %v558
    %v594 = vpop.f32.mrb[0].mxu0
    %v595 = vadd.f32 0.0, %v594
    %v596 = vpop.f32.mrb[0].mxu0
    %v597 = vpop.f32.mrb[0].mxu0
    %v598 = vadd.f32 0.0, %v597
    %v599 = vpop.f32.mrb[0].mxu0
    %600 = vdwg.mxu0
    %v601 = vpack.c.bf16 %v415, %v412
    %v602 = vpack.c.bf16 %v476, %v473
    %v603 = vpack.c.bf16 %v537, %v534
    %v604 = vpack.c.bf16 %v598, %v595
    %v609 = vunpack.c.l.b16 %v601
    %v610 = vunpack.c.h.b16 %v601
    %v611 = vunpack.c.l.b16 %v602
    %v612 = vunpack.c.h.b16 %v602
    %v613 = vunpack.c.l.b16 %v603
    %v614 = vunpack.c.h.b16 %v603
    %v615 = vunpack.c.l.b16 %v604
    %v616 = vunpack.c.h.b16 %v604
    %v617 = vpack.c.b16 %v609, %v609
    %v618 = vpack.c.b16 %v610, %v610
    %v619 = vpack.c.b16 %v611, %v611
    %v620 = vpack.c.b16 %v612, %v612
    %v621 = vpack.c.b16 %v613, %v613
    %v622 = vpack.c.b16 %v614, %v614
    %v623 = vpack.c.b16 %v615, %v615
    %v624 = vpack.c.b16 %v616, %v616
    %vm625 = vcmask 64512
    %v627 = vsel %vm625, %v325, 0
    %v630 = vsel %vm625, %v617, 0
    %632 = vmatprep.subr.bf16.mxu0 0
    %633 = vmatpush1.bf16.xpose.msra.mxu0 %v630
    %634 = vmatprep.subr.bf16.mxu0 0
    %635 = vmatpush1.bf16.xpose.msra.mxu0 0
    %636 = vmatprep.subr.bf16.mxu0 0
    %637 = vmatpush1.bf16.xpose.msra.mxu0 0
    %638 = vmatprep.subr.bf16.mxu0 0
    %639 = vmatpush1.bf16.xpose.msra.mxu0 0
    %640 = vmatprep.subr.bf16.mxu0 0
    %641 = vmatpush1.bf16.xpose.msra.mxu0 0
    %642 = vmatprep.subr.bf16.mxu0 0
    %643 = vmatpush1.bf16.xpose.msra.mxu0 0
    %644 = vmatprep.subr.bf16.mxu0 0
    %645 = vmatpush1.bf16.xpose.msra.mxu0 0
    %646 = vmatprep.subr.bf16.mxu0 0
    %647 = vmatpush1.bf16.xpose.msra.mxu0 0
    %648 = vmatprep.subr.bf16.mxu0 0
    %649 = vmatpush1.bf16.xpose.msra.mxu0 0
    %650 = vmatprep.subr.bf16.mxu0 0
    %651 = vmatpush1.bf16.xpose.msra.mxu0 0
    %652 = vmatprep.subr.bf16.mxu0 0
    %653 = vmatpush1.bf16.xpose.msra.mxu0 0
    %654 = vmatprep.subr.bf16.mxu0 0
    %655 = vmatpush1.bf16.xpose.msra.mxu0 0
    %656 = vmatprep.subr.bf16.mxu0 0
    %657 = vmatpush1.bf16.xpose.msra.mxu0 0
    %658 = vmatprep.subr.bf16.mxu0 0
    %659 = vmatpush1.bf16.xpose.msra.mxu0 0
    %660 = vmatprep.subr.bf16.mxu0 0
    %661 = vmatpush1.bf16.xpose.msra.mxu0 0
    %662 = vmatprep.subr.bf16.mxu0 0
    %663 = vmatpush1.bf16.xpose.msra.mxu0 0
    %664 = vmatprep.mubr.bf16.mxu0 0
    %665 = vmatmul.mubr.bf16.gmra.mrb[0].mxu0 %v627
    %v666 = vpop.f32.mrb[0].mxu0
    %v667 = vadd.f32 0.0, %v666
    %v668 = vpop.f32.mrb[0].mxu0
    %v669 = vpop.f32.mrb[0].mxu0
    %v670 = vpop.f32.mrb[0].mxu0
    %671 = vdwg.mxu0
    %v673 = vsel %vm625, %v326, 0
    %v676 = vsel %vm625, %v618, 0
    %678 = vmatprep.subr.bf16.mxu0 0
    %679 = vmatpush1.bf16.xpose.msra.mxu0 %v676
    %680 = vmatprep.subr.bf16.mxu0 0
    %681 = vmatpush1.bf16.xpose.msra.mxu0 0
    %682 = vmatprep.subr.bf16.mxu0 0
    %683 = vmatpush1.bf16.xpose.msra.mxu0 0
    %684 = vmatprep.subr.bf16.mxu0 0
    %685 = vmatpush1.bf16.xpose.msra.mxu0 0
    %686 = vmatprep.subr.bf16.mxu0 0
    %687 = vmatpush1.bf16.xpose.msra.mxu0 0
    %688 = vmatprep.subr.bf16.mxu0 0
    %689 = vmatpush1.bf16.xpose.msra.mxu0 0
    %690 = vmatprep.subr.bf16.mxu0 0
    %691 = vmatpush1.bf16.xpose.msra.mxu0 0
    %692 = vmatprep.subr.bf16.mxu0 0
    %693 = vmatpush1.bf16.xpose.msra.mxu0 0
    %694 = vmatprep.subr.bf16.mxu0 0
    %695 = vmatpush1.bf16.xpose.msra.mxu0 0
    %696 = vmatprep.subr.bf16.mxu0 0
    %697 = vmatpush1.bf16.xpose.msra.mxu0 0
    %698 = vmatprep.subr.bf16.mxu0 0
    %699 = vmatpush1.bf16.xpose.msra.mxu0 0
    %700 = vmatprep.subr.bf16.mxu0 0
    %701 = vmatpush1.bf16.xpose.msra.mxu0 0
    %702 = vmatprep.subr.bf16.mxu0 0
    %703 = vmatpush1.bf16.xpose.msra.mxu0 0
    %704 = vmatprep.subr.bf16.mxu0 0
    %705 = vmatpush1.bf16.xpose.msra.mxu0 0
    %706 = vmatprep.subr.bf16.mxu0 0
    %707 = vmatpush1.bf16.xpose.msra.mxu0 0
    %708 = vmatprep.subr.bf16.mxu0 0
    %709 = vmatpush1.bf16.xpose.msra.mxu0 0
    %710 = vmatprep.mubr.bf16.mxu0 0
    %711 = vmatmul.mubr.bf16.gmra.mrb[0].mxu0 %v673
    %v712 = vpop.f32.mrb[0].mxu0
    %v713 = vadd.f32 0.0, %v712
    %v714 = vpop.f32.mrb[0].mxu0
    %v715 = vpop.f32.mrb[0].mxu0
    %v716 = vpop.f32.mrb[0].mxu0
    %717 = vdwg.mxu0
    %v719 = vsel %vm625, %v327, 0
    %v722 = vsel %vm625, %v619, 0
    %724 = vmatprep.subr.bf16.mxu0 0
    %725 = vmatpush1.bf16.xpose.msra.mxu0 %v722
    %726 = vmatprep.subr.bf16.mxu0 0
    %727 = vmatpush1.bf16.xpose.msra.mxu0 0
    %728 = vmatprep.subr.bf16.mxu0 0
    %729 = vmatpush1.bf16.xpose.msra.mxu0 0
    %730 = vmatprep.subr.bf16.mxu0 0
    %731 = vmatpush1.bf16.xpose.msra.mxu0 0
    %732 = vmatprep.subr.bf16.mxu0 0
    %733 = vmatpush1.bf16.xpose.msra.mxu0 0
    %734 = vmatprep.subr.bf16.mxu0 0
    %735 = vmatpush1.bf16.xpose.msra.mxu0 0
    %736 = vmatprep.subr.bf16.mxu0 0
    %737 = vmatpush1.bf16.xpose.msra.mxu0 0
    %738 = vmatprep.subr.bf16.mxu0 0
    %739 = vmatpush1.bf16.xpose.msra.mxu0 0
    %740 = vmatprep.subr.bf16.mxu0 0
    %741 = vmatpush1.bf16.xpose.msra.mxu0 0
    %742 = vmatprep.subr.bf16.mxu0 0
    %743 = vmatpush1.bf16.xpose.msra.mxu0 0
    %744 = vmatprep.subr.bf16.mxu0 0
    %745 = vmatpush1.bf16.xpose.msra.mxu0 0
    %746 = vmatprep.subr.bf16.mxu0 0
    %747 = vmatpush1.bf16.xpose.msra.mxu0 0
    %748 = vmatprep.subr.bf16.mxu0 0
    %749 = vmatpush1.bf16.xpose.msra.mxu0 0
    %750 = vmatprep.subr.bf16.mxu0 0
    %751 = vmatpush1.bf16.xpose.msra.mxu0 0
    %752 = vmatprep.subr.bf16.mxu0 0
    %753 = vmatpush1.bf16.xpose.msra.mxu0 0
    %754 = vmatprep.subr.bf16.mxu0 0
    %755 = vmatpush1.bf16.xpose.msra.mxu0 0
    %756 = vmatprep.mubr.bf16.mxu0 0
    %757 = vmatmul.mubr.bf16.gmra.mrb[0].mxu0 %v719
    %v758 = vpop.f32.mrb[0].mxu0
    %v759 = vadd.f32 0.0, %v758
    %v760 = vpop.f32.mrb[0].mxu0
    %v761 = vpop.f32.mrb[0].mxu0
    %v762 = vpop.f32.mrb[0].mxu0
    %763 = vdwg.mxu0
    %v765 = vsel %vm625, %v328, 0
    %v768 = vsel %vm625, %v620, 0
    %770 = vmatprep.subr.bf16.mxu0 0
    %771 = vmatpush1.bf16.xpose.msra.mxu0 %v768
    %772 = vmatprep.subr.bf16.mxu0 0
    %773 = vmatpush1.bf16.xpose.msra.mxu0 0
    %774 = vmatprep.subr.bf16.mxu0 0
    %775 = vmatpush1.bf16.xpose.msra.mxu0 0
    %776 = vmatprep.subr.bf16.mxu0 0
    %777 = vmatpush1.bf16.xpose.msra.mxu0 0
    %778 = vmatprep.subr.bf16.mxu0 0
    %779 = vmatpush1.bf16.xpose.msra.mxu0 0
    %780 = vmatprep.subr.bf16.mxu0 0
    %781 = vmatpush1.bf16.xpose.msra.mxu0 0
    %782 = vmatprep.subr.bf16.mxu0 0
    %783 = vmatpush1.bf16.xpose.msra.mxu0 0
    %784 = vmatprep.subr.bf16.mxu0 0
    %785 = vmatpush1.bf16.xpose.msra.mxu0 0
    %786 = vmatprep.subr.bf16.mxu0 0
    %787 = vmatpush1.bf16.xpose.msra.mxu0 0
    %788 = vmatprep.subr.bf16.mxu0 0
    %789 = vmatpush1.bf16.xpose.msra.mxu0 0
    %790 = vmatprep.subr.bf16.mxu0 0
    %791 = vmatpush1.bf16.xpose.msra.mxu0 0
    %792 = vmatprep.subr.bf16.mxu0 0
    %793 = vmatpush1.bf16.xpose.msra.mxu0 0
    %794 = vmatprep.subr.bf16.mxu0 0
    %795 = vmatpush1.bf16.xpose.msra.mxu0 0
    %796 = vmatprep.subr.bf16.mxu0 0
    %797 = vmatpush1.bf16.xpose.msra.mxu0 0
    %798 = vmatprep.subr.bf16.mxu0 0
    %799 = vmatpush1.bf16.xpose.msra.mxu0 0
    %800 = vmatprep.subr.bf16.mxu0 0
    %801 = vmatpush1.bf16.xpose.msra.mxu0 0
    %802 = vmatprep.mubr.bf16.mxu0 0
    %803 = vmatmul.mubr.bf16.gmra.mrb[0].mxu0 %v765
    %v804 = vpop.f32.mrb[0].mxu0
    %v805 = vadd.f32 0.0, %v804
    %v806 = vpop.f32.mrb[0].mxu0
    %v807 = vpop.f32.mrb[0].mxu0
    %v808 = vpop.f32.mrb[0].mxu0
    %809 = vdwg.mxu0
    %v811 = vsel %vm625, %v329, 0
    %v814 = vsel %vm625, %v621, 0
    %816 = vmatprep.subr.bf16.mxu0 0
    %817 = vmatpush1.bf16.xpose.msra.mxu0 %v814
    %818 = vmatprep.subr.bf16.mxu0 0
    %819 = vmatpush1.bf16.xpose.msra.mxu0 0
    %820 = vmatprep.subr.bf16.mxu0 0
    %821 = vmatpush1.bf16.xpose.msra.mxu0 0
    %822 = vmatprep.subr.bf16.mxu0 0
    %823 = vmatpush1.bf16.xpose.msra.mxu0 0
    %824 = vmatprep.subr.bf16.mxu0 0
    %825 = vmatpush1.bf16.xpose.msra.mxu0 0
    %826 = vmatprep.subr.bf16.mxu0 0
    %827 = vmatpush1.bf16.xpose.msra.mxu0 0
    %828 = vmatprep.subr.bf16.mxu0 0
    %829 = vmatpush1.bf16.xpose.msra.mxu0 0
    %830 = vmatprep.subr.bf16.mxu0 0
    %831 = vmatpush1.bf16.xpose.msra.mxu0 0
    %832 = vmatprep.subr.bf16.mxu0 0
    %833 = vmatpush1.bf16.xpose.msra.mxu0 0
    %834 = vmatprep.subr.bf16.mxu0 0
    %835 = vmatpush1.bf16.xpose.msra.mxu0 0
    %836 = vmatprep.subr.bf16.mxu0 0
    %837 = vmatpush1.bf16.xpose.msra.mxu0 0
    %838 = vmatprep.subr.bf16.mxu0 0
    %839 = vmatpush1.bf16.xpose.msra.mxu0 0
    %840 = vmatprep.subr.bf16.mxu0 0
    %841 = vmatpush1.bf16.xpose.msra.mxu0 0
    %842 = vmatprep.subr.bf16.mxu0 0
    %843 = vmatpush1.bf16.xpose.msra.mxu0 0
    %844 = vmatprep.subr.bf16.mxu0 0
    %845 = vmatpush1.bf16.xpose.msra.mxu0 0
    %846 = vmatprep.subr.bf16.mxu0 0
    %847 = vmatpush1.bf16.xpose.msra.mxu0 0
    %848 = vmatprep.mubr.bf16.mxu0 0
    %849 = vmatmul.mubr.bf16.gmra.mrb[0].mxu0 %v811
    %v850 = vpop.f32.mrb[0].mxu0
    %v851 = vadd.f32 0.0, %v850
    %v852 = vpop.f32.mrb[0].mxu0
    %v853 = vpop.f32.mrb[0].mxu0
    %v854 = vpop.f32.mrb[0].mxu0
    %855 = vdwg.mxu0
    %v857 = vsel %vm625, %v330, 0
    %v860 = vsel %vm625, %v622, 0
    %862 = vmatprep.subr.bf16.mxu0 0
    %863 = vmatpush1.bf16.xpose.msra.mxu0 %v860
    %864 = vmatprep.subr.bf16.mxu0 0
    %865 = vmatpush1.bf16.xpose.msra.mxu0 0
    %866 = vmatprep.subr.bf16.mxu0 0
    %867 = vmatpush1.bf16.xpose.msra.mxu0 0
    %868 = vmatprep.subr.bf16.mxu0 0
    %869 = vmatpush1.bf16.xpose.msra.mxu0 0
    %870 = vmatprep.subr.bf16.mxu0 0
    %871 = vmatpush1.bf16.xpose.msra.mxu0 0
    %872 = vmatprep.subr.bf16.mxu0 0
    %873 = vmatpush1.bf16.xpose.msra.mxu0 0
    %874 = vmatprep.subr.bf16.mxu0 0
    %875 = vmatpush1.bf16.xpose.msra.mxu0 0
    %876 = vmatprep.subr.bf16.mxu0 0
    %877 = vmatpush1.bf16.xpose.msra.mxu0 0
    %878 = vmatprep.subr.bf16.mxu0 0
    %879 = vmatpush1.bf16.xpose.msra.mxu0 0
    %880 = vmatprep.subr.bf16.mxu0 0
    %881 = vmatpush1.bf16.xpose.msra.mxu0 0
    %882 = vmatprep.subr.bf16.mxu0 0
    %883 = vmatpush1.bf16.xpose.msra.mxu0 0
    %884 = vmatprep.subr.bf16.mxu0 0
    %885 = vmatpush1.bf16.xpose.msra.mxu0 0
    %886 = vmatprep.subr.bf16.mxu0 0
    %887 = vmatpush1.bf16.xpose.msra.mxu0 0
    %888 = vmatprep.subr.bf16.mxu0 0
    %889 = vmatpush1.bf16.xpose.msra.mxu0 0
    %890 = vmatprep.subr.bf16.mxu0 0
    %891 = vmatpush1.bf16.xpose.msra.mxu0 0
    %892 = vmatprep.subr.bf16.mxu0 0
    %893 = vmatpush1.bf16.xpose.msra.mxu0 0
    %894 = vmatprep.mubr.bf16.mxu0 0
    %895 = vmatmul.mubr.bf16.gmra.mrb[0].mxu0 %v857
    %v896 = vpop.f32.mrb[0].mxu0
    %v897 = vadd.f32 0.0, %v896
    %v898 = vpop.f32.mrb[0].mxu0
    %v899 = vpop.f32.mrb[0].mxu0
    %v900 = vpop.f32.mrb[0].mxu0
    %901 = vdwg.mxu0
    %v903 = vsel %vm625, %v331, 0
    %v906 = vsel %vm625, %v623, 0
    %908 = vmatprep.subr.bf16.mxu0 0
    %909 = vmatpush1.bf16.xpose.msra.mxu0 %v906
    %910 = vmatprep.subr.bf16.mxu0 0
    %911 = vmatpush1.bf16.xpose.msra.mxu0 0
    %912 = vmatprep.subr.bf16.mxu0 0
    %913 = vmatpush1.bf16.xpose.msra.mxu0 0
    %914 = vmatprep.subr.bf16.mxu0 0
    %915 = vmatpush1.bf16.xpose.msra.mxu0 0
    %916 = vmatprep.subr.bf16.mxu0 0
    %917 = vmatpush1.bf16.xpose.msra.mxu0 0
    %918 = vmatprep.subr.bf16.mxu0 0
    %919 = vmatpush1.bf16.xpose.msra.mxu0 0
    %920 = vmatprep.subr.bf16.mxu0 0
    %921 = vmatpush1.bf16.xpose.msra.mxu0 0
    %922 = vmatprep.subr.bf16.mxu0 0
    %923 = vmatpush1.bf16.xpose.msra.mxu0 0
    %924 = vmatprep.subr.bf16.mxu0 0
    %925 = vmatpush1.bf16.xpose.msra.mxu0 0
    %926 = vmatprep.subr.bf16.mxu0 0
    %927 = vmatpush1.bf16.xpose.msra.mxu0 0
    %928 = vmatprep.subr.bf16.mxu0 0
    %929 = vmatpush1.bf16.xpose.msra.mxu0 0
    %930 = vmatprep.subr.bf16.mxu0 0
    %931 = vmatpush1.bf16.xpose.msra.mxu0 0
    %932 = vmatprep.subr.bf16.mxu0 0
    %933 = vmatpush1.bf16.xpose.msra.mxu0 0
    %934 = vmatprep.subr.bf16.mxu0 0
    %935 = vmatpush1.bf16.xpose.msra.mxu0 0
    %936 = vmatprep.subr.bf16.mxu0 0
    %937 = vmatpush1.bf16.xpose.msra.mxu0 0
    %938 = vmatprep.subr.bf16.mxu0 0
    %939 = vmatpush1.bf16.xpose.msra.mxu0 0
    %940 = vmatprep.mubr.bf16.mxu0 0
    %941 = vmatmul.mubr.bf16.gmra.mrb[0].mxu0 %v903
    %v942 = vpop.f32.mrb[0].mxu0
    %v943 = vadd.f32 0.0, %v942
    %v944 = vpop.f32.mrb[0].mxu0
    %v945 = vpop.f32.mrb[0].mxu0
    %v946 = vpop.f32.mrb[0].mxu0
    %947 = vdwg.mxu0
    %v949 = vsel %vm625, %v332, 0
    %v952 = vsel %vm625, %v624, 0
    %954 = vmatprep.subr.bf16.mxu0 0
    %955 = vmatpush1.bf16.xpose.msra.mxu0 %v952
    %956 = vmatprep.subr.bf16.mxu0 0
    %957 = vmatpush1.bf16.xpose.msra.mxu0 0
    %958 = vmatprep.subr.bf16.mxu0 0
    %959 = vmatpush1.bf16.xpose.msra.mxu0 0
    %960 = vmatprep.subr.bf16.mxu0 0
    %961 = vmatpush1.bf16.xpose.msra.mxu0 0
    %962 = vmatprep.subr.bf16.mxu0 0
    %963 = vmatpush1.bf16.xpose.msra.mxu0 0
    %964 = vmatprep.subr.bf16.mxu0 0
    %965 = vmatpush1.bf16.xpose.msra.mxu0 0
    %966 = vmatprep.subr.bf16.mxu0 0
    %967 = vmatpush1.bf16.xpose.msra.mxu0 0
    %968 = vmatprep.subr.bf16.mxu0 0
    %969 = vmatpush1.bf16.xpose.msra.mxu0 0
    %970 = vmatprep.subr.bf16.mxu0 0
    %971 = vmatpush1.bf16.xpose.msra.mxu0 0
    %972 = vmatprep.subr.bf16.mxu0 0
    %973 = vmatpush1.bf16.xpose.msra.mxu0 0
    %974 = vmatprep.subr.bf16.mxu0 0
    %975 = vmatpush1.bf16.xpose.msra.mxu0 0
    %976 = vmatprep.subr.bf16.mxu0 0
    %977 = vmatpush1.bf16.xpose.msra.mxu0 0
    %978 = vmatprep.subr.bf16.mxu0 0
    %979 = vmatpush1.bf16.xpose.msra.mxu0 0
    %980 = vmatprep.subr.bf16.mxu0 0
    %981 = vmatpush1.bf16.xpose.msra.mxu0 0
    %982 = vmatprep.subr.bf16.mxu0 0
    %983 = vmatpush1.bf16.xpose.msra.mxu0 0
    %984 = vmatprep.subr.bf16.mxu0 0
    %985 = vmatpush1.bf16.xpose.msra.mxu0 0
    %986 = vmatprep.mubr.bf16.mxu0 0
    %987 = vmatmul.mubr.bf16.gmra.mrb[0].mxu0 %v949
    %v988 = vpop.f32.mrb[0].mxu0
    %v989 = vadd.f32 0.0, %v988
    %v990 = vpop.f32.mrb[0].mxu0
    %v991 = vpop.f32.mrb[0].mxu0
    %v992 = vpop.f32.mrb[0].mxu0
    %993 = vdwg.mxu0
    %994 = vrot.lane.b32.xlu0 %v325, 120
    %v995 = vpop.permute.xlu0 %994
    %v997 = vsel %vm625, %v995, 0
    %999 = vmatprep.subr.bf16.mxu0 0
    %1000 = vmatpush1.bf16.xpose.msra.mxu0 %v997
    %1001 = vmatprep.subr.bf16.mxu0 0
    %1002 = vmatpush1.bf16.xpose.msra.mxu0 0
    %1003 = vmatprep.subr.bf16.mxu0 0
    %1004 = vmatpush1.bf16.xpose.msra.mxu0 0
    %1005 = vmatprep.subr.bf16.mxu0 0
    %1006 = vmatpush1.bf16.xpose.msra.mxu0 0
    %1007 = vmatprep.subr.bf16.mxu0 0
    %1008 = vmatpush1.bf16.xpose.msra.mxu0 0
    %1009 = vmatprep.subr.bf16.mxu0 0
    %1010 = vmatpush1.bf16.xpose.msra.mxu0 0
    %1011 = vmatprep.subr.bf16.mxu0 0
    %1012 = vmatpush1.bf16.xpose.msra.mxu0 0
    %1013 = vmatprep.subr.bf16.mxu0 0
    %1014 = vmatpush1.bf16.xpose.msra.mxu0 0
    %1015 = vmatprep.subr.bf16.mxu0 0
    %1016 = vmatpush1.bf16.xpose.msra.mxu0 0
    %1017 = vmatprep.subr.bf16.mxu0 0
    %1018 = vmatpush1.bf16.xpose.msra.mxu0 0
    %1019 = vmatprep.subr.bf16.mxu0 0
    %1020 = vmatpush1.bf16.xpose.msra.mxu0 0
    %1021 = vmatprep.subr.bf16.mxu0 0
    %1022 = vmatpush1.bf16.xpose.msra.mxu0 0
    %1023 = vmatprep.subr.bf16.mxu0 0
    %1024 = vmatpush1.bf16.xpose.msra.mxu0 0
    %1025 = vmatprep.subr.bf16.mxu0 0
    %1026 = vmatpush1.bf16.xpose.msra.mxu0 0
    %1027 = vmatprep.subr.bf16.mxu0 0
    %1028 = vmatpush1.bf16.xpose.msra.mxu0 0
    %1029 = vmatprep.subr.bf16.mxu0 0
    %1030 = vmatpush1.bf16.xpose.msra.mxu0 0
    %1031 = vmatprep.mubr.bf16.mxu0 0
    %1032 = vmatmul.mubr.bf16.gmra.mrb[0].mxu0 %v627
    %v1033 = vpop.f32.mrb[0].mxu0
    %v1034 = vadd.f32 0.0, %v1033
    %v1035 = vpop.f32.mrb[0].mxu0
    %v1036 = vpop.f32.mrb[0].mxu0
    %v1037 = vpop.f32.mrb[0].mxu0
    %1038 = vdwg.mxu0
    %1039 = vrot.lane.b32.xlu0 %v326, 120
    %v1040 = vpop.permute.xlu0 %1039
    %v1042 = vsel %vm625, %v1040, 0
    %1044 = vmatprep.subr.bf16.mxu0 0
    %1045 = vmatpush1.bf16.xpose.msra.mxu0 %v1042
    %1046 = vmatprep.subr.bf16.mxu0 0
    %1047 = vmatpush1.bf16.xpose.msra.mxu0 0
    %1048 = vmatprep.subr.bf16.mxu0 0
    %1049 = vmatpush1.bf16.xpose.msra.mxu0 0
    %1050 = vmatprep.subr.bf16.mxu0 0
    %1051 = vmatpush1.bf16.xpose.msra.mxu0 0
    %1052 = vmatprep.subr.bf16.mxu0 0
    %1053 = vmatpush1.bf16.xpose.msra.mxu0 0
    %1054 = vmatprep.subr.bf16.mxu0 0
    %1055 = vmatpush1.bf16.xpose.msra.mxu0 0
    %1056 = vmatprep.subr.bf16.mxu0 0
    %1057 = vmatpush1.bf16.xpose.msra.mxu0 0
    %1058 = vmatprep.subr.bf16.mxu0 0
    %1059 = vmatpush1.bf16.xpose.msra.mxu0 0
    %1060 = vmatprep.subr.bf16.mxu0 0
    %1061 = vmatpush1.bf16.xpose.msra.mxu0 0
    %1062 = vmatprep.subr.bf16.mxu0 0
    %1063 = vmatpush1.bf16.xpose.msra.mxu0 0
    %1064 = vmatprep.subr.bf16.mxu0 0
    %1065 = vmatpush1.bf16.xpose.msra.mxu0 0
    %1066 = vmatprep.subr.bf16.mxu0 0
    %1067 = vmatpush1.bf16.xpose.msra.mxu0 0
    %1068 = vmatprep.subr.bf16.mxu0 0
    %1069 = vmatpush1.bf16.xpose.msra.mxu0 0
    %1070 = vmatprep.subr.bf16.mxu0 0
    %1071 = vmatpush1.bf16.xpose.msra.mxu0 0
    %1072 = vmatprep.subr.bf16.mxu0 0
    %1073 = vmatpush1.bf16.xpose.msra.mxu0 0
    %1074 = vmatprep.subr.bf16.mxu0 0
    %1075 = vmatpush1.bf16.xpose.msra.mxu0 0
    %1076 = vmatprep.mubr.bf16.mxu0 0
    %1077 = vmatmul.mubr.bf16.gmra.mrb[0].mxu0 %v673
    %v1078 = vpop.f32.mrb[0].mxu0
    %v1079 = vadd.f32 0.0, %v1078
    %v1080 = vpop.f32.mrb[0].mxu0
    %v1081 = vpop.f32.mrb[0].mxu0
    %v1082 = vpop.f32.mrb[0].mxu0
    %1083 = vdwg.mxu0
    %1084 = vrot.lane.b32.xlu0 %v327, 120
    %v1085 = vpop.permute.xlu0 %1084
    %v1087 = vsel %vm625, %v1085, 0
    %1089 = vmatprep.subr.bf16.mxu0 0
    %1090 = vmatpush1.bf16.xpose.msra.mxu0 %v1087
    %1091 = vmatprep.subr.bf16.mxu0 0
    %1092 = vmatpush1.bf16.xpose.msra.mxu0 0
    %1093 = vmatprep.subr.bf16.mxu0 0
    %1094 = vmatpush1.bf16.xpose.msra.mxu0 0
    %1095 = vmatprep.subr.bf16.mxu0 0
    %1096 = vmatpush1.bf16.xpose.msra.mxu0 0
    %1097 = vmatprep.subr.bf16.mxu0 0
    %1098 = vmatpush1.bf16.xpose.msra.mxu0 0
    %1099 = vmatprep.subr.bf16.mxu0 0
    %1100 = vmatpush1.bf16.xpose.msra.mxu0 0
    %1101 = vmatprep.subr.bf16.mxu0 0
    %1102 = vmatpush1.bf16.xpose.msra.mxu0 0
    %1103 = vmatprep.subr.bf16.mxu0 0
    %1104 = vmatpush1.bf16.xpose.msra.mxu0 0
    %1105 = vmatprep.subr.bf16.mxu0 0
    %1106 = vmatpush1.bf16.xpose.msra.mxu0 0
    %1107 = vmatprep.subr.bf16.mxu0 0
    %1108 = vmatpush1.bf16.xpose.msra.mxu0 0
    %1109 = vmatprep.subr.bf16.mxu0 0
    %1110 = vmatpush1.bf16.xpose.msra.mxu0 0
    %1111 = vmatprep.subr.bf16.mxu0 0
    %1112 = vmatpush1.bf16.xpose.msra.mxu0 0
    %1113 = vmatprep.subr.bf16.mxu0 0
    %1114 = vmatpush1.bf16.xpose.msra.mxu0 0
    %1115 = vmatprep.subr.bf16.mxu0 0
    %1116 = vmatpush1.bf16.xpose.msra.mxu0 0
    %1117 = vmatprep.subr.bf16.mxu0 0
    %1118 = vmatpush1.bf16.xpose.msra.mxu0 0
    %1119 = vmatprep.subr.bf16.mxu0 0
    %1120 = vmatpush1.bf16.xpose.msra.mxu0 0
    %1121 = vmatprep.mubr.bf16.mxu0 0
    %1122 = vmatmul.mubr.bf16.gmra.mrb[0].mxu0 %v719
    %v1123 = vpop.f32.mrb[0].mxu0
    %v1124 = vadd.f32 0.0, %v1123
    %v1125 = vpop.f32.mrb[0].mxu0
    %v1126 = vpop.f32.mrb[0].mxu0
    %v1127 = vpop.f32.mrb[0].mxu0
    %1128 = vdwg.mxu0
    %1129 = vrot.lane.b32.xlu0 %v328, 120
    %v1130 = vpop.permute.xlu0 %1129
    %v1132 = vsel %vm625, %v1130, 0
    %1134 = vmatprep.subr.bf16.mxu0 0
    %1135 = vmatpush1.bf16.xpose.msra.mxu0 %v1132
    %1136 = vmatprep.subr.bf16.mxu0 0
    %1137 = vmatpush1.bf16.xpose.msra.mxu0 0
    %1138 = vmatprep.subr.bf16.mxu0 0
    %1139 = vmatpush1.bf16.xpose.msra.mxu0 0
    %1140 = vmatprep.subr.bf16.mxu0 0
    %1141 = vmatpush1.bf16.xpose.msra.mxu0 0
    %1142 = vmatprep.subr.bf16.mxu0 0
    %1143 = vmatpush1.bf16.xpose.msra.mxu0 0
    %1144 = vmatprep.subr.bf16.mxu0 0
    %1145 = vmatpush1.bf16.xpose.msra.mxu0 0
    %1146 = vmatprep.subr.bf16.mxu0 0
    %1147 = vmatpush1.bf16.xpose.msra.mxu0 0
    %1148 = vmatprep.subr.bf16.mxu0 0
    %1149 = vmatpush1.bf16.xpose.msra.mxu0 0
    %1150 = vmatprep.subr.bf16.mxu0 0
    %1151 = vmatpush1.bf16.xpose.msra.mxu0 0
    %1152 = vmatprep.subr.bf16.mxu0 0
    %1153 = vmatpush1.bf16.xpose.msra.mxu0 0
    %1154 = vmatprep.subr.bf16.mxu0 0
    %1155 = vmatpush1.bf16.xpose.msra.mxu0 0
    %1156 = vmatprep.subr.bf16.mxu0 0
    %1157 = vmatpush1.bf16.xpose.msra.mxu0 0
    %1158 = vmatprep.subr.bf16.mxu0 0
    %1159 = vmatpush1.bf16.xpose.msra.mxu0 0
    %1160 = vmatprep.subr.bf16.mxu0 0
    %1161 = vmatpush1.bf16.xpose.msra.mxu0 0
    %1162 = vmatprep.subr.bf16.mxu0 0
    %1163 = vmatpush1.bf16.xpose.msra.mxu0 0
    %1164 = vmatprep.subr.bf16.mxu0 0
    %1165 = vmatpush1.bf16.xpose.msra.mxu0 0
    %1166 = vmatprep.mubr.bf16.mxu0 0
    %1167 = vmatmul.mubr.bf16.gmra.mrb[0].mxu0 %v765
    %v1168 = vpop.f32.mrb[0].mxu0
    %v1169 = vadd.f32 0.0, %v1168
    %v1170 = vpop.f32.mrb[0].mxu0
    %v1171 = vpop.f32.mrb[0].mxu0
    %v1172 = vpop.f32.mrb[0].mxu0
    %1173 = vdwg.mxu0
    %1174 = vrot.lane.b32.xlu0 %v329, 120
    %v1175 = vpop.permute.xlu0 %1174
    %v1177 = vsel %vm625, %v1175, 0
    %1179 = vmatprep.subr.bf16.mxu0 0
    %1180 = vmatpush1.bf16.xpose.msra.mxu0 %v1177
    %1181 = vmatprep.subr.bf16.mxu0 0
    %1182 = vmatpush1.bf16.xpose.msra.mxu0 0
    %1183 = vmatprep.subr.bf16.mxu0 0
    %1184 = vmatpush1.bf16.xpose.msra.mxu0 0
    %1185 = vmatprep.subr.bf16.mxu0 0
    %1186 = vmatpush1.bf16.xpose.msra.mxu0 0
    %1187 = vmatprep.subr.bf16.mxu0 0
    %1188 = vmatpush1.bf16.xpose.msra.mxu0 0
    %1189 = vmatprep.subr.bf16.mxu0 0
    %1190 = vmatpush1.bf16.xpose.msra.mxu0 0
    %1191 = vmatprep.subr.bf16.mxu0 0
    %1192 = vmatpush1.bf16.xpose.msra.mxu0 0
    %1193 = vmatprep.subr.bf16.mxu0 0
    %1194 = vmatpush1.bf16.xpose.msra.mxu0 0
    %1195 = vmatprep.subr.bf16.mxu0 0
    %1196 = vmatpush1.bf16.xpose.msra.mxu0 0
    %1197 = vmatprep.subr.bf16.mxu0 0
    %1198 = vmatpush1.bf16.xpose.msra.mxu0 0
    %1199 = vmatprep.subr.bf16.mxu0 0
    %1200 = vmatpush1.bf16.xpose.msra.mxu0 0
    %1201 = vmatprep.subr.bf16.mxu0 0
    %1202 = vmatpush1.bf16.xpose.msra.mxu0 0
    %1203 = vmatprep.subr.bf16.mxu0 0
    %1204 = vmatpush1.bf16.xpose.msra.mxu0 0
    %1205 = vmatprep.subr.bf16.mxu0 0
    %1206 = vmatpush1.bf16.xpose.msra.mxu0 0
    %1207 = vmatprep.subr.bf16.mxu0 0
    %1208 = vmatpush1.bf16.xpose.msra.mxu0 0
    %1209 = vmatprep.subr.bf16.mxu0 0
    %1210 = vmatpush1.bf16.xpose.msra.mxu0 0
    %1211 = vmatprep.mubr.bf16.mxu0 0
    %1212 = vmatmul.mubr.bf16.gmra.mrb[0].mxu0 %v811
    %v1213 = vpop.f32.mrb[0].mxu0
    %v1214 = vadd.f32 0.0, %v1213
    %v1215 = vpop.f32.mrb[0].mxu0
    %v1216 = vpop.f32.mrb[0].mxu0
    %v1217 = vpop.f32.mrb[0].mxu0
    %1218 = vdwg.mxu0
    %1219 = vrot.lane.b32.xlu0 %v330, 120
    %v1220 = vpop.permute.xlu0 %1219
    %v1222 = vsel %vm625, %v1220, 0
    %1224 = vmatprep.subr.bf16.mxu0 0
    %1225 = vmatpush1.bf16.xpose.msra.mxu0 %v1222
    %1226 = vmatprep.subr.bf16.mxu0 0
    %1227 = vmatpush1.bf16.xpose.msra.mxu0 0
    %1228 = vmatprep.subr.bf16.mxu0 0
    %1229 = vmatpush1.bf16.xpose.msra.mxu0 0
    %1230 = vmatprep.subr.bf16.mxu0 0
    %1231 = vmatpush1.bf16.xpose.msra.mxu0 0
    %1232 = vmatprep.subr.bf16.mxu0 0
    %1233 = vmatpush1.bf16.xpose.msra.mxu0 0
    %1234 = vmatprep.subr.bf16.mxu0 0
    %1235 = vmatpush1.bf16.xpose.msra.mxu0 0
    %1236 = vmatprep.subr.bf16.mxu0 0
    %1237 = vmatpush1.bf16.xpose.msra.mxu0 0
    %1238 = vmatprep.subr.bf16.mxu0 0
    %1239 = vmatpush1.bf16.xpose.msra.mxu0 0
    %1240 = vmatprep.subr.bf16.mxu0 0
    %1241 = vmatpush1.bf16.xpose.msra.mxu0 0
    %1242 = vmatprep.subr.bf16.mxu0 0
    %1243 = vmatpush1.bf16.xpose.msra.mxu0 0
    %1244 = vmatprep.subr.bf16.mxu0 0
    %1245 = vmatpush1.bf16.xpose.msra.mxu0 0
    %1246 = vmatprep.subr.bf16.mxu0 0
    %1247 = vmatpush1.bf16.xpose.msra.mxu0 0
    %1248 = vmatprep.subr.bf16.mxu0 0
    %1249 = vmatpush1.bf16.xpose.msra.mxu0 0
    %1250 = vmatprep.subr.bf16.mxu0 0
    %1251 = vmatpush1.bf16.xpose.msra.mxu0 0
    %1252 = vmatprep.subr.bf16.mxu0 0
    %1253 = vmatpush1.bf16.xpose.msra.mxu0 0
    %1254 = vmatprep.subr.bf16.mxu0 0
    %1255 = vmatpush1.bf16.xpose.msra.mxu0 0
    %1256 = vmatprep.mubr.bf16.mxu0 0
    %1257 = vmatmul.mubr.bf16.gmra.mrb[0].mxu0 %v857
    %v1258 = vpop.f32.mrb[0].mxu0
    %v1259 = vadd.f32 0.0, %v1258
    %v1260 = vpop.f32.mrb[0].mxu0
    %v1261 = vpop.f32.mrb[0].mxu0
    %v1262 = vpop.f32.mrb[0].mxu0
    %1263 = vdwg.mxu0
    %1264 = vrot.lane.b32.xlu0 %v331, 120
    %v1265 = vpop.permute.xlu0 %1264
    %v1267 = vsel %vm625, %v1265, 0
    %1269 = vmatprep.subr.bf16.mxu0 0
    %1270 = vmatpush1.bf16.xpose.msra.mxu0 %v1267
    %1271 = vmatprep.subr.bf16.mxu0 0
    %1272 = vmatpush1.bf16.xpose.msra.mxu0 0
    %1273 = vmatprep.subr.bf16.mxu0 0
    %1274 = vmatpush1.bf16.xpose.msra.mxu0 0
    %1275 = vmatprep.subr.bf16.mxu0 0
    %1276 = vmatpush1.bf16.xpose.msra.mxu0 0
    %1277 = vmatprep.subr.bf16.mxu0 0
    %1278 = vmatpush1.bf16.xpose.msra.mxu0 0
    %1279 = vmatprep.subr.bf16.mxu0 0
    %1280 = vmatpush1.bf16.xpose.msra.mxu0 0
    %1281 = vmatprep.subr.bf16.mxu0 0
    %1282 = vmatpush1.bf16.xpose.msra.mxu0 0
    %1283 = vmatprep.subr.bf16.mxu0 0
    %1284 = vmatpush1.bf16.xpose.msra.mxu0 0
    %1285 = vmatprep.subr.bf16.mxu0 0
    %1286 = vmatpush1.bf16.xpose.msra.mxu0 0
    %1287 = vmatprep.subr.bf16.mxu0 0
    %1288 = vmatpush1.bf16.xpose.msra.mxu0 0
    %1289 = vmatprep.subr.bf16.mxu0 0
    %1290 = vmatpush1.bf16.xpose.msra.mxu0 0
    %1291 = vmatprep.subr.bf16.mxu0 0
    %1292 = vmatpush1.bf16.xpose.msra.mxu0 0
    %1293 = vmatprep.subr.bf16.mxu0 0
    %1294 = vmatpush1.bf16.xpose.msra.mxu0 0
    %1295 = vmatprep.subr.bf16.mxu0 0
    %1296 = vmatpush1.bf16.xpose.msra.mxu0 0
    %1297 = vmatprep.subr.bf16.mxu0 0
    %1298 = vmatpush1.bf16.xpose.msra.mxu0 0
    %1299 = vmatprep.subr.bf16.mxu0 0
    %1300 = vmatpush1.bf16.xpose.msra.mxu0 0
    %1301 = vmatprep.mubr.bf16.mxu0 0
    %1302 = vmatmul.mubr.bf16.gmra.mrb[0].mxu0 %v903
    %v1303 = vpop.f32.mrb[0].mxu0
    %v1304 = vadd.f32 0.0, %v1303
    %v1305 = vpop.f32.mrb[0].mxu0
    %v1306 = vpop.f32.mrb[0].mxu0
    %v1307 = vpop.f32.mrb[0].mxu0
    %1308 = vdwg.mxu0
    %1309 = vrot.lane.b32.xlu0 %v332, 120
    %v1310 = vpop.permute.xlu0 %1309
    %v1312 = vsel %vm625, %v1310, 0
    %1314 = vmatprep.subr.bf16.mxu0 0
    %1315 = vmatpush1.bf16.xpose.msra.mxu0 %v1312
    %1316 = vmatprep.subr.bf16.mxu0 0
    %1317 = vmatpush1.bf16.xpose.msra.mxu0 0
    %1318 = vmatprep.subr.bf16.mxu0 0
    %1319 = vmatpush1.bf16.xpose.msra.mxu0 0
    %1320 = vmatprep.subr.bf16.mxu0 0
    %1321 = vmatpush1.bf16.xpose.msra.mxu0 0
    %1322 = vmatprep.subr.bf16.mxu0 0
    %1323 = vmatpush1.bf16.xpose.msra.mxu0 0
    %1324 = vmatprep.subr.bf16.mxu0 0
    %1325 = vmatpush1.bf16.xpose.msra.mxu0 0
    %1326 = vmatprep.subr.bf16.mxu0 0
    %1327 = vmatpush1.bf16.xpose.msra.mxu0 0
    %1328 = vmatprep.subr.bf16.mxu0 0
    %1329 = vmatpush1.bf16.xpose.msra.mxu0 0
    %1330 = vmatprep.subr.bf16.mxu0 0
    %1331 = vmatpush1.bf16.xpose.msra.mxu0 0
    %1332 = vmatprep.subr.bf16.mxu0 0
    %1333 = vmatpush1.bf16.xpose.msra.mxu0 0
    %1334 = vmatprep.subr.bf16.mxu0 0
    %1335 = vmatpush1.bf16.xpose.msra.mxu0 0
    %1336 = vmatprep.subr.bf16.mxu0 0
    %1337 = vmatpush1.bf16.xpose.msra.mxu0 0
    %1338 = vmatprep.subr.bf16.mxu0 0
    %1339 = vmatpush1.bf16.xpose.msra.mxu0 0
    %1340 = vmatprep.subr.bf16.mxu0 0
    %1341 = vmatpush1.bf16.xpose.msra.mxu0 0
    %1342 = vmatprep.subr.bf16.mxu0 0
    %1343 = vmatpush1.bf16.xpose.msra.mxu0 0
    %1344 = vmatprep.subr.bf16.mxu0 0
    %1345 = vmatpush1.bf16.xpose.msra.mxu0 0
    %1346 = vmatprep.mubr.bf16.mxu0 0
    %1347 = vmatmul.mubr.bf16.gmra.mrb[0].mxu0 %v949
    %v1348 = vpop.f32.mrb[0].mxu0
    %v1349 = vadd.f32 0.0, %v1348
    %v1350 = vpop.f32.mrb[0].mxu0
    %v1351 = vpop.f32.mrb[0].mxu0
    %v1352 = vpop.f32.mrb[0].mxu0
    %1353 = vdwg.mxu0
    %v1354 = vmul.f32 %v667, %v667
    %v1355 = vmul.f32 %v713, %v713
    %v1356 = vmul.f32 %v759, %v759
    %v1357 = vmul.f32 %v805, %v805
    %v1358 = vmul.f32 %v851, %v851
    %v1359 = vmul.f32 %v897, %v897
    %v1360 = vmul.f32 %v943, %v943
    %v1361 = vmul.f32 %v989, %v989
    %v1362 = vmul.f32 %v1034, %v1034
    %v1363 = vmul.f32 %v1079, %v1079
    %v1364 = vmul.f32 %v1124, %v1124
    %v1365 = vmul.f32 %v1169, %v1169
    %v1366 = vmul.f32 %v1214, %v1214
    %v1367 = vmul.f32 %v1259, %v1259
    %v1368 = vmul.f32 %v1304, %v1304
    %v1369 = vmul.f32 %v1349, %v1349
    %v1370 = vsel %vm625, %v1354, -inf
    %1371 = vmax.xlane.f32.xlu0 %v1370
    %v1372 = vpop.xlane.xlu0 %1371
    %v1373 = vsel %vm625, %v1355, -inf
    %1374 = vmax.xlane.f32.xlu0 %v1373
    %v1375 = vpop.xlane.xlu0 %1374
    %v1376 = vsel %vm625, %v1356, -inf
    %1377 = vmax.xlane.f32.xlu0 %v1376
    %v1378 = vpop.xlane.xlu0 %1377
    %v1379 = vsel %vm625, %v1357, -inf
    %1380 = vmax.xlane.f32.xlu0 %v1379
    %v1381 = vpop.xlane.xlu0 %1380
    %v1382 = vsel %vm625, %v1358, -inf
    %1383 = vmax.xlane.f32.xlu0 %v1382
    %v1384 = vpop.xlane.xlu0 %1383
    %v1385 = vsel %vm625, %v1359, -inf
    %1386 = vmax.xlane.f32.xlu0 %v1385
    %v1387 = vpop.xlane.xlu0 %1386
    %v1388 = vsel %vm625, %v1360, -inf
    %1389 = vmax.xlane.f32.xlu0 %v1388
    %v1390 = vpop.xlane.xlu0 %1389
    %v1391 = vsel %vm625, %v1361, -inf
    %1392 = vmax.xlane.f32.xlu0 %v1391
    %v1393 = vpop.xlane.xlu0 %1392
    %v1394 = vsel %vm625, %v1362, -inf
    %1395 = vmax.xlane.f32.xlu0 %v1394
    %v1396 = vpop.xlane.xlu0 %1395
    %v1397 = vsel %vm625, %v1363, -inf
    %1398 = vmax.xlane.f32.xlu0 %v1397
    %v1399 = vpop.xlane.xlu0 %1398
    %v1400 = vsel %vm625, %v1364, -inf
    %1401 = vmax.xlane.f32.xlu0 %v1400
    %v1402 = vpop.xlane.xlu0 %1401
    %v1403 = vsel %vm625, %v1365, -inf
    %1404 = vmax.xlane.f32.xlu0 %v1403
    %v1405 = vpop.xlane.xlu0 %1404
    %v1406 = vsel %vm625, %v1366, -inf
    %1407 = vmax.xlane.f32.xlu0 %v1406
    %v1408 = vpop.xlane.xlu0 %1407
    %v1409 = vsel %vm625, %v1367, -inf
    %1410 = vmax.xlane.f32.xlu0 %v1409
    %v1411 = vpop.xlane.xlu0 %1410
    %v1412 = vsel %vm625, %v1368, -inf
    %1413 = vmax.xlane.f32.xlu0 %v1412
    %v1414 = vpop.xlane.xlu0 %1413
    %v1415 = vsel %vm625, %v1369, -inf
    %1416 = vmax.xlane.f32.xlu0 %v1415
    %v1417 = vpop.xlane.xlu0 %1416
    %v1418 = vmax.f32 %v1372, %v1396
    %v1419 = vmax.f32 %v1375, %v1399
    %v1420 = vmax.f32 %v1378, %v1402
    %v1421 = vmax.f32 %v1381, %v1405
    %v1422 = vmax.f32 %v1384, %v1408
    %v1423 = vmax.f32 %v1387, %v1411
    %v1424 = vmax.f32 %v1390, %v1414
    %v1425 = vmax.f32 %v1393, %v1417
    %v1426 = vmax.f32 %v1418, 1e-30
    %v1427 = vmax.f32 %v1419, 1e-30
    %v1428 = vmax.f32 %v1420, 1e-30
    %v1429 = vmax.f32 %v1421, 1e-30
    %v1430 = vmax.f32 %v1422, 1e-30
    %v1431 = vmax.f32 %v1423, 1e-30
    %v1432 = vmax.f32 %v1424, 1e-30
    %v1433 = vmax.f32 %v1425, 1e-30
    %v1434 = vrcp.pop %v1426
    %v1435 = vrcp.pop %v1427
    %v1436 = vrcp.pop %v1428
    %v1437 = vrcp.pop %v1429
    %v1438 = vrcp.pop %v1430
    %v1439 = vrcp.pop %v1431
    %v1440 = vrcp.pop %v1432
    %v1441 = vrcp.pop %v1433
    %v1442 = vmul.f32 %v1354, %v1434
    %v1443 = vmul.f32 %v1355, %v1435
    %v1444 = vmul.f32 %v1356, %v1436
    %v1445 = vmul.f32 %v1357, %v1437
    %v1446 = vmul.f32 %v1358, %v1438
    %v1447 = vmul.f32 %v1359, %v1439
    %v1448 = vmul.f32 %v1360, %v1440
    %v1449 = vmul.f32 %v1361, %v1441
    %v1450 = vmul.f32 %v1362, %v1434
    %v1451 = vmul.f32 %v1363, %v1435
    %v1452 = vmul.f32 %v1364, %v1436
    %v1453 = vmul.f32 %v1365, %v1437
    %v1454 = vmul.f32 %v1366, %v1438
    %v1455 = vmul.f32 %v1367, %v1439
    %v1456 = vmul.f32 %v1368, %v1440
    %v1457 = vmul.f32 %v1369, %v1441
    %v1458 = vadd.f32 %v1442, 0.01
    %v1459 = vadd.f32 %v1443, 0.01
    %v1460 = vadd.f32 %v1444, 0.01
    %v1461 = vadd.f32 %v1445, 0.01
    %v1462 = vadd.f32 %v1446, 0.01
    %v1463 = vadd.f32 %v1447, 0.01
    %v1464 = vadd.f32 %v1448, 0.01
    %v1465 = vadd.f32 %v1449, 0.01
    %v1466 = vlog2.pop %v1458
    %v1467 = vmul.f32 %v1466, 0.6931472
    %v1468 = vlog2.pop %v1459
    %v1469 = vmul.f32 %v1468, 0.6931472
    %v1470 = vlog2.pop %v1460
    %v1471 = vmul.f32 %v1470, 0.6931472
    %v1472 = vlog2.pop %v1461
    %v1473 = vmul.f32 %v1472, 0.6931472
    %v1474 = vlog2.pop %v1462
    %v1475 = vmul.f32 %v1474, 0.6931472
    %v1476 = vlog2.pop %v1463
    %v1477 = vmul.f32 %v1476, 0.6931472
    %v1478 = vlog2.pop %v1464
    %v1479 = vmul.f32 %v1478, 0.6931472
    %v1480 = vlog2.pop %v1465
    %v1481 = vmul.f32 %v1480, 0.6931472
    %v1482 = vsel %vm625, %v1467, 0.0
    %v1483 = vsel %vm625, %v1469, 0.0
    %v1484 = vadd.f32 %v1482, %v1483
    %v1485 = vsel %vm625, %v1471, 0.0
    %v1486 = vadd.f32 %v1484, %v1485
    %v1487 = vsel %vm625, %v1473, 0.0
    %v1488 = vadd.f32 %v1486, %v1487
    %v1489 = vsel %vm625, %v1475, 0.0
    %v1490 = vadd.f32 %v1488, %v1489
    %v1491 = vsel %vm625, %v1477, 0.0
    %v1492 = vadd.f32 %v1490, %v1491
    %v1493 = vsel %vm625, %v1479, 0.0
    %v1494 = vadd.f32 %v1492, %v1493
    %v1495 = vsel %vm625, %v1481, 0.0
    %v1496 = vadd.f32 %v1494, %v1495
    %1497 = vadd.xlane.f32.xlu0 %v1496
    %v1498 = vpop.xlane.xlu0 %1497
    %v1499 = vrot.slane %v1498, 4
    %v1500 = vadd.f32 %v1498, %v1499
    %v1501 = vrot.slane %v1500, 2
    %v1502 = vadd.f32 %v1500, %v1501
    %v1503 = vrot.slane %v1502, 1
    %v1504 = vadd.f32 %v1502, %v1503
    %s1505 = vtos %v1504
    %v1506 = vadd.f32 %v1450, 0.01
    %v1507 = vadd.f32 %v1451, 0.01
    %v1508 = vadd.f32 %v1452, 0.01
    %v1509 = vadd.f32 %v1453, 0.01
    %v1510 = vadd.f32 %v1454, 0.01
    %v1511 = vadd.f32 %v1455, 0.01
    %v1512 = vadd.f32 %v1456, 0.01
    %v1513 = vadd.f32 %v1457, 0.01
    %v1514 = vlog2.pop %v1506
    %v1515 = vmul.f32 %v1514, 0.6931472
    %v1516 = vlog2.pop %v1507
    %v1517 = vmul.f32 %v1516, 0.6931472
    %v1518 = vlog2.pop %v1508
    %v1519 = vmul.f32 %v1518, 0.6931472
    %v1520 = vlog2.pop %v1509
    %v1521 = vmul.f32 %v1520, 0.6931472
    %v1522 = vlog2.pop %v1510
    %v1523 = vmul.f32 %v1522, 0.6931472
    %v1524 = vlog2.pop %v1511
    %v1525 = vmul.f32 %v1524, 0.6931472
    %v1526 = vlog2.pop %v1512
    %v1527 = vmul.f32 %v1526, 0.6931472
    %v1528 = vlog2.pop %v1513
    %v1529 = vmul.f32 %v1528, 0.6931472
    %v1530 = vsel %vm625, %v1515, 0.0
    %v1531 = vsel %vm625, %v1517, 0.0
    %v1532 = vadd.f32 %v1530, %v1531
    %v1533 = vsel %vm625, %v1519, 0.0
    %v1534 = vadd.f32 %v1532, %v1533
    %v1535 = vsel %vm625, %v1521, 0.0
    %v1536 = vadd.f32 %v1534, %v1535
    %v1537 = vsel %vm625, %v1523, 0.0
    %v1538 = vadd.f32 %v1536, %v1537
    %v1539 = vsel %vm625, %v1525, 0.0
    %v1540 = vadd.f32 %v1538, %v1539
    %v1541 = vsel %vm625, %v1527, 0.0
    %v1542 = vadd.f32 %v1540, %v1541
    %v1543 = vsel %vm625, %v1529, 0.0
    %v1544 = vadd.f32 %v1542, %v1543
    %1545 = vadd.xlane.f32.xlu0 %v1544
    %v1546 = vpop.xlane.xlu0 %1545
    %v1547 = vrot.slane %v1546, 4
    %v1548 = vadd.f32 %v1546, %v1547
    %v1549 = vrot.slane %v1548, 2
    %v1550 = vadd.f32 %v1548, %v1549
    %v1551 = vrot.slane %v1550, 1
    %v1552 = vadd.f32 %v1550, %v1551
    %s1553 = vtos %v1552
    %s1554 = sadd.f32 %s1505, %s1553
    %v1555 = vpack.c.bf16 %v1442, %v1442
    %v1556 = vpack.c.bf16 %v1443, %v1443
    %v1557 = vpack.c.bf16 %v1444, %v1444
    %v1558 = vpack.c.bf16 %v1445, %v1445
    %v1559 = vpack.c.bf16 %v1446, %v1446
    %v1560 = vpack.c.bf16 %v1447, %v1447
    %v1561 = vpack.c.bf16 %v1448, %v1448
    %v1562 = vpack.c.bf16 %v1449, %v1449
    %v1563 = vpack.c.bf16 %v1450, %v1450
    %v1564 = vpack.c.bf16 %v1451, %v1451
    %v1565 = vpack.c.bf16 %v1452, %v1452
    %v1566 = vpack.c.bf16 %v1453, %v1453
    %v1567 = vpack.c.bf16 %v1454, %v1454
    %v1568 = vpack.c.bf16 %v1455, %v1455
    %v1569 = vpack.c.bf16 %v1456, %v1456
    %v1570 = vpack.c.bf16 %v1457, %v1457
    %1571 = vrot.lane.b32.xlu0 %v325, 112
    %v1572 = vpop.permute.xlu0 %1571
    %v1574 = vsel %vm625, %v1563, 0
    %vm1576 = vcmask 1043456
    %v1578 = vsel %vm1576, %v1572, 0
    %1580 = vmatprep.subr.bf16.mxu0 0
    %1581 = vmatpush1.bf16.msra.mxu0 %v1578
    %1582 = vmatprep.subr.bf16.mxu0 0
    %1583 = vmatpush1.bf16.msra.mxu0 0
    %1584 = vmatprep.subr.bf16.mxu0 0
    %1585 = vmatpush1.bf16.msra.mxu0 0
    %1586 = vmatprep.subr.bf16.mxu0 0
    %1587 = vmatpush1.bf16.msra.mxu0 0
    %1588 = vmatprep.subr.bf16.mxu0 0
    %1589 = vmatpush1.bf16.msra.mxu0 0
    %1590 = vmatprep.subr.bf16.mxu0 0
    %1591 = vmatpush1.bf16.msra.mxu0 0
    %1592 = vmatprep.subr.bf16.mxu0 0
    %1593 = vmatpush1.bf16.msra.mxu0 0
    %1594 = vmatprep.subr.bf16.mxu0 0
    %1595 = vmatpush1.bf16.msra.mxu0 0
    %1596 = vmatprep.subr.bf16.mxu0 0
    %1597 = vmatpush1.bf16.msra.mxu0 0
    %1598 = vmatprep.subr.bf16.mxu0 0
    %1599 = vmatpush1.bf16.msra.mxu0 0
    %1600 = vmatprep.subr.bf16.mxu0 0
    %1601 = vmatpush1.bf16.msra.mxu0 0
    %1602 = vmatprep.subr.bf16.mxu0 0
    %1603 = vmatpush1.bf16.msra.mxu0 0
    %1604 = vmatprep.subr.bf16.mxu0 0
    %1605 = vmatpush1.bf16.msra.mxu0 0
    %1606 = vmatprep.subr.bf16.mxu0 0
    %1607 = vmatpush1.bf16.msra.mxu0 0
    %1608 = vmatprep.subr.bf16.mxu0 0
    %1609 = vmatpush1.bf16.msra.mxu0 0
    %1610 = vmatprep.subr.bf16.mxu0 0
    %1611 = vmatpush1.bf16.msra.mxu0 0
    %1612 = vmatprep.mubr.bf16.mxu0 0
    %1613 = vmatmul.mubr.bf16.gmra.mrb[0].mxu0 %v1574
    %v1614 = vpop.f32.mrb[0].mxu0
    %v1615 = vadd.f32 0.0, %v1614
    %v1616 = vpop.f32.mrb[0].mxu0
    %v1617 = vpop.f32.mrb[0].mxu0
    %v1618 = vpop.f32.mrb[0].mxu0
    %1619 = vdwg.mxu0
    %1620 = vrot.lane.b32.xlu0 %v326, 112
    %v1621 = vpop.permute.xlu0 %1620
    %v1623 = vsel %vm625, %v1564, 0
    %v1626 = vsel %vm1576, %v1621, 0
    %1628 = vmatprep.subr.bf16.mxu0 0
    %1629 = vmatpush1.bf16.msra.mxu0 %v1626
    %1630 = vmatprep.subr.bf16.mxu0 0
    %1631 = vmatpush1.bf16.msra.mxu0 0
    %1632 = vmatprep.subr.bf16.mxu0 0
    %1633 = vmatpush1.bf16.msra.mxu0 0
    %1634 = vmatprep.subr.bf16.mxu0 0
    %1635 = vmatpush1.bf16.msra.mxu0 0
    %1636 = vmatprep.subr.bf16.mxu0 0
    %1637 = vmatpush1.bf16.msra.mxu0 0
    %1638 = vmatprep.subr.bf16.mxu0 0
    %1639 = vmatpush1.bf16.msra.mxu0 0
    %1640 = vmatprep.subr.bf16.mxu0 0
    %1641 = vmatpush1.bf16.msra.mxu0 0
    %1642 = vmatprep.subr.bf16.mxu0 0
    %1643 = vmatpush1.bf16.msra.mxu0 0
    %1644 = vmatprep.subr.bf16.mxu0 0
    %1645 = vmatpush1.bf16.msra.mxu0 0
    %1646 = vmatprep.subr.bf16.mxu0 0
    %1647 = vmatpush1.bf16.msra.mxu0 0
    %1648 = vmatprep.subr.bf16.mxu0 0
    %1649 = vmatpush1.bf16.msra.mxu0 0
    %1650 = vmatprep.subr.bf16.mxu0 0
    %1651 = vmatpush1.bf16.msra.mxu0 0
    %1652 = vmatprep.subr.bf16.mxu0 0
    %1653 = vmatpush1.bf16.msra.mxu0 0
    %1654 = vmatprep.subr.bf16.mxu0 0
    %1655 = vmatpush1.bf16.msra.mxu0 0
    %1656 = vmatprep.subr.bf16.mxu0 0
    %1657 = vmatpush1.bf16.msra.mxu0 0
    %1658 = vmatprep.subr.bf16.mxu0 0
    %1659 = vmatpush1.bf16.msra.mxu0 0
    %1660 = vmatprep.mubr.bf16.mxu0 0
    %1661 = vmatmul.mubr.bf16.gmra.mrb[0].mxu0 %v1623
    %v1662 = vpop.f32.mrb[0].mxu0
    %v1663 = vadd.f32 0.0, %v1662
    %v1664 = vpop.f32.mrb[0].mxu0
    %v1665 = vpop.f32.mrb[0].mxu0
    %v1666 = vpop.f32.mrb[0].mxu0
    %1667 = vdwg.mxu0
    %1668 = vrot.lane.b32.xlu0 %v327, 112
    %v1669 = vpop.permute.xlu0 %1668
    %v1671 = vsel %vm625, %v1565, 0
    %v1674 = vsel %vm1576, %v1669, 0
    %1676 = vmatprep.subr.bf16.mxu0 0
    %1677 = vmatpush1.bf16.msra.mxu0 %v1674
    %1678 = vmatprep.subr.bf16.mxu0 0
    %1679 = vmatpush1.bf16.msra.mxu0 0
    %1680 = vmatprep.subr.bf16.mxu0 0
    %1681 = vmatpush1.bf16.msra.mxu0 0
    %1682 = vmatprep.subr.bf16.mxu0 0
    %1683 = vmatpush1.bf16.msra.mxu0 0
    %1684 = vmatprep.subr.bf16.mxu0 0
    %1685 = vmatpush1.bf16.msra.mxu0 0
    %1686 = vmatprep.subr.bf16.mxu0 0
    %1687 = vmatpush1.bf16.msra.mxu0 0
    %1688 = vmatprep.subr.bf16.mxu0 0
    %1689 = vmatpush1.bf16.msra.mxu0 0
    %1690 = vmatprep.subr.bf16.mxu0 0
    %1691 = vmatpush1.bf16.msra.mxu0 0
    %1692 = vmatprep.subr.bf16.mxu0 0
    %1693 = vmatpush1.bf16.msra.mxu0 0
    %1694 = vmatprep.subr.bf16.mxu0 0
    %1695 = vmatpush1.bf16.msra.mxu0 0
    %1696 = vmatprep.subr.bf16.mxu0 0
    %1697 = vmatpush1.bf16.msra.mxu0 0
    %1698 = vmatprep.subr.bf16.mxu0 0
    %1699 = vmatpush1.bf16.msra.mxu0 0
    %1700 = vmatprep.subr.bf16.mxu0 0
    %1701 = vmatpush1.bf16.msra.mxu0 0
    %1702 = vmatprep.subr.bf16.mxu0 0
    %1703 = vmatpush1.bf16.msra.mxu0 0
    %1704 = vmatprep.subr.bf16.mxu0 0
    %1705 = vmatpush1.bf16.msra.mxu0 0
    %1706 = vmatprep.subr.bf16.mxu0 0
    %1707 = vmatpush1.bf16.msra.mxu0 0
    %1708 = vmatprep.mubr.bf16.mxu0 0
    %1709 = vmatmul.mubr.bf16.gmra.mrb[0].mxu0 %v1671
    %v1710 = vpop.f32.mrb[0].mxu0
    %v1711 = vadd.f32 0.0, %v1710
    %v1712 = vpop.f32.mrb[0].mxu0
    %v1713 = vpop.f32.mrb[0].mxu0
    %v1714 = vpop.f32.mrb[0].mxu0
    %1715 = vdwg.mxu0
    %1716 = vrot.lane.b32.xlu0 %v328, 112
    %v1717 = vpop.permute.xlu0 %1716
    %v1719 = vsel %vm625, %v1566, 0
    %v1722 = vsel %vm1576, %v1717, 0
    %1724 = vmatprep.subr.bf16.mxu0 0
    %1725 = vmatpush1.bf16.msra.mxu0 %v1722
    %1726 = vmatprep.subr.bf16.mxu0 0
    %1727 = vmatpush1.bf16.msra.mxu0 0
    %1728 = vmatprep.subr.bf16.mxu0 0
    %1729 = vmatpush1.bf16.msra.mxu0 0
    %1730 = vmatprep.subr.bf16.mxu0 0
    %1731 = vmatpush1.bf16.msra.mxu0 0
    %1732 = vmatprep.subr.bf16.mxu0 0
    %1733 = vmatpush1.bf16.msra.mxu0 0
    %1734 = vmatprep.subr.bf16.mxu0 0
    %1735 = vmatpush1.bf16.msra.mxu0 0
    %1736 = vmatprep.subr.bf16.mxu0 0
    %1737 = vmatpush1.bf16.msra.mxu0 0
    %1738 = vmatprep.subr.bf16.mxu0 0
    %1739 = vmatpush1.bf16.msra.mxu0 0
    %1740 = vmatprep.subr.bf16.mxu0 0
    %1741 = vmatpush1.bf16.msra.mxu0 0
    %1742 = vmatprep.subr.bf16.mxu0 0
    %1743 = vmatpush1.bf16.msra.mxu0 0
    %1744 = vmatprep.subr.bf16.mxu0 0
    %1745 = vmatpush1.bf16.msra.mxu0 0
    %1746 = vmatprep.subr.bf16.mxu0 0
    %1747 = vmatpush1.bf16.msra.mxu0 0
    %1748 = vmatprep.subr.bf16.mxu0 0
    %1749 = vmatpush1.bf16.msra.mxu0 0
    %1750 = vmatprep.subr.bf16.mxu0 0
    %1751 = vmatpush1.bf16.msra.mxu0 0
    %1752 = vmatprep.subr.bf16.mxu0 0
    %1753 = vmatpush1.bf16.msra.mxu0 0
    %1754 = vmatprep.subr.bf16.mxu0 0
    %1755 = vmatpush1.bf16.msra.mxu0 0
    %1756 = vmatprep.mubr.bf16.mxu0 0
    %1757 = vmatmul.mubr.bf16.gmra.mrb[0].mxu0 %v1719
    %v1758 = vpop.f32.mrb[0].mxu0
    %v1759 = vadd.f32 0.0, %v1758
    %v1760 = vpop.f32.mrb[0].mxu0
    %v1761 = vpop.f32.mrb[0].mxu0
    %v1762 = vpop.f32.mrb[0].mxu0
    %1763 = vdwg.mxu0
    %1764 = vrot.lane.b32.xlu0 %v329, 112
    %v1765 = vpop.permute.xlu0 %1764
    %v1767 = vsel %vm625, %v1567, 0
    %v1770 = vsel %vm1576, %v1765, 0
    %1772 = vmatprep.subr.bf16.mxu0 0
    %1773 = vmatpush1.bf16.msra.mxu0 %v1770
    %1774 = vmatprep.subr.bf16.mxu0 0
    %1775 = vmatpush1.bf16.msra.mxu0 0
    %1776 = vmatprep.subr.bf16.mxu0 0
    %1777 = vmatpush1.bf16.msra.mxu0 0
    %1778 = vmatprep.subr.bf16.mxu0 0
    %1779 = vmatpush1.bf16.msra.mxu0 0
    %1780 = vmatprep.subr.bf16.mxu0 0
    %1781 = vmatpush1.bf16.msra.mxu0 0
    %1782 = vmatprep.subr.bf16.mxu0 0
    %1783 = vmatpush1.bf16.msra.mxu0 0
    %1784 = vmatprep.subr.bf16.mxu0 0
    %1785 = vmatpush1.bf16.msra.mxu0 0
    %1786 = vmatprep.subr.bf16.mxu0 0
    %1787 = vmatpush1.bf16.msra.mxu0 0
    %1788 = vmatprep.subr.bf16.mxu0 0
    %1789 = vmatpush1.bf16.msra.mxu0 0
    %1790 = vmatprep.subr.bf16.mxu0 0
    %1791 = vmatpush1.bf16.msra.mxu0 0
    %1792 = vmatprep.subr.bf16.mxu0 0
    %1793 = vmatpush1.bf16.msra.mxu0 0
    %1794 = vmatprep.subr.bf16.mxu0 0
    %1795 = vmatpush1.bf16.msra.mxu0 0
    %1796 = vmatprep.subr.bf16.mxu0 0
    %1797 = vmatpush1.bf16.msra.mxu0 0
    %1798 = vmatprep.subr.bf16.mxu0 0
    %1799 = vmatpush1.bf16.msra.mxu0 0
    %1800 = vmatprep.subr.bf16.mxu0 0
    %1801 = vmatpush1.bf16.msra.mxu0 0
    %1802 = vmatprep.subr.bf16.mxu0 0
    %1803 = vmatpush1.bf16.msra.mxu0 0
    %1804 = vmatprep.mubr.bf16.mxu0 0
    %1805 = vmatmul.mubr.bf16.gmra.mrb[0].mxu0 %v1767
    %v1806 = vpop.f32.mrb[0].mxu0
    %v1807 = vadd.f32 0.0, %v1806
    %v1808 = vpop.f32.mrb[0].mxu0
    %v1809 = vpop.f32.mrb[0].mxu0
    %v1810 = vpop.f32.mrb[0].mxu0
    %1811 = vdwg.mxu0
    %1812 = vrot.lane.b32.xlu0 %v330, 112
    %v1813 = vpop.permute.xlu0 %1812
    %v1815 = vsel %vm625, %v1568, 0
    %v1818 = vsel %vm1576, %v1813, 0
    %1820 = vmatprep.subr.bf16.mxu0 0
    %1821 = vmatpush1.bf16.msra.mxu0 %v1818
    %1822 = vmatprep.subr.bf16.mxu0 0
    %1823 = vmatpush1.bf16.msra.mxu0 0
    %1824 = vmatprep.subr.bf16.mxu0 0
    %1825 = vmatpush1.bf16.msra.mxu0 0
    %1826 = vmatprep.subr.bf16.mxu0 0
    %1827 = vmatpush1.bf16.msra.mxu0 0
    %1828 = vmatprep.subr.bf16.mxu0 0
    %1829 = vmatpush1.bf16.msra.mxu0 0
    %1830 = vmatprep.subr.bf16.mxu0 0
    %1831 = vmatpush1.bf16.msra.mxu0 0
    %1832 = vmatprep.subr.bf16.mxu0 0
    %1833 = vmatpush1.bf16.msra.mxu0 0
    %1834 = vmatprep.subr.bf16.mxu0 0
    %1835 = vmatpush1.bf16.msra.mxu0 0
    %1836 = vmatprep.subr.bf16.mxu0 0
    %1837 = vmatpush1.bf16.msra.mxu0 0
    %1838 = vmatprep.subr.bf16.mxu0 0
    %1839 = vmatpush1.bf16.msra.mxu0 0
    %1840 = vmatprep.subr.bf16.mxu0 0
    %1841 = vmatpush1.bf16.msra.mxu0 0
    %1842 = vmatprep.subr.bf16.mxu0 0
    %1843 = vmatpush1.bf16.msra.mxu0 0
    %1844 = vmatprep.subr.bf16.mxu0 0
    %1845 = vmatpush1.bf16.msra.mxu0 0
    %1846 = vmatprep.subr.bf16.mxu0 0
    %1847 = vmatpush1.bf16.msra.mxu0 0
    %1848 = vmatprep.subr.bf16.mxu0 0
    %1849 = vmatpush1.bf16.msra.mxu0 0
    %1850 = vmatprep.subr.bf16.mxu0 0
    %1851 = vmatpush1.bf16.msra.mxu0 0
    %1852 = vmatprep.mubr.bf16.mxu0 0
    %1853 = vmatmul.mubr.bf16.gmra.mrb[0].mxu0 %v1815
    %v1854 = vpop.f32.mrb[0].mxu0
    %v1855 = vadd.f32 0.0, %v1854
    %v1856 = vpop.f32.mrb[0].mxu0
    %v1857 = vpop.f32.mrb[0].mxu0
    %v1858 = vpop.f32.mrb[0].mxu0
    %1859 = vdwg.mxu0
    %1860 = vrot.lane.b32.xlu0 %v331, 112
    %v1861 = vpop.permute.xlu0 %1860
    %v1863 = vsel %vm625, %v1569, 0
    %v1866 = vsel %vm1576, %v1861, 0
    %1868 = vmatprep.subr.bf16.mxu0 0
    %1869 = vmatpush1.bf16.msra.mxu0 %v1866
    %1870 = vmatprep.subr.bf16.mxu0 0
    %1871 = vmatpush1.bf16.msra.mxu0 0
    %1872 = vmatprep.subr.bf16.mxu0 0
    %1873 = vmatpush1.bf16.msra.mxu0 0
    %1874 = vmatprep.subr.bf16.mxu0 0
    %1875 = vmatpush1.bf16.msra.mxu0 0
    %1876 = vmatprep.subr.bf16.mxu0 0
    %1877 = vmatpush1.bf16.msra.mxu0 0
    %1878 = vmatprep.subr.bf16.mxu0 0
    %1879 = vmatpush1.bf16.msra.mxu0 0
    %1880 = vmatprep.subr.bf16.mxu0 0
    %1881 = vmatpush1.bf16.msra.mxu0 0
    %1882 = vmatprep.subr.bf16.mxu0 0
    %1883 = vmatpush1.bf16.msra.mxu0 0
    %1884 = vmatprep.subr.bf16.mxu0 0
    %1885 = vmatpush1.bf16.msra.mxu0 0
    %1886 = vmatprep.subr.bf16.mxu0 0
    %1887 = vmatpush1.bf16.msra.mxu0 0
    %1888 = vmatprep.subr.bf16.mxu0 0
    %1889 = vmatpush1.bf16.msra.mxu0 0
    %1890 = vmatprep.subr.bf16.mxu0 0
    %1891 = vmatpush1.bf16.msra.mxu0 0
    %1892 = vmatprep.subr.bf16.mxu0 0
    %1893 = vmatpush1.bf16.msra.mxu0 0
    %1894 = vmatprep.subr.bf16.mxu0 0
    %1895 = vmatpush1.bf16.msra.mxu0 0
    %1896 = vmatprep.subr.bf16.mxu0 0
    %1897 = vmatpush1.bf16.msra.mxu0 0
    %1898 = vmatprep.subr.bf16.mxu0 0
    %1899 = vmatpush1.bf16.msra.mxu0 0
    %1900 = vmatprep.mubr.bf16.mxu0 0
    %1901 = vmatmul.mubr.bf16.gmra.mrb[0].mxu0 %v1863
    %v1902 = vpop.f32.mrb[0].mxu0
    %v1903 = vadd.f32 0.0, %v1902
    %v1904 = vpop.f32.mrb[0].mxu0
    %v1905 = vpop.f32.mrb[0].mxu0
    %v1906 = vpop.f32.mrb[0].mxu0
    %1907 = vdwg.mxu0
    %1908 = vrot.lane.b32.xlu0 %v332, 112
    %v1909 = vpop.permute.xlu0 %1908
    %v1911 = vsel %vm625, %v1570, 0
    %v1914 = vsel %vm1576, %v1909, 0
    %1916 = vmatprep.subr.bf16.mxu0 0
    %1917 = vmatpush1.bf16.msra.mxu0 %v1914
    %1918 = vmatprep.subr.bf16.mxu0 0
    %1919 = vmatpush1.bf16.msra.mxu0 0
    %1920 = vmatprep.subr.bf16.mxu0 0
    %1921 = vmatpush1.bf16.msra.mxu0 0
    %1922 = vmatprep.subr.bf16.mxu0 0
    %1923 = vmatpush1.bf16.msra.mxu0 0
    %1924 = vmatprep.subr.bf16.mxu0 0
    %1925 = vmatpush1.bf16.msra.mxu0 0
    %1926 = vmatprep.subr.bf16.mxu0 0
    %1927 = vmatpush1.bf16.msra.mxu0 0
    %1928 = vmatprep.subr.bf16.mxu0 0
    %1929 = vmatpush1.bf16.msra.mxu0 0
    %1930 = vmatprep.subr.bf16.mxu0 0
    %1931 = vmatpush1.bf16.msra.mxu0 0
    %1932 = vmatprep.subr.bf16.mxu0 0
    %1933 = vmatpush1.bf16.msra.mxu0 0
    %1934 = vmatprep.subr.bf16.mxu0 0
    %1935 = vmatpush1.bf16.msra.mxu0 0
    %1936 = vmatprep.subr.bf16.mxu0 0
    %1937 = vmatpush1.bf16.msra.mxu0 0
    %1938 = vmatprep.subr.bf16.mxu0 0
    %1939 = vmatpush1.bf16.msra.mxu0 0
    %1940 = vmatprep.subr.bf16.mxu0 0
    %1941 = vmatpush1.bf16.msra.mxu0 0
    %1942 = vmatprep.subr.bf16.mxu0 0
    %1943 = vmatpush1.bf16.msra.mxu0 0
    %1944 = vmatprep.subr.bf16.mxu0 0
    %1945 = vmatpush1.bf16.msra.mxu0 0
    %1946 = vmatprep.subr.bf16.mxu0 0
    %1947 = vmatpush1.bf16.msra.mxu0 0
    %1948 = vmatprep.mubr.bf16.mxu0 0
    %1949 = vmatmul.mubr.bf16.gmra.mrb[0].mxu0 %v1911
    %v1950 = vpop.f32.mrb[0].mxu0
    %v1951 = vadd.f32 0.0, %v1950
    %v1952 = vpop.f32.mrb[0].mxu0
    %v1953 = vpop.f32.mrb[0].mxu0
    %v1954 = vpop.f32.mrb[0].mxu0
    %1955 = vdwg.mxu0
    %1956 = vrot.lane.b32.xlu0 %v617, 120
    %v1957 = vpop.permute.xlu0 %1956
    %v1959 = vsel %vm625, %v1555, 0
    %v1962 = vsel %vm1576, %v1957, 0
    %1964 = vmatprep.subr.bf16.mxu0 0
    %1965 = vmatpush1.bf16.msra.mxu0 %v1962
    %1966 = vmatprep.subr.bf16.mxu0 0
    %1967 = vmatpush1.bf16.msra.mxu0 0
    %1968 = vmatprep.subr.bf16.mxu0 0
    %1969 = vmatpush1.bf16.msra.mxu0 0
    %1970 = vmatprep.subr.bf16.mxu0 0
    %1971 = vmatpush1.bf16.msra.mxu0 0
    %1972 = vmatprep.subr.bf16.mxu0 0
    %1973 = vmatpush1.bf16.msra.mxu0 0
    %1974 = vmatprep.subr.bf16.mxu0 0
    %1975 = vmatpush1.bf16.msra.mxu0 0
    %1976 = vmatprep.subr.bf16.mxu0 0
    %1977 = vmatpush1.bf16.msra.mxu0 0
    %1978 = vmatprep.subr.bf16.mxu0 0
    %1979 = vmatpush1.bf16.msra.mxu0 0
    %1980 = vmatprep.subr.bf16.mxu0 0
    %1981 = vmatpush1.bf16.msra.mxu0 0
    %1982 = vmatprep.subr.bf16.mxu0 0
    %1983 = vmatpush1.bf16.msra.mxu0 0
    %1984 = vmatprep.subr.bf16.mxu0 0
    %1985 = vmatpush1.bf16.msra.mxu0 0
    %1986 = vmatprep.subr.bf16.mxu0 0
    %1987 = vmatpush1.bf16.msra.mxu0 0
    %1988 = vmatprep.subr.bf16.mxu0 0
    %1989 = vmatpush1.bf16.msra.mxu0 0
    %1990 = vmatprep.subr.bf16.mxu0 0
    %1991 = vmatpush1.bf16.msra.mxu0 0
    %1992 = vmatprep.subr.bf16.mxu0 0
    %1993 = vmatpush1.bf16.msra.mxu0 0
    %1994 = vmatprep.subr.bf16.mxu0 0
    %1995 = vmatpush1.bf16.msra.mxu0 0
    %1996 = vmatprep.mubr.bf16.mxu0 0
    %1997 = vmatmul.mubr.bf16.gmra.mrb[0].mxu0 %v1959
    %v1998 = vpop.f32.mrb[0].mxu0
    %v1999 = vadd.f32 %v1615, %v1998
    %v2000 = vpop.f32.mrb[0].mxu0
    %v2001 = vpop.f32.mrb[0].mxu0
    %v2002 = vpop.f32.mrb[0].mxu0
    %2003 = vdwg.mxu0
    %2004 = vrot.lane.b32.xlu0 %v618, 120
    %v2005 = vpop.permute.xlu0 %2004
    %v2007 = vsel %vm625, %v1556, 0
    %v2010 = vsel %vm1576, %v2005, 0
    %2012 = vmatprep.subr.bf16.mxu0 0
    %2013 = vmatpush1.bf16.msra.mxu0 %v2010
    %2014 = vmatprep.subr.bf16.mxu0 0
    %2015 = vmatpush1.bf16.msra.mxu0 0
    %2016 = vmatprep.subr.bf16.mxu0 0
    %2017 = vmatpush1.bf16.msra.mxu0 0
    %2018 = vmatprep.subr.bf16.mxu0 0
    %2019 = vmatpush1.bf16.msra.mxu0 0
    %2020 = vmatprep.subr.bf16.mxu0 0
    %2021 = vmatpush1.bf16.msra.mxu0 0
    %2022 = vmatprep.subr.bf16.mxu0 0
    %2023 = vmatpush1.bf16.msra.mxu0 0
    %2024 = vmatprep.subr.bf16.mxu0 0
    %2025 = vmatpush1.bf16.msra.mxu0 0
    %2026 = vmatprep.subr.bf16.mxu0 0
    %2027 = vmatpush1.bf16.msra.mxu0 0
    %2028 = vmatprep.subr.bf16.mxu0 0
    %2029 = vmatpush1.bf16.msra.mxu0 0
    %2030 = vmatprep.subr.bf16.mxu0 0
    %2031 = vmatpush1.bf16.msra.mxu0 0
    %2032 = vmatprep.subr.bf16.mxu0 0
    %2033 = vmatpush1.bf16.msra.mxu0 0
    %2034 = vmatprep.subr.bf16.mxu0 0
    %2035 = vmatpush1.bf16.msra.mxu0 0
    %2036 = vmatprep.subr.bf16.mxu0 0
    %2037 = vmatpush1.bf16.msra.mxu0 0
    %2038 = vmatprep.subr.bf16.mxu0 0
    %2039 = vmatpush1.bf16.msra.mxu0 0
    %2040 = vmatprep.subr.bf16.mxu0 0
    %2041 = vmatpush1.bf16.msra.mxu0 0
    %2042 = vmatprep.subr.bf16.mxu0 0
    %2043 = vmatpush1.bf16.msra.mxu0 0
    %2044 = vmatprep.mubr.bf16.mxu0 0
    %2045 = vmatmul.mubr.bf16.gmra.mrb[0].mxu0 %v2007
    %v2046 = vpop.f32.mrb[0].mxu0
    %v2047 = vadd.f32 %v1663, %v2046
    %v2048 = vpop.f32.mrb[0].mxu0
    %v2049 = vpop.f32.mrb[0].mxu0
    %v2050 = vpop.f32.mrb[0].mxu0
    %2051 = vdwg.mxu0
    %2052 = vrot.lane.b32.xlu0 %v619, 120
    %v2053 = vpop.permute.xlu0 %2052
    %v2055 = vsel %vm625, %v1557, 0
    %v2058 = vsel %vm1576, %v2053, 0
    %2060 = vmatprep.subr.bf16.mxu0 0
    %2061 = vmatpush1.bf16.msra.mxu0 %v2058
    %2062 = vmatprep.subr.bf16.mxu0 0
    %2063 = vmatpush1.bf16.msra.mxu0 0
    %2064 = vmatprep.subr.bf16.mxu0 0
    %2065 = vmatpush1.bf16.msra.mxu0 0
    %2066 = vmatprep.subr.bf16.mxu0 0
    %2067 = vmatpush1.bf16.msra.mxu0 0
    %2068 = vmatprep.subr.bf16.mxu0 0
    %2069 = vmatpush1.bf16.msra.mxu0 0
    %2070 = vmatprep.subr.bf16.mxu0 0
    %2071 = vmatpush1.bf16.msra.mxu0 0
    %2072 = vmatprep.subr.bf16.mxu0 0
    %2073 = vmatpush1.bf16.msra.mxu0 0
    %2074 = vmatprep.subr.bf16.mxu0 0
    %2075 = vmatpush1.bf16.msra.mxu0 0
    %2076 = vmatprep.subr.bf16.mxu0 0
    %2077 = vmatpush1.bf16.msra.mxu0 0
    %2078 = vmatprep.subr.bf16.mxu0 0
    %2079 = vmatpush1.bf16.msra.mxu0 0
    %2080 = vmatprep.subr.bf16.mxu0 0
    %2081 = vmatpush1.bf16.msra.mxu0 0
    %2082 = vmatprep.subr.bf16.mxu0 0
    %2083 = vmatpush1.bf16.msra.mxu0 0
    %2084 = vmatprep.subr.bf16.mxu0 0
    %2085 = vmatpush1.bf16.msra.mxu0 0
    %2086 = vmatprep.subr.bf16.mxu0 0
    %2087 = vmatpush1.bf16.msra.mxu0 0
    %2088 = vmatprep.subr.bf16.mxu0 0
    %2089 = vmatpush1.bf16.msra.mxu0 0
    %2090 = vmatprep.subr.bf16.mxu0 0
    %2091 = vmatpush1.bf16.msra.mxu0 0
    %2092 = vmatprep.mubr.bf16.mxu0 0
    %2093 = vmatmul.mubr.bf16.gmra.mrb[0].mxu0 %v2055
    %v2094 = vpop.f32.mrb[0].mxu0
    %v2095 = vadd.f32 %v1711, %v2094
    %v2096 = vpop.f32.mrb[0].mxu0
    %v2097 = vpop.f32.mrb[0].mxu0
    %v2098 = vpop.f32.mrb[0].mxu0
    %2099 = vdwg.mxu0
    %2100 = vrot.lane.b32.xlu0 %v620, 120
    %v2101 = vpop.permute.xlu0 %2100
    %v2103 = vsel %vm625, %v1558, 0
    %v2106 = vsel %vm1576, %v2101, 0
    %2108 = vmatprep.subr.bf16.mxu0 0
    %2109 = vmatpush1.bf16.msra.mxu0 %v2106
    %2110 = vmatprep.subr.bf16.mxu0 0
    %2111 = vmatpush1.bf16.msra.mxu0 0
    %2112 = vmatprep.subr.bf16.mxu0 0
    %2113 = vmatpush1.bf16.msra.mxu0 0
    %2114 = vmatprep.subr.bf16.mxu0 0
    %2115 = vmatpush1.bf16.msra.mxu0 0
    %2116 = vmatprep.subr.bf16.mxu0 0
    %2117 = vmatpush1.bf16.msra.mxu0 0
    %2118 = vmatprep.subr.bf16.mxu0 0
    %2119 = vmatpush1.bf16.msra.mxu0 0
    %2120 = vmatprep.subr.bf16.mxu0 0
    %2121 = vmatpush1.bf16.msra.mxu0 0
    %2122 = vmatprep.subr.bf16.mxu0 0
    %2123 = vmatpush1.bf16.msra.mxu0 0
    %2124 = vmatprep.subr.bf16.mxu0 0
    %2125 = vmatpush1.bf16.msra.mxu0 0
    %2126 = vmatprep.subr.bf16.mxu0 0
    %2127 = vmatpush1.bf16.msra.mxu0 0
    %2128 = vmatprep.subr.bf16.mxu0 0
    %2129 = vmatpush1.bf16.msra.mxu0 0
    %2130 = vmatprep.subr.bf16.mxu0 0
    %2131 = vmatpush1.bf16.msra.mxu0 0
    %2132 = vmatprep.subr.bf16.mxu0 0
    %2133 = vmatpush1.bf16.msra.mxu0 0
    %2134 = vmatprep.subr.bf16.mxu0 0
    %2135 = vmatpush1.bf16.msra.mxu0 0
    %2136 = vmatprep.subr.bf16.mxu0 0
    %2137 = vmatpush1.bf16.msra.mxu0 0
    %2138 = vmatprep.subr.bf16.mxu0 0
    %2139 = vmatpush1.bf16.msra.mxu0 0
    %2140 = vmatprep.mubr.bf16.mxu0 0
    %2141 = vmatmul.mubr.bf16.gmra.mrb[0].mxu0 %v2103
    %v2142 = vpop.f32.mrb[0].mxu0
    %v2143 = vadd.f32 %v1759, %v2142
    %v2144 = vpop.f32.mrb[0].mxu0
    %v2145 = vpop.f32.mrb[0].mxu0
    %v2146 = vpop.f32.mrb[0].mxu0
    %2147 = vdwg.mxu0
    %2148 = vrot.lane.b32.xlu0 %v621, 120
    %v2149 = vpop.permute.xlu0 %2148
    %v2151 = vsel %vm625, %v1559, 0
    %v2154 = vsel %vm1576, %v2149, 0
    %2156 = vmatprep.subr.bf16.mxu0 0
    %2157 = vmatpush1.bf16.msra.mxu0 %v2154
    %2158 = vmatprep.subr.bf16.mxu0 0
    %2159 = vmatpush1.bf16.msra.mxu0 0
    %2160 = vmatprep.subr.bf16.mxu0 0
    %2161 = vmatpush1.bf16.msra.mxu0 0
    %2162 = vmatprep.subr.bf16.mxu0 0
    %2163 = vmatpush1.bf16.msra.mxu0 0
    %2164 = vmatprep.subr.bf16.mxu0 0
    %2165 = vmatpush1.bf16.msra.mxu0 0
    %2166 = vmatprep.subr.bf16.mxu0 0
    %2167 = vmatpush1.bf16.msra.mxu0 0
    %2168 = vmatprep.subr.bf16.mxu0 0
    %2169 = vmatpush1.bf16.msra.mxu0 0
    %2170 = vmatprep.subr.bf16.mxu0 0
    %2171 = vmatpush1.bf16.msra.mxu0 0
    %2172 = vmatprep.subr.bf16.mxu0 0
    %2173 = vmatpush1.bf16.msra.mxu0 0
    %2174 = vmatprep.subr.bf16.mxu0 0
    %2175 = vmatpush1.bf16.msra.mxu0 0
    %2176 = vmatprep.subr.bf16.mxu0 0
    %2177 = vmatpush1.bf16.msra.mxu0 0
    %2178 = vmatprep.subr.bf16.mxu0 0
    %2179 = vmatpush1.bf16.msra.mxu0 0
    %2180 = vmatprep.subr.bf16.mxu0 0
    %2181 = vmatpush1.bf16.msra.mxu0 0
    %2182 = vmatprep.subr.bf16.mxu0 0
    %2183 = vmatpush1.bf16.msra.mxu0 0
    %2184 = vmatprep.subr.bf16.mxu0 0
    %2185 = vmatpush1.bf16.msra.mxu0 0
    %2186 = vmatprep.subr.bf16.mxu0 0
    %2187 = vmatpush1.bf16.msra.mxu0 0
    %2188 = vmatprep.mubr.bf16.mxu0 0
    %2189 = vmatmul.mubr.bf16.gmra.mrb[0].mxu0 %v2151
    %v2190 = vpop.f32.mrb[0].mxu0
    %v2191 = vadd.f32 %v1807, %v2190
    %v2192 = vpop.f32.mrb[0].mxu0
    %v2193 = vpop.f32.mrb[0].mxu0
    %v2194 = vpop.f32.mrb[0].mxu0
    %2195 = vdwg.mxu0
    %2196 = vrot.lane.b32.xlu0 %v622, 120
    %v2197 = vpop.permute.xlu0 %2196
    %v2199 = vsel %vm625, %v1560, 0
    %v2202 = vsel %vm1576, %v2197, 0
    %2204 = vmatprep.subr.bf16.mxu0 0
    %2205 = vmatpush1.bf16.msra.mxu0 %v2202
    %2206 = vmatprep.subr.bf16.mxu0 0
    %2207 = vmatpush1.bf16.msra.mxu0 0
    %2208 = vmatprep.subr.bf16.mxu0 0
    %2209 = vmatpush1.bf16.msra.mxu0 0
    %2210 = vmatprep.subr.bf16.mxu0 0
    %2211 = vmatpush1.bf16.msra.mxu0 0
    %2212 = vmatprep.subr.bf16.mxu0 0
    %2213 = vmatpush1.bf16.msra.mxu0 0
    %2214 = vmatprep.subr.bf16.mxu0 0
    %2215 = vmatpush1.bf16.msra.mxu0 0
    %2216 = vmatprep.subr.bf16.mxu0 0
    %2217 = vmatpush1.bf16.msra.mxu0 0
    %2218 = vmatprep.subr.bf16.mxu0 0
    %2219 = vmatpush1.bf16.msra.mxu0 0
    %2220 = vmatprep.subr.bf16.mxu0 0
    %2221 = vmatpush1.bf16.msra.mxu0 0
    %2222 = vmatprep.subr.bf16.mxu0 0
    %2223 = vmatpush1.bf16.msra.mxu0 0
    %2224 = vmatprep.subr.bf16.mxu0 0
    %2225 = vmatpush1.bf16.msra.mxu0 0
    %2226 = vmatprep.subr.bf16.mxu0 0
    %2227 = vmatpush1.bf16.msra.mxu0 0
    %2228 = vmatprep.subr.bf16.mxu0 0
    %2229 = vmatpush1.bf16.msra.mxu0 0
    %2230 = vmatprep.subr.bf16.mxu0 0
    %2231 = vmatpush1.bf16.msra.mxu0 0
    %2232 = vmatprep.subr.bf16.mxu0 0
    %2233 = vmatpush1.bf16.msra.mxu0 0
    %2234 = vmatprep.subr.bf16.mxu0 0
    %2235 = vmatpush1.bf16.msra.mxu0 0
    %2236 = vmatprep.mubr.bf16.mxu0 0
    %2237 = vmatmul.mubr.bf16.gmra.mrb[0].mxu0 %v2199
    %v2238 = vpop.f32.mrb[0].mxu0
    %v2239 = vadd.f32 %v1855, %v2238
    %v2240 = vpop.f32.mrb[0].mxu0
    %v2241 = vpop.f32.mrb[0].mxu0
    %v2242 = vpop.f32.mrb[0].mxu0
    %2243 = vdwg.mxu0
    %2244 = vrot.lane.b32.xlu0 %v623, 120
    %v2245 = vpop.permute.xlu0 %2244
    %v2247 = vsel %vm625, %v1561, 0
    %v2250 = vsel %vm1576, %v2245, 0
    %2252 = vmatprep.subr.bf16.mxu0 0
    %2253 = vmatpush1.bf16.msra.mxu0 %v2250
    %2254 = vmatprep.subr.bf16.mxu0 0
    %2255 = vmatpush1.bf16.msra.mxu0 0
    %2256 = vmatprep.subr.bf16.mxu0 0
    %2257 = vmatpush1.bf16.msra.mxu0 0
    %2258 = vmatprep.subr.bf16.mxu0 0
    %2259 = vmatpush1.bf16.msra.mxu0 0
    %2260 = vmatprep.subr.bf16.mxu0 0
    %2261 = vmatpush1.bf16.msra.mxu0 0
    %2262 = vmatprep.subr.bf16.mxu0 0
    %2263 = vmatpush1.bf16.msra.mxu0 0
    %2264 = vmatprep.subr.bf16.mxu0 0
    %2265 = vmatpush1.bf16.msra.mxu0 0
    %2266 = vmatprep.subr.bf16.mxu0 0
    %2267 = vmatpush1.bf16.msra.mxu0 0
    %2268 = vmatprep.subr.bf16.mxu0 0
    %2269 = vmatpush1.bf16.msra.mxu0 0
    %2270 = vmatprep.subr.bf16.mxu0 0
    %2271 = vmatpush1.bf16.msra.mxu0 0
    %2272 = vmatprep.subr.bf16.mxu0 0
    %2273 = vmatpush1.bf16.msra.mxu0 0
    %2274 = vmatprep.subr.bf16.mxu0 0
    %2275 = vmatpush1.bf16.msra.mxu0 0
    %2276 = vmatprep.subr.bf16.mxu0 0
    %2277 = vmatpush1.bf16.msra.mxu0 0
    %2278 = vmatprep.subr.bf16.mxu0 0
    %2279 = vmatpush1.bf16.msra.mxu0 0
    %2280 = vmatprep.subr.bf16.mxu0 0
    %2281 = vmatpush1.bf16.msra.mxu0 0
    %2282 = vmatprep.subr.bf16.mxu0 0
    %2283 = vmatpush1.bf16.msra.mxu0 0
    %2284 = vmatprep.mubr.bf16.mxu0 0
    %2285 = vmatmul.mubr.bf16.gmra.mrb[0].mxu0 %v2247
    %v2286 = vpop.f32.mrb[0].mxu0
    %v2287 = vadd.f32 %v1903, %v2286
    %v2288 = vpop.f32.mrb[0].mxu0
    %v2289 = vpop.f32.mrb[0].mxu0
    %v2290 = vpop.f32.mrb[0].mxu0
    %2291 = vdwg.mxu0
    %2292 = vrot.lane.b32.xlu0 %v624, 120
    %v2293 = vpop.permute.xlu0 %2292
    %v2295 = vsel %vm625, %v1562, 0
    %v2298 = vsel %vm1576, %v2293, 0
    %2300 = vmatprep.subr.bf16.mxu0 0
    %2301 = vmatpush1.bf16.msra.mxu0 %v2298
    %2302 = vmatprep.subr.bf16.mxu0 0
    %2303 = vmatpush1.bf16.msra.mxu0 0
    %2304 = vmatprep.subr.bf16.mxu0 0
    %2305 = vmatpush1.bf16.msra.mxu0 0
    %2306 = vmatprep.subr.bf16.mxu0 0
    %2307 = vmatpush1.bf16.msra.mxu0 0
    %2308 = vmatprep.subr.bf16.mxu0 0
    %2309 = vmatpush1.bf16.msra.mxu0 0
    %2310 = vmatprep.subr.bf16.mxu0 0
    %2311 = vmatpush1.bf16.msra.mxu0 0
    %2312 = vmatprep.subr.bf16.mxu0 0
    %2313 = vmatpush1.bf16.msra.mxu0 0
    %2314 = vmatprep.subr.bf16.mxu0 0
    %2315 = vmatpush1.bf16.msra.mxu0 0
    %2316 = vmatprep.subr.bf16.mxu0 0
    %2317 = vmatpush1.bf16.msra.mxu0 0
    %2318 = vmatprep.subr.bf16.mxu0 0
    %2319 = vmatpush1.bf16.msra.mxu0 0
    %2320 = vmatprep.subr.bf16.mxu0 0
    %2321 = vmatpush1.bf16.msra.mxu0 0
    %2322 = vmatprep.subr.bf16.mxu0 0
    %2323 = vmatpush1.bf16.msra.mxu0 0
    %2324 = vmatprep.subr.bf16.mxu0 0
    %2325 = vmatpush1.bf16.msra.mxu0 0
    %2326 = vmatprep.subr.bf16.mxu0 0
    %2327 = vmatpush1.bf16.msra.mxu0 0
    %2328 = vmatprep.subr.bf16.mxu0 0
    %2329 = vmatpush1.bf16.msra.mxu0 0
    %2330 = vmatprep.subr.bf16.mxu0 0
    %2331 = vmatpush1.bf16.msra.mxu0 0
    %2332 = vmatprep.mubr.bf16.mxu0 0
    %2333 = vmatmul.mubr.bf16.gmra.mrb[0].mxu0 %v2295
    %v2334 = vpop.f32.mrb[0].mxu0
    %v2335 = vadd.f32 %v1951, %v2334
    %v2336 = vpop.f32.mrb[0].mxu0
    %v2337 = vpop.f32.mrb[0].mxu0
    %v2338 = vpop.f32.mrb[0].mxu0
    %2339 = vdwg.mxu0
    %v2340 = vpack.c.bf16 %v1999, %v1999
    %v2341 = vpack.c.bf16 %v2047, %v2047
    %v2342 = vpack.c.bf16 %v2095, %v2095
    %v2343 = vpack.c.bf16 %v2143, %v2143
    %v2344 = vpack.c.bf16 %v2191, %v2191
    %v2345 = vpack.c.bf16 %v2239, %v2239
    %v2346 = vpack.c.bf16 %v2287, %v2287
    %v2347 = vpack.c.bf16 %v2335, %v2335
    %v2348 = vld [vmem:[%s4] sm:$0xf]
    %v2349 = vld [vmem:[%s4 + $0x4] sm:$0xf]
    %v2350 = vld [vmem:[%s4 + $0x8] sm:$0xf]
    %v2351 = vld [vmem:[%s4 + $0xc] sm:$0xf]
    %v2354 = vunpack.c.l.b16 %v2340
    %v2355 = vunpack.c.l.b16 %v2341
    %v2356 = vpack.c.b16 %v2355, %v2354
    %v2358 = vsel %vm625, %v2356, 0
    %v2361 = vsel %vm1576, %v2348, 0
    %2363 = vmatprep.subr.bf16.mxu0 0
    %2364 = vmatpush1.bf16.msra.mxu0 %v2361
    %2365 = vmatprep.subr.bf16.mxu0 0
    %2366 = vmatpush1.bf16.msra.mxu0 0
    %2367 = vmatprep.subr.bf16.mxu0 0
    %2368 = vmatpush1.bf16.msra.mxu0 0
    %2369 = vmatprep.subr.bf16.mxu0 0
    %2370 = vmatpush1.bf16.msra.mxu0 0
    %2371 = vmatprep.subr.bf16.mxu0 0
    %2372 = vmatpush1.bf16.msra.mxu0 0
    %2373 = vmatprep.subr.bf16.mxu0 0
    %2374 = vmatpush1.bf16.msra.mxu0 0
    %2375 = vmatprep.subr.bf16.mxu0 0
    %2376 = vmatpush1.bf16.msra.mxu0 0
    %2377 = vmatprep.subr.bf16.mxu0 0
    %2378 = vmatpush1.bf16.msra.mxu0 0
    %2379 = vmatprep.subr.bf16.mxu0 0
    %2380 = vmatpush1.bf16.msra.mxu0 0
    %2381 = vmatprep.subr.bf16.mxu0 0
    %2382 = vmatpush1.bf16.msra.mxu0 0
    %2383 = vmatprep.subr.bf16.mxu0 0
    %2384 = vmatpush1.bf16.msra.mxu0 0
    %2385 = vmatprep.subr.bf16.mxu0 0
    %2386 = vmatpush1.bf16.msra.mxu0 0
    %2387 = vmatprep.subr.bf16.mxu0 0
    %2388 = vmatpush1.bf16.msra.mxu0 0
    %2389 = vmatprep.subr.bf16.mxu0 0
    %2390 = vmatpush1.bf16.msra.mxu0 0
    %2391 = vmatprep.subr.bf16.mxu0 0
    %2392 = vmatpush1.bf16.msra.mxu0 0
    %2393 = vmatprep.subr.bf16.mxu0 0
    %2394 = vmatpush1.bf16.msra.mxu0 0
    %2395 = vmatprep.mubr.bf16.mxu0 0
    %2396 = vmatmul.mubr.bf16.gmra.mrb[0].mxu0 %v2358
    %v2397 = vpop.f32.mrb[0].mxu0
    %v2398 = vadd.f32 0.0, %v2397
    %v2399 = vpop.f32.mrb[0].mxu0
    %v2400 = vpop.f32.mrb[0].mxu0
    %v2401 = vadd.f32 0.0, %v2400
    %v2402 = vpop.f32.mrb[0].mxu0
    %2403 = vdwg.mxu0
    %v2406 = vunpack.c.l.b16 %v2342
    %v2407 = vunpack.c.l.b16 %v2343
    %v2408 = vpack.c.b16 %v2407, %v2406
    %v2410 = vsel %vm625, %v2408, 0
    %v2413 = vsel %vm1576, %v2349, 0
    %2415 = vmatprep.subr.bf16.mxu0 0
    %2416 = vmatpush1.bf16.msra.mxu0 %v2413
    %2417 = vmatprep.subr.bf16.mxu0 0
    %2418 = vmatpush1.bf16.msra.mxu0 0
    %2419 = vmatprep.subr.bf16.mxu0 0
    %2420 = vmatpush1.bf16.msra.mxu0 0
    %2421 = vmatprep.subr.bf16.mxu0 0
    %2422 = vmatpush1.bf16.msra.mxu0 0
    %2423 = vmatprep.subr.bf16.mxu0 0
    %2424 = vmatpush1.bf16.msra.mxu0 0
    %2425 = vmatprep.subr.bf16.mxu0 0
    %2426 = vmatpush1.bf16.msra.mxu0 0
    %2427 = vmatprep.subr.bf16.mxu0 0
    %2428 = vmatpush1.bf16.msra.mxu0 0
    %2429 = vmatprep.subr.bf16.mxu0 0
    %2430 = vmatpush1.bf16.msra.mxu0 0
    %2431 = vmatprep.subr.bf16.mxu0 0
    %2432 = vmatpush1.bf16.msra.mxu0 0
    %2433 = vmatprep.subr.bf16.mxu0 0
    %2434 = vmatpush1.bf16.msra.mxu0 0
    %2435 = vmatprep.subr.bf16.mxu0 0
    %2436 = vmatpush1.bf16.msra.mxu0 0
    %2437 = vmatprep.subr.bf16.mxu0 0
    %2438 = vmatpush1.bf16.msra.mxu0 0
    %2439 = vmatprep.subr.bf16.mxu0 0
    %2440 = vmatpush1.bf16.msra.mxu0 0
    %2441 = vmatprep.subr.bf16.mxu0 0
    %2442 = vmatpush1.bf16.msra.mxu0 0
    %2443 = vmatprep.subr.bf16.mxu0 0
    %2444 = vmatpush1.bf16.msra.mxu0 0
    %2445 = vmatprep.subr.bf16.mxu0 0
    %2446 = vmatpush1.bf16.msra.mxu0 0
    %2447 = vmatprep.mubr.bf16.mxu0 0
    %2448 = vmatmul.mubr.bf16.gmra.mrb[0].mxu0 %v2410
    %v2449 = vpop.f32.mrb[0].mxu0
    %v2450 = vadd.f32 0.0, %v2449
    %v2451 = vpop.f32.mrb[0].mxu0
    %v2452 = vpop.f32.mrb[0].mxu0
    %v2453 = vadd.f32 0.0, %v2452
    %v2454 = vpop.f32.mrb[0].mxu0
    %2455 = vdwg.mxu0
    %v2458 = vunpack.c.l.b16 %v2344
    %v2459 = vunpack.c.l.b16 %v2345
    %v2460 = vpack.c.b16 %v2459, %v2458
    %v2462 = vsel %vm625, %v2460, 0
    %v2465 = vsel %vm1576, %v2350, 0
    %2467 = vmatprep.subr.bf16.mxu0 0
    %2468 = vmatpush1.bf16.msra.mxu0 %v2465
    %2469 = vmatprep.subr.bf16.mxu0 0
    %2470 = vmatpush1.bf16.msra.mxu0 0
    %2471 = vmatprep.subr.bf16.mxu0 0
    %2472 = vmatpush1.bf16.msra.mxu0 0
    %2473 = vmatprep.subr.bf16.mxu0 0
    %2474 = vmatpush1.bf16.msra.mxu0 0
    %2475 = vmatprep.subr.bf16.mxu0 0
    %2476 = vmatpush1.bf16.msra.mxu0 0
    %2477 = vmatprep.subr.bf16.mxu0 0
    %2478 = vmatpush1.bf16.msra.mxu0 0
    %2479 = vmatprep.subr.bf16.mxu0 0
    %2480 = vmatpush1.bf16.msra.mxu0 0
    %2481 = vmatprep.subr.bf16.mxu0 0
    %2482 = vmatpush1.bf16.msra.mxu0 0
    %2483 = vmatprep.subr.bf16.mxu0 0
    %2484 = vmatpush1.bf16.msra.mxu0 0
    %2485 = vmatprep.subr.bf16.mxu0 0
    %2486 = vmatpush1.bf16.msra.mxu0 0
    %2487 = vmatprep.subr.bf16.mxu0 0
    %2488 = vmatpush1.bf16.msra.mxu0 0
    %2489 = vmatprep.subr.bf16.mxu0 0
    %2490 = vmatpush1.bf16.msra.mxu0 0
    %2491 = vmatprep.subr.bf16.mxu0 0
    %2492 = vmatpush1.bf16.msra.mxu0 0
    %2493 = vmatprep.subr.bf16.mxu0 0
    %2494 = vmatpush1.bf16.msra.mxu0 0
    %2495 = vmatprep.subr.bf16.mxu0 0
    %2496 = vmatpush1.bf16.msra.mxu0 0
    %2497 = vmatprep.subr.bf16.mxu0 0
    %2498 = vmatpush1.bf16.msra.mxu0 0
    %2499 = vmatprep.mubr.bf16.mxu0 0
    %2500 = vmatmul.mubr.bf16.gmra.mrb[0].mxu0 %v2462
    %v2501 = vpop.f32.mrb[0].mxu0
    %v2502 = vadd.f32 0.0, %v2501
    %v2503 = vpop.f32.mrb[0].mxu0
    %v2504 = vpop.f32.mrb[0].mxu0
    %v2505 = vadd.f32 0.0, %v2504
    %v2506 = vpop.f32.mrb[0].mxu0
    %2507 = vdwg.mxu0
    %v2510 = vunpack.c.l.b16 %v2346
    %v2511 = vunpack.c.l.b16 %v2347
    %v2512 = vpack.c.b16 %v2511, %v2510
    %v2514 = vsel %vm625, %v2512, 0
    %v2517 = vsel %vm1576, %v2351, 0
    %2519 = vmatprep.subr.bf16.mxu0 0
    %2520 = vmatpush1.bf16.msra.mxu0 %v2517
    %2521 = vmatprep.subr.bf16.mxu0 0
    %2522 = vmatpush1.bf16.msra.mxu0 0
    %2523 = vmatprep.subr.bf16.mxu0 0
    %2524 = vmatpush1.bf16.msra.mxu0 0
    %2525 = vmatprep.subr.bf16.mxu0 0
    %2526 = vmatpush1.bf16.msra.mxu0 0
    %2527 = vmatprep.subr.bf16.mxu0 0
    %2528 = vmatpush1.bf16.msra.mxu0 0
    %2529 = vmatprep.subr.bf16.mxu0 0
    %2530 = vmatpush1.bf16.msra.mxu0 0
    %2531 = vmatprep.subr.bf16.mxu0 0
    %2532 = vmatpush1.bf16.msra.mxu0 0
    %2533 = vmatprep.subr.bf16.mxu0 0
    %2534 = vmatpush1.bf16.msra.mxu0 0
    %2535 = vmatprep.subr.bf16.mxu0 0
    %2536 = vmatpush1.bf16.msra.mxu0 0
    %2537 = vmatprep.subr.bf16.mxu0 0
    %2538 = vmatpush1.bf16.msra.mxu0 0
    %2539 = vmatprep.subr.bf16.mxu0 0
    %2540 = vmatpush1.bf16.msra.mxu0 0
    %2541 = vmatprep.subr.bf16.mxu0 0
    %2542 = vmatpush1.bf16.msra.mxu0 0
    %2543 = vmatprep.subr.bf16.mxu0 0
    %2544 = vmatpush1.bf16.msra.mxu0 0
    %2545 = vmatprep.subr.bf16.mxu0 0
    %2546 = vmatpush1.bf16.msra.mxu0 0
    %2547 = vmatprep.subr.bf16.mxu0 0
    %2548 = vmatpush1.bf16.msra.mxu0 0
    %2549 = vmatprep.subr.bf16.mxu0 0
    %2550 = vmatpush1.bf16.msra.mxu0 0
    %2551 = vmatprep.mubr.bf16.mxu0 0
    %2552 = vmatmul.mubr.bf16.gmra.mrb[0].mxu0 %v2514
    %v2553 = vpop.f32.mrb[0].mxu0
    %v2554 = vadd.f32 0.0, %v2553
    %v2555 = vpop.f32.mrb[0].mxu0
    %v2556 = vpop.f32.mrb[0].mxu0
    %v2557 = vadd.f32 0.0, %v2556
    %v2558 = vpop.f32.mrb[0].mxu0
    %2559 = vdwg.mxu0
    %v2560 = vsel %vm37, %v2398, 0.0
    %v2561 = vsel %vm37, %v2450, 0.0
    %v2562 = vadd.f32 %v2560, %v2561
    %v2563 = vsel %vm37, %v2502, 0.0
    %v2564 = vadd.f32 %v2562, %v2563
    %v2565 = vsel %vm37, %v2554, 0.0
    %v2566 = vadd.f32 %v2564, %v2565
    %v2567 = vsel %vm37, %v2401, 0.0
    %v2568 = vsel %vm37, %v2453, 0.0
    %v2569 = vadd.f32 %v2567, %v2568
    %v2570 = vsel %vm37, %v2505, 0.0
    %v2571 = vadd.f32 %v2569, %v2570
    %v2572 = vsel %vm37, %v2557, 0.0
    %v2573 = vadd.f32 %v2571, %v2572
    %v2574 = vlaneseq
    %v2575 = vshrl.u32 %v2574, 7
    %v2576 = vsub.s32 4, %v2575
    %v2577 = vrot.slane %v34, %v2576
    %v2578 = vadd.f32 %v2566, %v2577
    %v2579 = vadd.f32 %v2573, %v2577
    %v2580 = vadd.f32 %v35, %v2578
    %v2581 = vadd.f32 %v36, %v2579
    %v2582 = vsel %vm37, %v2580, 0.0
    %2583 = vadd.xlane.f32.xlu0 %v2582
    %v2584 = vpop.xlane.xlu0 %2583
    %v2585 = vsel %vm37, %v2581, 0.0
    %2586 = vadd.xlane.f32.xlu0 %v2585
    %v2587 = vpop.xlane.xlu0 %2586
    %v2588 = vmul.f32 %v2584, %v44
    %v2589 = vmul.f32 %v2587, %v44
    %v2590 = vsub.f32 %v2580, %v2588
    %v2591 = vsub.f32 %v2581, %v2589
    %v2592 = vmul.f32 %v2590, %v2590
    %v2593 = vmul.f32 %v2591, %v2591
    %v2594 = vsel %vm37, %v2592, 0.0
    %2595 = vadd.xlane.f32.xlu0 %v2594
    %v2596 = vpop.xlane.xlu0 %2595
    %v2597 = vsel %vm37, %v2593, 0.0
    %2598 = vadd.xlane.f32.xlu0 %v2597
    %v2599 = vpop.xlane.xlu0 %2598
    %v2600 = vmul.f32 %v2596, %v44
    %v2601 = vmul.f32 %v2599, %v44
    %v2602 = vadd.f32 %v2600, 1e-05
    %v2603 = vadd.f32 %v2601, 1e-05
    %v2604 = vrsqrt.pop %v2602
    %v2605 = vrsqrt.pop %v2603
    %v2606 = vmul.f32 %v2590, %v2604
    %v2607 = vmul.f32 %v2591, %v2605
    %v2608 = vlaneseq
    %v2609 = vshrl.u32 %v2608, 7
    %v2610 = vsub.s32 2, %v2609
    %v2611 = vrot.slane %v34, %v2610
    %v2612 = vmul.f32 %v2606, %v2611
    %v2613 = vmul.f32 %v2607, %v2611
    %v2614 = vlaneseq
    %v2615 = vshrl.u32 %v2614, 7
    %v2616 = vsub.s32 3, %v2615
    %v2617 = vrot.slane %v34, %v2616
    %v2618 = vadd.f32 %v2612, %v2617
    %v2619 = vadd.f32 %v2613, %v2617
    %v2620 = vpack.c.bf16 %v2619, %v2618
    %v2621 = vld [vmem:[%s5] sm:$0xf]
    %v2622 = vld [vmem:[%s5 + $0x4] sm:$0xf]
    %v2623 = vld [vmem:[%s5 + $0x8] sm:$0xf]
    %v2624 = vld [vmem:[%s5 + $0xc] sm:$0xf]
    %v2625 = vlaneseq
    %v2626 = vshrl.u32 %v2625, 7
    %v2627 = vsub.s32 6, %v2626
    %v2628 = vrot.slane %v34, %v2627
    %v2633 = vunpack.c.l.b16 %v2621
    %v2634 = vunpack.c.l.b16 %v2622
    %v2635 = vunpack.c.l.b16 %v2623
    %v2636 = vunpack.c.l.b16 %v2624
    %v2637 = vpack.c.b16 %v2634, %v2633
    %v2638 = vpack.c.b16 %v2636, %v2635
    %v2642 = vsel %vm37, %v2620, 0
    %2644 = vmatprep.subr.bf16.mxu0 0
    %2645 = vmatpush1.bf16.msra.mxu0 %v2637
    %2646 = vmatprep.subr.bf16.mxu0 0
    %2647 = vmatpush1.bf16.msra.mxu0 %v2638
    %2648 = vmatprep.subr.bf16.mxu0 0
    %2649 = vmatpush1.bf16.msra.mxu0 0
    %2650 = vmatprep.subr.bf16.mxu0 0
    %2651 = vmatpush1.bf16.msra.mxu0 0
    %2652 = vmatprep.subr.bf16.mxu0 0
    %2653 = vmatpush1.bf16.msra.mxu0 0
    %2654 = vmatprep.subr.bf16.mxu0 0
    %2655 = vmatpush1.bf16.msra.mxu0 0
    %2656 = vmatprep.subr.bf16.mxu0 0
    %2657 = vmatpush1.bf16.msra.mxu0 0
    %2658 = vmatprep.subr.bf16.mxu0 0
    %2659 = vmatpush1.bf16.msra.mxu0 0
    %2660 = vmatprep.subr.bf16.mxu0 0
    %2661 = vmatpush1.bf16.msra.mxu0 0
    %2662 = vmatprep.subr.bf16.mxu0 0
    %2663 = vmatpush1.bf16.msra.mxu0 0
    %2664 = vmatprep.subr.bf16.mxu0 0
    %2665 = vmatpush1.bf16.msra.mxu0 0
    %2666 = vmatprep.subr.bf16.mxu0 0
    %2667 = vmatpush1.bf16.msra.mxu0 0
    %2668 = vmatprep.subr.bf16.mxu0 0
    %2669 = vmatpush1.bf16.msra.mxu0 0
    %2670 = vmatprep.subr.bf16.mxu0 0
    %2671 = vmatpush1.bf16.msra.mxu0 0
    %2672 = vmatprep.subr.bf16.mxu0 0
    %2673 = vmatpush1.bf16.msra.mxu0 0
    %2674 = vmatprep.subr.bf16.mxu0 0
    %2675 = vmatpush1.bf16.msra.mxu0 0
    %2676 = vmatprep.mubr.bf16.mxu0 0
    %2677 = vmatmul.mubr.bf16.gmra.mrb[0].mxu0 %v2642
    %v2678 = vpop.f32.mrb[0].mxu0
    %v2679 = vadd.f32 %v2628, %v2678
    %v2680 = vpop.f32.mrb[0].mxu0
    %v2681 = vpop.f32.mrb[0].mxu0
    %v2682 = vadd.f32 %v2628, %v2681
    %v2683 = vpop.f32.mrb[0].mxu0
    %2684 = vdwg.mxu0
    %v2685 = vmax.f32 %v2679, 0.0
    %v2686 = vmax.f32 %v2682, 0.0
    %v2687 = vpack.c.bf16 %v2686, %v2685
    %v2688 = vld [vmem:[%s6] sm:$0xf]
    %v2689 = vld [vmem:[%s6 + $0x4] sm:$0xf]
    %v2690 = vld [vmem:[%s6 + $0x8] sm:$0xf]
    %v2691 = vld [vmem:[%s6 + $0xc] sm:$0xf]
    %v2692 = vld [vmem:[%s6 + $0x10] sm:$0xf]
    %v2693 = vld [vmem:[%s6 + $0x14] sm:$0xf]
    %v2694 = vld [vmem:[%s6 + $0x18] sm:$0xf]
    %v2695 = vld [vmem:[%s6 + $0x1c] sm:$0xf]
    %v2696 = vld [vmem:[%s6 + $0x20] sm:$0xf]
    %v2697 = vld [vmem:[%s6 + $0x24] sm:$0xf]
    %v2698 = vld [vmem:[%s6 + $0x28] sm:$0xf]
    %v2699 = vld [vmem:[%s6 + $0x2c] sm:$0xf]
    %v2700 = vld [vmem:[%s6 + $0x30] sm:$0xf]
    %v2701 = vld [vmem:[%s6 + $0x34] sm:$0xf]
    %v2702 = vld [vmem:[%s6 + $0x38] sm:$0xf]
    %v2703 = vld [vmem:[%s6 + $0x3c] sm:$0xf]
    %v2704 = vlaneseq
    %v2705 = vshrl.u32 %v2704, 7
    %v2706 = vsub.s32 5, %v2705
    %v2707 = vrot.slane %v34, %v2706
    %v2724 = vunpack.c.l.b16 %v2688
    %v2725 = vunpack.c.l.b16 %v2689
    %v2726 = vunpack.c.l.b16 %v2690
    %v2727 = vunpack.c.l.b16 %v2691
    %v2728 = vunpack.c.l.b16 %v2692
    %v2729 = vunpack.c.l.b16 %v2693
    %v2730 = vunpack.c.l.b16 %v2694
    %v2731 = vunpack.c.l.b16 %v2695
    %v2732 = vunpack.c.l.b16 %v2696
    %v2733 = vunpack.c.l.b16 %v2697
    %v2734 = vunpack.c.l.b16 %v2698
    %v2735 = vunpack.c.l.b16 %v2699
    %v2736 = vunpack.c.l.b16 %v2700
    %v2737 = vunpack.c.l.b16 %v2701
    %v2738 = vunpack.c.l.b16 %v2702
    %v2739 = vunpack.c.l.b16 %v2703
    %v2740 = vpack.c.b16 %v2725, %v2724
    %v2741 = vpack.c.b16 %v2727, %v2726
    %v2742 = vpack.c.b16 %v2729, %v2728
    %v2743 = vpack.c.b16 %v2731, %v2730
    %v2744 = vpack.c.b16 %v2733, %v2732
    %v2745 = vpack.c.b16 %v2735, %v2734
    %v2746 = vpack.c.b16 %v2737, %v2736
    %v2747 = vpack.c.b16 %v2739, %v2738
    %2756 = vmatprep.subr.bf16.mxu0 0
    %2757 = vmatpush1.bf16.msra.mxu0 %v2740
    %2758 = vmatprep.subr.bf16.mxu0 0
    %2759 = vmatpush1.bf16.msra.mxu0 %v2741
    %2760 = vmatprep.subr.bf16.mxu0 0
    %2761 = vmatpush1.bf16.msra.mxu0 %v2742
    %2762 = vmatprep.subr.bf16.mxu0 0
    %2763 = vmatpush1.bf16.msra.mxu0 %v2743
    %2764 = vmatprep.subr.bf16.mxu0 0
    %2765 = vmatpush1.bf16.msra.mxu0 %v2744
    %2766 = vmatprep.subr.bf16.mxu0 0
    %2767 = vmatpush1.bf16.msra.mxu0 %v2745
    %2768 = vmatprep.subr.bf16.mxu0 0
    %2769 = vmatpush1.bf16.msra.mxu0 %v2746
    %2770 = vmatprep.subr.bf16.mxu0 0
    %2771 = vmatpush1.bf16.msra.mxu0 %v2747
    %2772 = vmatprep.subr.bf16.mxu0 0
    %2773 = vmatpush1.bf16.msra.mxu0 0
    %2774 = vmatprep.subr.bf16.mxu0 0
    %2775 = vmatpush1.bf16.msra.mxu0 0
    %2776 = vmatprep.subr.bf16.mxu0 0
    %2777 = vmatpush1.bf16.msra.mxu0 0
    %2778 = vmatprep.subr.bf16.mxu0 0
    %2779 = vmatpush1.bf16.msra.mxu0 0
    %2780 = vmatprep.subr.bf16.mxu0 0
    %2781 = vmatpush1.bf16.msra.mxu0 0
    %2782 = vmatprep.subr.bf16.mxu0 0
    %2783 = vmatpush1.bf16.msra.mxu0 0
    %2784 = vmatprep.subr.bf16.mxu0 0
    %2785 = vmatpush1.bf16.msra.mxu0 0
    %2786 = vmatprep.subr.bf16.mxu0 0
    %2787 = vmatpush1.bf16.msra.mxu0 0
    %2788 = vmatprep.mubr.bf16.mxu0 0
    %2789 = vmatmul.mubr.bf16.gmra.mrb[0].mxu0 %v2687
    %v2790 = vpop.f32.mrb[0].mxu0
    %v2791 = vadd.f32 %v2707, %v2790
    %v2792 = vpop.f32.mrb[0].mxu0
    %v2793 = vpop.f32.mrb[0].mxu0
    %v2794 = vadd.f32 %v2707, %v2793
    %v2795 = vpop.f32.mrb[0].mxu0
    %2796 = vdwg.mxu0
    %v2797 = vadd.f32 %v2580, %v2791
    %v2798 = vadd.f32 %v2581, %v2794
    %2799 = vst.msk [vmem:[#allocation2] sm:$0xff] %vm37, %v2797
    %2800 = vst.msk [vmem:[#allocation2 + $0x8] sm:$0xff] %vm37, %v2798
    %s2801 = scalar_lea.smem [#allocation5], 0
    %2802 = sst [smem:[%s2801]] %s1554
    // Predicated region
    $region34: #{tpu_custom_call.1} parent=1 // pred_check
      _
    $region35: #{tpu_custom_call.1} parent=1 // pred_check_branch
      %2804 = sbr.rel (0) target = $region37
    $region36: #{tpu_custom_call.1} parent=1 // pred_region
      %s2806 = ssub.s32 256, 256
      %2807 = vsyncadd [#allocation3], %s2806
      %s2808 = sshll.u32 [#allocation2], 4
      %s2809 = int_to_ptr.vmem [resolvable:$true] %s2808
      %2814 = dma.vmem_to_hbm [thread:$0]  %s2809, 256, %s8, [#allocation3], 128, 128, 8
    $region37: #{tpu_custom_call.1} parent=1 // pred_fallthru
      _
    // Predicated region
    $region38: #{tpu_custom_call.1} parent=1 // pred_check
      _
    $region39: #{tpu_custom_call.1} parent=1 // pred_check_branch
      %2816 = sbr.rel (0) target = $region41
    $region40: #{tpu_custom_call.1} parent=1 // pred_region
      %s2818 = ssub.s32 16, 16
      %2819 = vsyncadd [#allocation4], %s2818
      %2822 = dma.smem_to_hbm [#allocation5], 16, %s9, [#allocation4]
    $region41: #{tpu_custom_call.1} parent=1 // pred_fallthru
      _
    // Predicated region
    $region42: #{tpu_custom_call.1} parent=1 // pred_check
      _
    $region43: #{tpu_custom_call.1} parent=1 // pred_check_branch
      %2824 = sbr.rel (0) target = $region45
    $region44: #{tpu_custom_call.1} parent=1 // pred_region
      %2825 = dma.done [#allocation3], 256
    $region45: #{tpu_custom_call.1} parent=1 // pred_fallthru
      _
    // Predicated region
    $region46: #{tpu_custom_call.1} parent=1 // pred_check
      _
    $region47: #{tpu_custom_call.1} parent=1 // pred_check_branch
      %2827 = sbr.rel (0) target = $region49
    $region48: #{tpu_custom_call.1} parent=1 // pred_region
      %2828 = dma.done [#allocation4], 16
    $region49: #{tpu_custom_call.1} parent=1 // pred_fallthru
      _
    %2829 = sfence
    %2830 = vsyncpa [#allocation3], 1
    %2831 = vsyncpa [#allocation4], 1

</llo_original>
